<compile_context>
chip_gen: v5e
topology: v5e:2x2
jax: 0.10.0
libtpu: 0.0.40
codegen_flags: <defaults>
</compile_context>

<pallas_src>
import functools

import jax
import jax.numpy as jnp
from jax.experimental import pallas as pl
from jax.experimental.pallas import tpu as pltpu

BN_EPS = 1e-5
LANE = 128


def _round_up(x, m):
    return (x + m - 1) // m * m


def _vmem_limit_bytes():
    """~3/4 of physical VMEM (128 MiB on v5e/v6e, 64 MiB on v7x), capped at 96 MiB."""
    try:
        cap = int(pltpu.get_tpu_info().vmem_capacity_bytes)
        return min((cap * 3) // 4, 96 * 1024 * 1024)
    except Exception:
        return 48 * 1024 * 1024  # conservative (fits v7x)


def _pick_row_tile(m, target=1024):
    """Largest power-of-two row tile <= target dividing m."""
    for t in (2048, 1024, 512, 256, 128, 64, 32, 16, 8):
        if t <= target and m % t == 0:
            return t
    # TODO(synk): for awkward m (no power-of-two factor), pad m or mask a tail
    # block instead of falling back to a single (possibly huge) block.
    return m


# ----------------------------- Pallas kernels ------------------------------

def _conv_stats_kernel(*refs, pool, fuse_bn, cin, hp, wp):
    """One image: (2x2 maxpool | fused BN+ReLU of prev layer) + 3x3 conv (pad=1).

    refs (in order):
      x_ref:     pool  : (1, hp, 2, wp, 2*cin) bf16 raw-input pooling view
                 !pool : (1, hp*wp, cin)       bf16 previous-layer pre-activation
      w_ref:     (9, cin, cpad) bf16, grid-resident
      [scale_ref, shift_ref: (1, cin) f32 folded BN of the previous layer]
      z_ref:     (1, hp*wp, cpad) bf16 pre-activation output (this image)
      stats_ref: (1, 2, cpad) f32 per-image partials: row0=sum, row1=sum(x^2)
      pad_ref:   scratch (hp+2, wp+2, cin) bf16 zero-halo activation tile
    """
    if fuse_bn:
        x_ref, w_ref, scale_ref, shift_ref, z_ref, stats_ref, pad_ref = refs
    else:
        x_ref, w_ref, z_ref, stats_ref, pad_ref = refs
    cpad = z_ref.shape[-1]

    if pool:
        x = x_ref[0]                                        # (hp, 2, wp, 2*cin)
        xm = jnp.maximum(x[:, 0], x[:, 1])                  # max over row pairs
        feat = jnp.maximum(xm[:, :, :cin], xm[:, :, cin:])  # max over col pairs
    else:
        zp = x_ref[0].astype(jnp.float32)                   # (hp*wp, cin)
        if fuse_bn:                                         # fused BN1 + ReLU1
            zp = zp * scale_ref[...] + shift_ref[...]
        feat = jnp.maximum(zp, 0.0).astype(jnp.bfloat16).reshape(hp, wp, cin)

    # Zero only the 1-pixel halo (the interior is fully overwritten below).
    # Done every step so the kernel stays correct when the image axis is
    # megacore-"parallel" (each core owns its scratch instance).
    zero_row = jnp.zeros((1, wp + 2, cin), jnp.bfloat16)
    zero_col = jnp.zeros((hp, 1, cin), jnp.bfloat16)
    pad_ref[0:1, :, :] = zero_row
    pad_ref[hp + 1:hp + 2, :, :] = zero_row
    pad_ref[1:hp + 1, 0:1, :] = zero_col
    pad_ref[1:hp + 1, wp + 1:wp + 2, :] = zero_col
    pad_ref[1:hp + 1, 1:wp + 1, :] = feat

    # 3x3 conv = 9 shifted (hp*wp, cin) x (cin, cpad) bf16 MXU dots with
    # value-chained f32 accumulation (no scratch read-modify-write).
    # TODO(synk): on v6e/v7x, concatenate tap pairs (or a full im2col slab)
    # along K to better fill the 256-deep MXU contraction.
    acc = jnp.zeros((hp * wp, cpad), jnp.float32)
    for dy in range(3):
        for dx in range(3):
            tap = pad_ref[dy:dy + hp, dx:dx + wp, :].reshape(hp * wp, cin)
            acc = acc + jnp.dot(tap, w_ref[dy * 3 + dx],
                                preferred_element_type=jnp.float32)

    # Per-image partial BN statistics (each program owns its own stats block,
    # so no cross-program accumulation / serialization is needed).
    stats_ref[0, 0:1, :] = jnp.sum(acc, axis=0, keepdims=True)
    stats_ref[0, 1:2, :] = jnp.sum(acc * acc, axis=0, keepdims=True)

    z_ref[0] = acc.astype(z_ref.dtype)


def _bn_relu_kernel(z_ref, scale_ref, shift_ref, o_ref):
    """BN (prefolded scale/shift) + ReLU on one (TM, cpad) tile."""
    y = z_ref[...].astype(jnp.float32) * scale_ref[...] + shift_ref[...]
    o_ref[...] = jnp.maximum(y, 0.0).astype(o_ref.dtype)


# --------------------------- pallas_call wrappers ---------------------------

def _conv3x3_stats(x, w9, *, pool, hp, wp, n, cin, cpad,
                   scale=None, shift=None, vmem_limit):
    """Returns (z: (n, hp*wp, cpad) bf16, stats: (n, 2, cpad) f32 per-image)."""
    m_img = hp * wp
    fuse_bn = scale is not None
    kernel = functools.partial(_conv_stats_kernel, pool=pool, fuse_bn=fuse_bn,
                               cin=cin, hp=hp, wp=wp)
    if pool:
        x_spec = pl.BlockSpec((1, hp, 2, wp, 2 * cin), lambda i: (i, 0, 0, 0, 0))
    else:
        x_spec = pl.BlockSpec((1, m_img, cin), lambda i: (i, 0, 0))
    in_specs = [x_spec,
                pl.BlockSpec((9, cin, cpad), lambda i: (0, 0, 0))]     # resident
    inputs = [x, w9]
    if fuse_bn:
        in_specs += [pl.BlockSpec((1, cin), lambda i: (0, 0)),
                     pl.BlockSpec((1, cin), lambda i: (0, 0))]
        inputs += [scale, shift]
    return pl.pallas_call(
        kernel,
        out_shape=(jax.ShapeDtypeStruct((n, m_img, cpad), jnp.bfloat16),
                   jax.ShapeDtypeStruct((n, 2, cpad), jnp.float32)),
        grid=(n,),
        in_specs=in_specs,
        out_specs=(pl.BlockSpec((1, m_img, cpad), lambda i: (i, 0, 0)),
                   pl.BlockSpec((1, 2, cpad), lambda i: (i, 0, 0))),
        scratch_shapes=[pltpu.VMEM((hp + 2, wp + 2, cin), jnp.bfloat16)],
        compiler_params=pltpu.CompilerParams(
            dimension_semantics=("parallel",),      # per-image partials -> safe
            vmem_limit_bytes=vmem_limit),
    )(*inputs)


def _bn_relu_apply(z, scale, shift, *, out_dtype, vmem_limit):
    m, cpad = z.shape
    tm = _pick_row_tile(m)
    return pl.pallas_call(
        _bn_relu_kernel,
        out_shape=jax.ShapeDtypeStruct((m, cpad), out_dtype),
        grid=(m // tm,),
        in_specs=[pl.BlockSpec((tm, cpad), lambda i: (i, 0)),
                  pl.BlockSpec((1, cpad), lambda i: (0, 0)),
                  pl.BlockSpec((1, cpad), lambda i: (0, 0))],
        out_specs=pl.BlockSpec((tm, cpad), lambda i: (i, 0)),
        compiler_params=pltpu.CompilerParams(
            dimension_semantics=("parallel",),
            vmem_limit_bytes=vmem_limit),
    )(z, scale, shift)


def _bn_scale_shift(stats_per_image, gamma_p, beta_p, count):
    """Tiny XLA glue: reduce per-image stats, fold BN (batch mean, biased var)
    plus affine into a single scale/shift pair."""
    s = jnp.sum(stats_per_image, axis=0)                    # (2, cpad) f32
    mean = s[0] / count
    var = jnp.maximum(s[1] / count - mean * mean, 0.0)      # biased (training BN)
    # TODO(synk): for very large N*Hp*Wp switch to per-image (mean, M2) Chan
    # combination to avoid E[x^2]-E[x]^2 cancellation.
    inv_std = jax.lax.rsqrt(var + BN_EPS)
    scale = gamma_p[0] * inv_std
    shift = beta_p[0] - mean * scale
    return scale.reshape(1, -1), shift.reshape(1, -1)


# ------------------------------ forward pass ---------------------------------

def down_forward(x_nchw, params):
    """Equivalent of Down(in_ch, out_ch).forward(x) with x in NCHW."""
    n, cin, h, w = x_nchw.shape
    hp, wp = h // 2, w // 2
    m = n * hp * wp

    cmid = params["w1"].shape[0]
    cout = params["w2"].shape[0]
    cpad1 = _round_up(cmid, LANE)
    cpad2 = _round_up(cout, LANE)
    vmem_limit = _vmem_limit_bytes()

    # NCHW -> NHWC in bf16 (exact w.r.t. the bf16 conv inputs; halves input DMA),
    # then a free metadata reshape exposing the 2x2 pooling windows.
    # TODO(synk): keep the surrounding model channel-last to drop the entry/exit
    # HBM transposes entirely.
    x_nhwc = jnp.transpose(x_nchw, (0, 2, 3, 1)).astype(jnp.bfloat16)
    x5 = x_nhwc.reshape(n, hp, 2, wp, 2 * cin)

    # Weight / vector prep (tiny, one-time).
    def prep_w(wgt, cin_pad, cout_pad):
        co, ci = wgt.shape[0], wgt.shape[1]
        w9 = jnp.transpose(wgt, (2, 3, 1, 0)).reshape(9, ci, co)
        w9 = jnp.pad(w9, ((0, 0), (0, cin_pad - ci), (0, cout_pad - co)))
        return w9.astype(jnp.bfloat16)

    def prep_vec(v, cpad):
        return jnp.pad(v, (0, cpad - v.shape[0])).reshape(1, cpad).astype(jnp.float32)

    w1p = prep_w(params["w1"], cin, cpad1)
    w2p = prep_w(params["w2"], cpad1, cpad2)
    g1, be1 = prep_vec(params["g1"], cpad1), prep_vec(params["beta1"], cpad1)
    g2, be2 = prep_vec(params["g2"], cpad2), prep_vec(params["beta2"], cpad2)
    # NOTE: conv biases (params["b1"], params["b2"]) are cancelled exactly by the
    # training-mode BN mean subtraction, so they are not passed to the kernels.

    # Layer 1: fused 2x2 maxpool + 3x3 conv -> bf16 z1 + per-image stats.
    z1, s1 = _conv3x3_stats(x5, w1p, pool=True, hp=hp, wp=wp, n=n,
                            cin=cin, cpad=cpad1, vmem_limit=vmem_limit)
    sc1, sh1 = _bn_scale_shift(s1, g1, be1, m)

    # Layer 2: fused (BN1 + ReLU1) + 3x3 conv -> bf16 z2 + per-image stats
    # (no h1 intermediate written to HBM).
    z2, s2 = _conv3x3_stats(z1, w2p, pool=False, hp=hp, wp=wp, n=n,
                            cin=cpad1, cpad=cpad2,
                            scale=sc1, shift=sh1, vmem_limit=vmem_limit)
    sc2, sh2 = _bn_scale_shift(s2, g2, be2, m)

    # Final BN2 + ReLU2 (mem-bound FMA pass; f32 module output).
    out = _bn_relu_apply(z2.reshape(m, cpad2), sc2, sh2,
                         out_dtype=jnp.float32, vmem_limit=vmem_limit)

    out = out.reshape(n, hp, wp, cpad2)[:, :, :, :cout]
    return jnp.transpose(out, (0, 3, 1, 2))


def init_params(key, in_ch, out_ch):
    mid_ch = out_ch  # DoubleConv default: mid_channels = out_channels
    k1, k2, k3, k4 = jax.random.split(key, 4)
    return {
        "w1": 0.1 * jax.random.normal(k1, (mid_ch, in_ch, 3, 3), jnp.float32),
        "b1": 0.1 * jax.random.normal(k2, (mid_ch,), jnp.float32),
        "g1": jnp.ones((mid_ch,), jnp.float32),
        "beta1": jnp.zeros((mid_ch,), jnp.float32),
        "w2": 0.1 * jax.random.normal(k3, (out_ch, mid_ch, 3, 3), jnp.float32),
        "b2": 0.1 * jax.random.normal(k4, (out_ch,), jnp.float32),
        "g2": jnp.ones((out_ch,), jnp.float32),
        "beta2": jnp.zeros((out_ch,), jnp.float32),
    }


# ------------------------------ pure-JAX reference ---------------------------

def _ref_down(x_nchw, params):
    # Matches the kernels' MXU numerics: conv inputs/weights in bf16 with f32
    # accumulation; BN / ReLU in f32; conv bias included (BN cancels it).
    def conv_bn_relu(h, wgt, b, g, beta):
        y = jax.lax.conv_general_dilated(
            h.astype(jnp.bfloat16), wgt.astype(jnp.bfloat16), (1, 1), ((1, 1), (1, 1)),
            dimension_numbers=("NCHW", "OIHW", "NCHW"),
            preferred_element_type=jnp.float32) + b[None, :, None, None]
        mean = y.mean(axis=(0, 2, 3), keepdims=True)
        var = y.var(axis=(0, 2, 3), keepdims=True)  # biased, like PyTorch training BN
        yn = (y - mean) / jnp.sqrt(var + BN_EPS)
        yn = yn * g[None, :, None, None] + beta[None, :, None, None]
        return jnp.maximum(yn, 0.0)

    pooled = jax.lax.reduce_window(x_nchw, -jnp.inf, jax.lax.max,
                                   (1, 1, 2, 2), (1, 1, 2, 2), "VALID")
    h = conv_bn_relu(pooled, params["w1"], params["b1"], params["g1"], params["beta1"])
    return conv_bn_relu(h, params["w2"], params["b2"], params["g2"], params["beta2"])


# ----------------------------------- main ------------------------------------

if __name__ == "__main__":
    key = jax.random.PRNGKey(0)
    kx, kp = jax.random.split(key)

    N, C_IN, C_OUT, H, W = 2, 4, 8, 16, 16
    x = jax.random.normal(kx, (N, C_IN, H, W), jnp.float32)
    params = init_params(kp, C_IN, C_OUT)

    out = jax.jit(down_forward)(x, params)
    out = jax.block_until_ready(out)

    assert out.shape == (N, C_OUT, H // 2, W // 2), out.shape

    ref = _ref_down(x, params)
    # bf16 pre-activation intermediates (perf feedback) add ~1e-2 of rounding
    # relative to the f32-post-conv reference, hence the 3e-2 tolerance.
    if not jnp.allclose(out, ref, atol=3e-2, rtol=3e-2):
        err = float(jnp.max(jnp.abs(out - ref)))
        raise AssertionError(f"Pallas Down output mismatch vs reference (max |err|={err})")

    print("KERNEL_OK")
</pallas_src>

<mosaic_0001>
module attributes {stable_mosaic.version = 11 : i64} {
  func.func @_conv_stats_kernel(%arg0: i32, %arg1: memref<1x8x2x8x8xbf16, #tpu.memory_space<vmem>>, %arg2: memref<9x4x128xbf16, #tpu.memory_space<vmem>>, %arg3: memref<1x64x128xbf16, #tpu.memory_space<vmem>>, %arg4: memref<1x2x128xf32, #tpu.memory_space<vmem>>, %arg5: memref<10x10x4xbf16, #tpu.memory_space<vmem>>) attributes {dimension_semantics = [#tpu.dimension_semantics<parallel>], iteration_bounds = array<i64: 2>, scalar_prefetch = 0 : i64, scratch_operands = 1 : i64, tpu.core_type = #tpu.core_type<tc>, window_params = [{transform_indices = @transform_0, window_bounds = array<i64: 1, 8, 2, 8, 8>}, {pipeline_mode = #tpu.pipeline_mode<synchronous>, transform_indices = @transform_1, window_bounds = array<i64: 9, 4, 128>}, {transform_indices = @transform_2, window_bounds = array<i64: 1, 64, 128>}, {transform_indices = @transform_3, window_bounds = array<i64: 1, 2, 128>}]} {
    %c0 = arith.constant 0 : index
    %c0_0 = arith.constant 0 : index
    %c0_1 = arith.constant 0 : index
    %c0_2 = arith.constant 0 : index
    %c0_3 = arith.constant 0 : index
    %0 = vector.load %arg1[%c0, %c0_0, %c0_1, %c0_2, %c0_3] : memref<1x8x2x8x8xbf16, #tpu.memory_space<vmem>>, vector<1x8x2x8x8xbf16>
    %1 = vector.shape_cast %0 : vector<1x8x2x8x8xbf16> to vector<8x2x8x8xbf16>
    %2 = vector.extract_strided_slice %1 {offsets = [0, 0, 0, 0], sizes = [8, 1, 8, 8], strides = [1, 1, 1, 1]} : vector<8x2x8x8xbf16> to vector<8x1x8x8xbf16>
    %3 = vector.shape_cast %2 : vector<8x1x8x8xbf16> to vector<8x8x8xbf16>
    %4 = vector.extract_strided_slice %1 {offsets = [0, 1, 0, 0], sizes = [8, 1, 8, 8], strides = [1, 1, 1, 1]} : vector<8x2x8x8xbf16> to vector<8x1x8x8xbf16>
    %5 = vector.shape_cast %4 : vector<8x1x8x8xbf16> to vector<8x8x8xbf16>
    %6 = arith.maximumf %3, %5 : vector<8x8x8xbf16>
    %7 = vector.extract_strided_slice %6 {offsets = [0, 0, 0], sizes = [8, 8, 4], strides = [1, 1, 1]} : vector<8x8x8xbf16> to vector<8x8x4xbf16>
    %8 = vector.extract_strided_slice %6 {offsets = [0, 0, 4], sizes = [8, 8, 4], strides = [1, 1, 1]} : vector<8x8x8xbf16> to vector<8x8x4xbf16>
    %9 = arith.maximumf %7, %8 : vector<8x8x4xbf16>
    %cst = arith.constant 0.000000e+00 : bf16
    %10 = vector.broadcast %cst : bf16 to vector<1x10x4xbf16>
    %cst_4 = arith.constant 0.000000e+00 : bf16
    %11 = vector.broadcast %cst_4 : bf16 to vector<8x1x4xbf16>
    %c0_5 = arith.constant 0 : index
    %c0_6 = arith.constant 0 : index
    %c0_7 = arith.constant 0 : index
    %12 = vector.load %arg5[%c0_5, %c0_6, %c0_7] : memref<10x10x4xbf16, #tpu.memory_space<vmem>>, vector<1x10x4xbf16>
    tpu.vector_store %arg5[%c0_5, %c0_6, %c0_7], %10 {strides = array<i32>} : memref<10x10x4xbf16, #tpu.memory_space<vmem>>, vector<1x10x4xbf16>,
    %c9 = arith.constant 9 : index
    %c0_8 = arith.constant 0 : index
    %c0_9 = arith.constant 0 : index
    %13 = vector.load %arg5[%c9, %c0_8, %c0_9] : memref<10x10x4xbf16, #tpu.memory_space<vmem>>, vector<1x10x4xbf16>
    tpu.vector_store %arg5[%c9, %c0_8, %c0_9], %10 {strides = array<i32>} : memref<10x10x4xbf16, #tpu.memory_space<vmem>>, vector<1x10x4xbf16>,
    %c1 = arith.constant 1 : index
    %c0_10 = arith.constant 0 : index
    %c0_11 = arith.constant 0 : index
    %14 = vector.load %arg5[%c1, %c0_10, %c0_11] : memref<10x10x4xbf16, #tpu.memory_space<vmem>>, vector<8x1x4xbf16>
    tpu.vector_store %arg5[%c1, %c0_10, %c0_11], %11 {strides = array<i32>} : memref<10x10x4xbf16, #tpu.memory_space<vmem>>, vector<8x1x4xbf16>,
    %c1_12 = arith.constant 1 : index
    %c9_13 = arith.constant 9 : index
    %c0_14 = arith.constant 0 : index
    %15 = vector.load %arg5[%c1_12, %c9_13, %c0_14] : memref<10x10x4xbf16, #tpu.memory_space<vmem>>, vector<8x1x4xbf16>
    tpu.vector_store %arg5[%c1_12, %c9_13, %c0_14], %11 {strides = array<i32>} : memref<10x10x4xbf16, #tpu.memory_space<vmem>>, vector<8x1x4xbf16>,
    %c1_15 = arith.constant 1 : index
    %c1_16 = arith.constant 1 : index
    %c0_17 = arith.constant 0 : index
    %16 = vector.load %arg5[%c1_15, %c1_16, %c0_17] : memref<10x10x4xbf16, #tpu.memory_space<vmem>>, vector<8x8x4xbf16>
    tpu.vector_store %arg5[%c1_15, %c1_16, %c0_17], %9 {strides = array<i32>} : memref<10x10x4xbf16, #tpu.memory_space<vmem>>, vector<8x8x4xbf16>,
    %cst_18 = arith.constant 0.000000e+00 : f32
    %17 = vector.broadcast %cst_18 : f32 to vector<64x128xf32>
    %c0_19 = arith.constant 0 : index
    %c0_20 = arith.constant 0 : index
    %c0_21 = arith.constant 0 : index
    %18 = vector.load %arg5[%c0_19, %c0_20, %c0_21] : memref<10x10x4xbf16, #tpu.memory_space<vmem>>, vector<8x8x4xbf16>
    %19 = vector.shape_cast %18 : vector<8x8x4xbf16> to vector<64x4xbf16>
    %c0_22 = arith.constant 0 : index
    %c0_23 = arith.constant 0 : index
    %c0_24 = arith.constant 0 : index
    %20 = vector.load %arg2[%c0_22, %c0_23, %c0_24] : memref<9x4x128xbf16, #tpu.memory_space<vmem>>, vector<1x4x128xbf16>
    %21 = vector.shape_cast %20 : vector<1x4x128xbf16> to vector<4x128xbf16>
    %cst_25 = arith.constant dense<0.000000e+00> : vector<64x128xf32>
    %22 = tpu.matmul %19, %21, %cst_25 {dimension_numbers = #tpu.dot_dimension_numbers<[1], [0], [0], [1], [0, 0, 1, 1], [], []>} : vector<64x4xbf16>, vector<4x128xbf16>, vector<64x128xf32> -> vector<64x128xf32>
    %23 = arith.addf %17, %22 : vector<64x128xf32>
    %c0_26 = arith.constant 0 : index
    %c1_27 = arith.constant 1 : index
    %c0_28 = arith.constant 0 : index
    %24 = vector.load %arg5[%c0_26, %c1_27, %c0_28] : memref<10x10x4xbf16, #tpu.memory_space<vmem>>, vector<8x8x4xbf16>
    %25 = vector.shape_cast %24 : vector<8x8x4xbf16> to vector<64x4xbf16>
    %c1_29 = arith.constant 1 : index
    %c0_30 = arith.constant 0 : index
    %c0_31 = arith.constant 0 : index
    %26 = vector.load %arg2[%c1_29, %c0_30, %c0_31] : memref<9x4x128xbf16, #tpu.memory_space<vmem>>, vector<1x4x128xbf16>
    %27 = vector.shape_cast %26 : vector<1x4x128xbf16> to vector<4x128xbf16>
    %cst_32 = arith.constant dense<0.000000e+00> : vector<64x128xf32>
    %28 = tpu.matmul %25, %27, %cst_32 {dimension_numbers = #tpu.dot_dimension_numbers<[1], [0], [0], [1], [0, 0, 1, 1], [], []>} : vector<64x4xbf16>, vector<4x128xbf16>, vector<64x128xf32> -> vector<64x128xf32>
    %29 = arith.addf %23, %28 : vector<64x128xf32>
    %c0_33 = arith.constant 0 : index
    %c2 = arith.constant 2 : index
    %c0_34 = arith.constant 0 : index
    %30 = vector.load %arg5[%c0_33, %c2, %c0_34] : memref<10x10x4xbf16, #tpu.memory_space<vmem>>, vector<8x8x4xbf16>
    %31 = vector.shape_cast %30 : vector<8x8x4xbf16> to vector<64x4xbf16>
    %c2_35 = arith.constant 2 : index
    %c0_36 = arith.constant 0 : index
    %c0_37 = arith.constant 0 : index
    %32 = vector.load %arg2[%c2_35, %c0_36, %c0_37] : memref<9x4x128xbf16, #tpu.memory_space<vmem>>, vector<1x4x128xbf16>
    %33 = vector.shape_cast %32 : vector<1x4x128xbf16> to vector<4x128xbf16>
    %cst_38 = arith.constant dense<0.000000e+00> : vector<64x128xf32>
    %34 = tpu.matmul %31, %33, %cst_38 {dimension_numbers = #tpu.dot_dimension_numbers<[1], [0], [0], [1], [0, 0, 1, 1], [], []>} : vector<64x4xbf16>, vector<4x128xbf16>, vector<64x128xf32> -> vector<64x128xf32>
    %35 = arith.addf %29, %34 : vector<64x128xf32>
    %c1_39 = arith.constant 1 : index
    %c0_40 = arith.constant 0 : index
    %c0_41 = arith.constant 0 : index
    %36 = vector.load %arg5[%c1_39, %c0_40, %c0_41] : memref<10x10x4xbf16, #tpu.memory_space<vmem>>, vector<8x8x4xbf16>
    %37 = vector.shape_cast %36 : vector<8x8x4xbf16> to vector<64x4xbf16>
    %c3 = arith.constant 3 : index
    %c0_42 = arith.constant 0 : index
    %c0_43 = arith.constant 0 : index
    %38 = vector.load %arg2[%c3, %c0_42, %c0_43] : memref<9x4x128xbf16, #tpu.memory_space<vmem>>, vector<1x4x128xbf16>
    %39 = vector.shape_cast %38 : vector<1x4x128xbf16> to vector<4x128xbf16>
    %cst_44 = arith.constant dense<0.000000e+00> : vector<64x128xf32>
    %40 = tpu.matmul %37, %39, %cst_44 {dimension_numbers = #tpu.dot_dimension_numbers<[1], [0], [0], [1], [0, 0, 1, 1], [], []>} : vector<64x4xbf16>, vector<4x128xbf16>, vector<64x128xf32> -> vector<64x128xf32>
    %41 = arith.addf %35, %40 : vector<64x128xf32>
    %c1_45 = arith.constant 1 : index
    %c1_46 = arith.constant 1 : index
    %c0_47 = arith.constant 0 : index
    %42 = vector.load %arg5[%c1_45, %c1_46, %c0_47] : memref<10x10x4xbf16, #tpu.memory_space<vmem>>, vector<8x8x4xbf16>
    %43 = vector.shape_cast %42 : vector<8x8x4xbf16> to vector<64x4xbf16>
    %c4 = arith.constant 4 : index
    %c0_48 = arith.constant 0 : index
    %c0_49 = arith.constant 0 : index
    %44 = vector.load %arg2[%c4, %c0_48, %c0_49] : memref<9x4x128xbf16, #tpu.memory_space<vmem>>, vector<1x4x128xbf16>
    %45 = vector.shape_cast %44 : vector<1x4x128xbf16> to vector<4x128xbf16>
    %cst_50 = arith.constant dense<0.000000e+00> : vector<64x128xf32>
    %46 = tpu.matmul %43, %45, %cst_50 {dimension_numbers = #tpu.dot_dimension_numbers<[1], [0], [0], [1], [0, 0, 1, 1], [], []>} : vector<64x4xbf16>, vector<4x128xbf16>, vector<64x128xf32> -> vector<64x128xf32>
    %47 = arith.addf %41, %46 : vector<64x128xf32>
    %c1_51 = arith.constant 1 : index
    %c2_52 = arith.constant 2 : index
    %c0_53 = arith.constant 0 : index
    %48 = vector.load %arg5[%c1_51, %c2_52, %c0_53] : memref<10x10x4xbf16, #tpu.memory_space<vmem>>, vector<8x8x4xbf16>
    %49 = vector.shape_cast %48 : vector<8x8x4xbf16> to vector<64x4xbf16>
    %c5 = arith.constant 5 : index
    %c0_54 = arith.constant 0 : index
    %c0_55 = arith.constant 0 : index
    %50 = vector.load %arg2[%c5, %c0_54, %c0_55] : memref<9x4x128xbf16, #tpu.memory_space<vmem>>, vector<1x4x128xbf16>
    %51 = vector.shape_cast %50 : vector<1x4x128xbf16> to vector<4x128xbf16>
    %cst_56 = arith.constant dense<0.000000e+00> : vector<64x128xf32>
    %52 = tpu.matmul %49, %51, %cst_56 {dimension_numbers = #tpu.dot_dimension_numbers<[1], [0], [0], [1], [0, 0, 1, 1], [], []>} : vector<64x4xbf16>, vector<4x128xbf16>, vector<64x128xf32> -> vector<64x128xf32>
    %53 = arith.addf %47, %52 : vector<64x128xf32>
    %c2_57 = arith.constant 2 : index
    %c0_58 = arith.constant 0 : index
    %c0_59 = arith.constant 0 : index
    %54 = vector.load %arg5[%c2_57, %c0_58, %c0_59] : memref<10x10x4xbf16, #tpu.memory_space<vmem>>, vector<8x8x4xbf16>
    %55 = vector.shape_cast %54 : vector<8x8x4xbf16> to vector<64x4xbf16>
    %c6 = arith.constant 6 : index
    %c0_60 = arith.constant 0 : index
    %c0_61 = arith.constant 0 : index
    %56 = vector.load %arg2[%c6, %c0_60, %c0_61] : memref<9x4x128xbf16, #tpu.memory_space<vmem>>, vector<1x4x128xbf16>
    %57 = vector.shape_cast %56 : vector<1x4x128xbf16> to vector<4x128xbf16>
    %cst_62 = arith.constant dense<0.000000e+00> : vector<64x128xf32>
    %58 = tpu.matmul %55, %57, %cst_62 {dimension_numbers = #tpu.dot_dimension_numbers<[1], [0], [0], [1], [0, 0, 1, 1], [], []>} : vector<64x4xbf16>, vector<4x128xbf16>, vector<64x128xf32> -> vector<64x128xf32>
    %59 = arith.addf %53, %58 : vector<64x128xf32>
    %c2_63 = arith.constant 2 : index
    %c1_64 = arith.constant 1 : index
    %c0_65 = arith.constant 0 : index
    %60 = vector.load %arg5[%c2_63, %c1_64, %c0_65] : memref<10x10x4xbf16, #tpu.memory_space<vmem>>, vector<8x8x4xbf16>
    %61 = vector.shape_cast %60 : vector<8x8x4xbf16> to vector<64x4xbf16>
    %c7 = arith.constant 7 : index
    %c0_66 = arith.constant 0 : index
    %c0_67 = arith.constant 0 : index
    %62 = vector.load %arg2[%c7, %c0_66, %c0_67] : memref<9x4x128xbf16, #tpu.memory_space<vmem>>, vector<1x4x128xbf16>
    %63 = vector.shape_cast %62 : vector<1x4x128xbf16> to vector<4x128xbf16>
    %cst_68 = arith.constant dense<0.000000e+00> : vector<64x128xf32>
    %64 = tpu.matmul %61, %63, %cst_68 {dimension_numbers = #tpu.dot_dimension_numbers<[1], [0], [0], [1], [0, 0, 1, 1], [], []>} : vector<64x4xbf16>, vector<4x128xbf16>, vector<64x128xf32> -> vector<64x128xf32>
    %65 = arith.addf %59, %64 : vector<64x128xf32>
    %c2_69 = arith.constant 2 : index
    %c2_70 = arith.constant 2 : index
    %c0_71 = arith.constant 0 : index
    %66 = vector.load %arg5[%c2_69, %c2_70, %c0_71] : memref<10x10x4xbf16, #tpu.memory_space<vmem>>, vector<8x8x4xbf16>
    %67 = vector.shape_cast %66 : vector<8x8x4xbf16> to vector<64x4xbf16>
    %c8 = arith.constant 8 : index
    %c0_72 = arith.constant 0 : index
    %c0_73 = arith.constant 0 : index
    %68 = vector.load %arg2[%c8, %c0_72, %c0_73] : memref<9x4x128xbf16, #tpu.memory_space<vmem>>, vector<1x4x128xbf16>
    %69 = vector.shape_cast %68 : vector<1x4x128xbf16> to vector<4x128xbf16>
    %cst_74 = arith.constant dense<0.000000e+00> : vector<64x128xf32>
    %70 = tpu.matmul %67, %69, %cst_74 {dimension_numbers = #tpu.dot_dimension_numbers<[1], [0], [0], [1], [0, 0, 1, 1], [], []>} : vector<64x4xbf16>, vector<4x128xbf16>, vector<64x128xf32> -> vector<64x128xf32>
    %71 = arith.addf %65, %70 : vector<64x128xf32>
    %cst_75 = arith.constant dense<0.000000e+00> : vector<128xf32>
    %72 = vector.multi_reduction <add>, %71, %cst_75 [0] : vector<64x128xf32> to vector<128xf32>
    %73 = vector.shape_cast %72 : vector<128xf32> to vector<1x128xf32>
    %c0_76 = arith.constant 0 : index
    %c0_77 = arith.constant 0 : index
    %c0_78 = arith.constant 0 : index
    %74 = vector.load %arg4[%c0_76, %c0_77, %c0_78] : memref<1x2x128xf32, #tpu.memory_space<vmem>>, vector<1x1x128xf32>
    %75 = vector.shape_cast %74 : vector<1x1x128xf32> to vector<1x128xf32>
    %76 = vector.shape_cast %73 : vector<1x128xf32> to vector<1x1x128xf32>
    tpu.vector_store %arg4[%c0_76, %c0_77, %c0_78], %76 {strides = array<i32>} : memref<1x2x128xf32, #tpu.memory_space<vmem>>, vector<1x1x128xf32>,
    %77 = arith.mulf %71, %71 : vector<64x128xf32>
    %cst_79 = arith.constant dense<0.000000e+00> : vector<128xf32>
    %78 = vector.multi_reduction <add>, %77, %cst_79 [0] : vector<64x128xf32> to vector<128xf32>
    %79 = vector.shape_cast %78 : vector<128xf32> to vector<1x128xf32>
    %c0_80 = arith.constant 0 : index
    %c1_81 = arith.constant 1 : index
    %c0_82 = arith.constant 0 : index
    %80 = vector.load %arg4[%c0_80, %c1_81, %c0_82] : memref<1x2x128xf32, #tpu.memory_space<vmem>>, vector<1x1x128xf32>
    %81 = vector.shape_cast %80 : vector<1x1x128xf32> to vector<1x128xf32>
    %82 = vector.shape_cast %79 : vector<1x128xf32> to vector<1x1x128xf32>
    tpu.vector_store %arg4[%c0_80, %c1_81, %c0_82], %82 {strides = array<i32>} : memref<1x2x128xf32, #tpu.memory_space<vmem>>, vector<1x1x128xf32>,
    %83 = arith.truncf %71 : vector<64x128xf32> to vector<64x128xbf16>
    %c0_83 = arith.constant 0 : index
    %c0_84 = arith.constant 0 : index
    %c0_85 = arith.constant 0 : index
    %84 = vector.load %arg3[%c0_83, %c0_84, %c0_85] : memref<1x64x128xbf16, #tpu.memory_space<vmem>>, vector<1x64x128xbf16>
    %85 = vector.shape_cast %84 : vector<1x64x128xbf16> to vector<64x128xbf16>
    %86 = vector.shape_cast %83 : vector<64x128xbf16> to vector<1x64x128xbf16>
    tpu.vector_store %arg3[%c0_83, %c0_84, %c0_85], %86 {strides = array<i32>} : memref<1x64x128xbf16, #tpu.memory_space<vmem>>, vector<1x64x128xbf16>,
    return
  }
  func.func @transform_0(%arg0: i32) -> (i32, i32, i32, i32, i32) {
    %c0_i32 = arith.constant 0 : i32
    %c0_i32_0 = arith.constant 0 : i32
    %c0_i32_1 = arith.constant 0 : i32
    %c0_i32_2 = arith.constant 0 : i32
    %c0_i32_3 = arith.constant 0 : i32
    return %arg0, %c0_i32, %c0_i32_0, %c0_i32_1, %c0_i32_2 : i32, i32, i32, i32, i32
  }
  func.func @transform_1(%arg0: i32) -> (i32, i32, i32) {
    %c0_i32 = arith.constant 0 : i32
    %c0_i32_0 = arith.constant 0 : i32
    %c0_i32_1 = arith.constant 0 : i32
    %c0_i32_2 = arith.constant 0 : i32
    return %c0_i32, %c0_i32_0, %c0_i32_1 : i32, i32, i32
  }
  func.func @transform_2(%arg0: i32) -> (i32, i32, i32) {
    %c0_i32 = arith.constant 0 : i32
    %c0_i32_0 = arith.constant 0 : i32
    %c0_i32_1 = arith.constant 0 : i32
    return %arg0, %c0_i32, %c0_i32_0 : i32, i32, i32
  }
  func.func @transform_3(%arg0: i32) -> (i32, i32, i32) {
    %c0_i32 = arith.constant 0 : i32
    %c0_i32_0 = arith.constant 0 : i32
    %c0_i32_1 = arith.constant 0 : i32
    return %arg0, %c0_i32, %c0_i32_0 : i32, i32, i32
  }
}

module attributes {stable_mosaic.version = 11 : i64} {
  func.func @_conv_stats_kernel(%arg0: i32, %arg1: memref<1x64x128xbf16, #tpu.memory_space<vmem>>, %arg2: memref<9x128x128xbf16, #tpu.memory_space<vmem>>, %arg3: memref<1x128xf32, #tpu.memory_space<vmem>>, %arg4: memref<1x128xf32, #tpu.memory_space<vmem>>, %arg5: memref<1x64x128xbf16, #tpu.memory_space<vmem>>, %arg6: memref<1x2x128xf32, #tpu.memory_space<vmem>>, %arg7: memref<10x10x128xbf16, #tpu.memory_space<vmem>>) attributes {dimension_semantics = [#tpu.dimension_semantics<parallel>], iteration_bounds = array<i64: 2>, scalar_prefetch = 0 : i64, scratch_operands = 1 : i64, tpu.core_type = #tpu.core_type<tc>, window_params = [{transform_indices = @transform_0, window_bounds = array<i64: 1, 64, 128>}, {pipeline_mode = #tpu.pipeline_mode<synchronous>, transform_indices = @transform_1, window_bounds = array<i64: 9, 128, 128>}, {pipeline_mode = #tpu.pipeline_mode<synchronous>, transform_indices = @transform_2, window_bounds = array<i64: 1, 128>}, {pipeline_mode = #tpu.pipeline_mode<synchronous>, transform_indices = @transform_3, window_bounds = array<i64: 1, 128>}, {transform_indices = @transform_4, window_bounds = array<i64: 1, 64, 128>}, {transform_indices = @transform_5, window_bounds = array<i64: 1, 2, 128>}]} {
    %c0 = arith.constant 0 : index
    %c0_0 = arith.constant 0 : index
    %c0_1 = arith.constant 0 : index
    %0 = vector.load %arg1[%c0, %c0_0, %c0_1] : memref<1x64x128xbf16, #tpu.memory_space<vmem>>, vector<1x64x128xbf16>
    %1 = vector.shape_cast %0 : vector<1x64x128xbf16> to vector<64x128xbf16>
    %2 = arith.extf %1 : vector<64x128xbf16> to vector<64x128xf32>
    %c0_2 = arith.constant 0 : index
    %c0_3 = arith.constant 0 : index
    %3 = vector.load %arg3[%c0_2, %c0_3] : memref<1x128xf32, #tpu.memory_space<vmem>>, vector<1x128xf32>
    %4 = vector.broadcast %3 : vector<1x128xf32> to vector<64x128xf32>
    %5 = arith.mulf %2, %4 : vector<64x128xf32>
    %c0_4 = arith.constant 0 : index
    %c0_5 = arith.constant 0 : index
    %6 = vector.load %arg4[%c0_4, %c0_5] : memref<1x128xf32, #tpu.memory_space<vmem>>, vector<1x128xf32>
    %7 = vector.broadcast %6 : vector<1x128xf32> to vector<64x128xf32>
    %8 = arith.addf %5, %7 : vector<64x128xf32>
    %cst = arith.constant 0.000000e+00 : f32
    %9 = vector.broadcast %cst : f32 to vector<64x128xf32>
    %10 = arith.maximumf %8, %9 : vector<64x128xf32>
    %11 = arith.truncf %10 : vector<64x128xf32> to vector<64x128xbf16>
    %12 = vector.shape_cast %11 : vector<64x128xbf16> to vector<8x8x128xbf16>
    %cst_6 = arith.constant 0.000000e+00 : bf16
    %13 = vector.broadcast %cst_6 : bf16 to vector<1x10x128xbf16>
    %cst_7 = arith.constant 0.000000e+00 : bf16
    %14 = vector.broadcast %cst_7 : bf16 to vector<8x1x128xbf16>
    %c0_8 = arith.constant 0 : index
    %c0_9 = arith.constant 0 : index
    %c0_10 = arith.constant 0 : index
    %15 = vector.load %arg7[%c0_8, %c0_9, %c0_10] : memref<10x10x128xbf16, #tpu.memory_space<vmem>>, vector<1x10x128xbf16>
    tpu.vector_store %arg7[%c0_8, %c0_9, %c0_10], %13 {strides = array<i32>} : memref<10x10x128xbf16, #tpu.memory_space<vmem>>, vector<1x10x128xbf16>,
    %c9 = arith.constant 9 : index
    %c0_11 = arith.constant 0 : index
    %c0_12 = arith.constant 0 : index
    %16 = vector.load %arg7[%c9, %c0_11, %c0_12] : memref<10x10x128xbf16, #tpu.memory_space<vmem>>, vector<1x10x128xbf16>
    tpu.vector_store %arg7[%c9, %c0_11, %c0_12], %13 {strides = array<i32>} : memref<10x10x128xbf16, #tpu.memory_space<vmem>>, vector<1x10x128xbf16>,
    %c1 = arith.constant 1 : index
    %c0_13 = arith.constant 0 : index
    %c0_14 = arith.constant 0 : index
    %17 = vector.load %arg7[%c1, %c0_13, %c0_14] : memref<10x10x128xbf16, #tpu.memory_space<vmem>>, vector<8x1x128xbf16>
    tpu.vector_store %arg7[%c1, %c0_13, %c0_14], %14 {strides = array<i32>} : memref<10x10x128xbf16, #tpu.memory_space<vmem>>, vector<8x1x128xbf16>,
    %c1_15 = arith.constant 1 : index
    %c9_16 = arith.constant 9 : index
    %c0_17 = arith.constant 0 : index
    %18 = vector.load %arg7[%c1_15, %c9_16, %c0_17] : memref<10x10x128xbf16, #tpu.memory_space<vmem>>, vector<8x1x128xbf16>
    tpu.vector_store %arg7[%c1_15, %c9_16, %c0_17], %14 {strides = array<i32>} : memref<10x10x128xbf16, #tpu.memory_space<vmem>>, vector<8x1x128xbf16>,
    %c1_18 = arith.constant 1 : index
    %c1_19 = arith.constant 1 : index
    %c0_20 = arith.constant 0 : index
    %19 = vector.load %arg7[%c1_18, %c1_19, %c0_20] : memref<10x10x128xbf16, #tpu.memory_space<vmem>>, vector<8x8x128xbf16>
    tpu.vector_store %arg7[%c1_18, %c1_19, %c0_20], %12 {strides = array<i32>} : memref<10x10x128xbf16, #tpu.memory_space<vmem>>, vector<8x8x128xbf16>,
    %cst_21 = arith.constant 0.000000e+00 : f32
    %20 = vector.broadcast %cst_21 : f32 to vector<64x128xf32>
    %c0_22 = arith.constant 0 : index
    %c0_23 = arith.constant 0 : index
    %c0_24 = arith.constant 0 : index
    %21 = vector.load %arg7[%c0_22, %c0_23, %c0_24] : memref<10x10x128xbf16, #tpu.memory_space<vmem>>, vector<8x8x128xbf16>
    %22 = vector.shape_cast %21 : vector<8x8x128xbf16> to vector<64x128xbf16>
    %c0_25 = arith.constant 0 : index
    %c0_26 = arith.constant 0 : index
    %c0_27 = arith.constant 0 : index
    %23 = vector.load %arg2[%c0_25, %c0_26, %c0_27] : memref<9x128x128xbf16, #tpu.memory_space<vmem>>, vector<1x128x128xbf16>
    %24 = vector.shape_cast %23 : vector<1x128x128xbf16> to vector<128x128xbf16>
    %cst_28 = arith.constant dense<0.000000e+00> : vector<64x128xf32>
    %25 = tpu.matmul %22, %24, %cst_28 {dimension_numbers = #tpu.dot_dimension_numbers<[1], [0], [0], [1], [0, 0, 1, 1], [], []>} : vector<64x128xbf16>, vector<128x128xbf16>, vector<64x128xf32> -> vector<64x128xf32>
    %26 = arith.addf %20, %25 : vector<64x128xf32>
    %c0_29 = arith.constant 0 : index
    %c1_30 = arith.constant 1 : index
    %c0_31 = arith.constant 0 : index
    %27 = vector.load %arg7[%c0_29, %c1_30, %c0_31] : memref<10x10x128xbf16, #tpu.memory_space<vmem>>, vector<8x8x128xbf16>
    %28 = vector.shape_cast %27 : vector<8x8x128xbf16> to vector<64x128xbf16>
    %c1_32 = arith.constant 1 : index
    %c0_33 = arith.constant 0 : index
    %c0_34 = arith.constant 0 : index
    %29 = vector.load %arg2[%c1_32, %c0_33, %c0_34] : memref<9x128x128xbf16, #tpu.memory_space<vmem>>, vector<1x128x128xbf16>
    %30 = vector.shape_cast %29 : vector<1x128x128xbf16> to vector<128x128xbf16>
    %cst_35 = arith.constant dense<0.000000e+00> : vector<64x128xf32>
    %31 = tpu.matmul %28, %30, %cst_35 {dimension_numbers = #tpu.dot_dimension_numbers<[1], [0], [0], [1], [0, 0, 1, 1], [], []>} : vector<64x128xbf16>, vector<128x128xbf16>, vector<64x128xf32> -> vector<64x128xf32>
    %32 = arith.addf %26, %31 : vector<64x128xf32>
    %c0_36 = arith.constant 0 : index
    %c2 = arith.constant 2 : index
    %c0_37 = arith.constant 0 : index
    %33 = vector.load %arg7[%c0_36, %c2, %c0_37] : memref<10x10x128xbf16, #tpu.memory_space<vmem>>, vector<8x8x128xbf16>
    %34 = vector.shape_cast %33 : vector<8x8x128xbf16> to vector<64x128xbf16>
    %c2_38 = arith.constant 2 : index
    %c0_39 = arith.constant 0 : index
    %c0_40 = arith.constant 0 : index
    %35 = vector.load %arg2[%c2_38, %c0_39, %c0_40] : memref<9x128x128xbf16, #tpu.memory_space<vmem>>, vector<1x128x128xbf16>
    %36 = vector.shape_cast %35 : vector<1x128x128xbf16> to vector<128x128xbf16>
    %cst_41 = arith.constant dense<0.000000e+00> : vector<64x128xf32>
    %37 = tpu.matmul %34, %36, %cst_41 {dimension_numbers = #tpu.dot_dimension_numbers<[1], [0], [0], [1], [0, 0, 1, 1], [], []>} : vector<64x128xbf16>, vector<128x128xbf16>, vector<64x128xf32> -> vector<64x128xf32>
    %38 = arith.addf %32, %37 : vector<64x128xf32>
    %c1_42 = arith.constant 1 : index
    %c0_43 = arith.constant 0 : index
    %c0_44 = arith.constant 0 : index
    %39 = vector.load %arg7[%c1_42, %c0_43, %c0_44] : memref<10x10x128xbf16, #tpu.memory_space<vmem>>, vector<8x8x128xbf16>
    %40 = vector.shape_cast %39 : vector<8x8x128xbf16> to vector<64x128xbf16>
    %c3 = arith.constant 3 : index
    %c0_45 = arith.constant 0 : index
    %c0_46 = arith.constant 0 : index
    %41 = vector.load %arg2[%c3, %c0_45, %c0_46] : memref<9x128x128xbf16, #tpu.memory_space<vmem>>, vector<1x128x128xbf16>
    %42 = vector.shape_cast %41 : vector<1x128x128xbf16> to vector<128x128xbf16>
    %cst_47 = arith.constant dense<0.000000e+00> : vector<64x128xf32>
    %43 = tpu.matmul %40, %42, %cst_47 {dimension_numbers = #tpu.dot_dimension_numbers<[1], [0], [0], [1], [0, 0, 1, 1], [], []>} : vector<64x128xbf16>, vector<128x128xbf16>, vector<64x128xf32> -> vector<64x128xf32>
    %44 = arith.addf %38, %43 : vector<64x128xf32>
    %c1_48 = arith.constant 1 : index
    %c1_49 = arith.constant 1 : index
    %c0_50 = arith.constant 0 : index
    %45 = vector.load %arg7[%c1_48, %c1_49, %c0_50] : memref<10x10x128xbf16, #tpu.memory_space<vmem>>, vector<8x8x128xbf16>
    %46 = vector.shape_cast %45 : vector<8x8x128xbf16> to vector<64x128xbf16>
    %c4 = arith.constant 4 : index
    %c0_51 = arith.constant 0 : index
    %c0_52 = arith.constant 0 : index
    %47 = vector.load %arg2[%c4, %c0_51, %c0_52] : memref<9x128x128xbf16, #tpu.memory_space<vmem>>, vector<1x128x128xbf16>
    %48 = vector.shape_cast %47 : vector<1x128x128xbf16> to vector<128x128xbf16>
    %cst_53 = arith.constant dense<0.000000e+00> : vector<64x128xf32>
    %49 = tpu.matmul %46, %48, %cst_53 {dimension_numbers = #tpu.dot_dimension_numbers<[1], [0], [0], [1], [0, 0, 1, 1], [], []>} : vector<64x128xbf16>, vector<128x128xbf16>, vector<64x128xf32> -> vector<64x128xf32>
    %50 = arith.addf %44, %49 : vector<64x128xf32>
    %c1_54 = arith.constant 1 : index
    %c2_55 = arith.constant 2 : index
    %c0_56 = arith.constant 0 : index
    %51 = vector.load %arg7[%c1_54, %c2_55, %c0_56] : memref<10x10x128xbf16, #tpu.memory_space<vmem>>, vector<8x8x128xbf16>
    %52 = vector.shape_cast %51 : vector<8x8x128xbf16> to vector<64x128xbf16>
    %c5 = arith.constant 5 : index
    %c0_57 = arith.constant 0 : index
    %c0_58 = arith.constant 0 : index
    %53 = vector.load %arg2[%c5, %c0_57, %c0_58] : memref<9x128x128xbf16, #tpu.memory_space<vmem>>, vector<1x128x128xbf16>
    %54 = vector.shape_cast %53 : vector<1x128x128xbf16> to vector<128x128xbf16>
    %cst_59 = arith.constant dense<0.000000e+00> : vector<64x128xf32>
    %55 = tpu.matmul %52, %54, %cst_59 {dimension_numbers = #tpu.dot_dimension_numbers<[1], [0], [0], [1], [0, 0, 1, 1], [], []>} : vector<64x128xbf16>, vector<128x128xbf16>, vector<64x128xf32> -> vector<64x128xf32>
    %56 = arith.addf %50, %55 : vector<64x128xf32>
    %c2_60 = arith.constant 2 : index
    %c0_61 = arith.constant 0 : index
    %c0_62 = arith.constant 0 : index
    %57 = vector.load %arg7[%c2_60, %c0_61, %c0_62] : memref<10x10x128xbf16, #tpu.memory_space<vmem>>, vector<8x8x128xbf16>
    %58 = vector.shape_cast %57 : vector<8x8x128xbf16> to vector<64x128xbf16>
    %c6 = arith.constant 6 : index
    %c0_63 = arith.constant 0 : index
    %c0_64 = arith.constant 0 : index
    %59 = vector.load %arg2[%c6, %c0_63, %c0_64] : memref<9x128x128xbf16, #tpu.memory_space<vmem>>, vector<1x128x128xbf16>
    %60 = vector.shape_cast %59 : vector<1x128x128xbf16> to vector<128x128xbf16>
    %cst_65 = arith.constant dense<0.000000e+00> : vector<64x128xf32>
    %61 = tpu.matmul %58, %60, %cst_65 {dimension_numbers = #tpu.dot_dimension_numbers<[1], [0], [0], [1], [0, 0, 1, 1], [], []>} : vector<64x128xbf16>, vector<128x128xbf16>, vector<64x128xf32> -> vector<64x128xf32>
    %62 = arith.addf %56, %61 : vector<64x128xf32>
    %c2_66 = arith.constant 2 : index
    %c1_67 = arith.constant 1 : index
    %c0_68 = arith.constant 0 : index
    %63 = vector.load %arg7[%c2_66, %c1_67, %c0_68] : memref<10x10x128xbf16, #tpu.memory_space<vmem>>, vector<8x8x128xbf16>
    %64 = vector.shape_cast %63 : vector<8x8x128xbf16> to vector<64x128xbf16>
    %c7 = arith.constant 7 : index
    %c0_69 = arith.constant 0 : index
    %c0_70 = arith.constant 0 : index
    %65 = vector.load %arg2[%c7, %c0_69, %c0_70] : memref<9x128x128xbf16, #tpu.memory_space<vmem>>, vector<1x128x128xbf16>
    %66 = vector.shape_cast %65 : vector<1x128x128xbf16> to vector<128x128xbf16>
    %cst_71 = arith.constant dense<0.000000e+00> : vector<64x128xf32>
    %67 = tpu.matmul %64, %66, %cst_71 {dimension_numbers = #tpu.dot_dimension_numbers<[1], [0], [0], [1], [0, 0, 1, 1], [], []>} : vector<64x128xbf16>, vector<128x128xbf16>, vector<64x128xf32> -> vector<64x128xf32>
    %68 = arith.addf %62, %67 : vector<64x128xf32>
    %c2_72 = arith.constant 2 : index
    %c2_73 = arith.constant 2 : index
    %c0_74 = arith.constant 0 : index
    %69 = vector.load %arg7[%c2_72, %c2_73, %c0_74] : memref<10x10x128xbf16, #tpu.memory_space<vmem>>, vector<8x8x128xbf16>
    %70 = vector.shape_cast %69 : vector<8x8x128xbf16> to vector<64x128xbf16>
    %c8 = arith.constant 8 : index
    %c0_75 = arith.constant 0 : index
    %c0_76 = arith.constant 0 : index
    %71 = vector.load %arg2[%c8, %c0_75, %c0_76] : memref<9x128x128xbf16, #tpu.memory_space<vmem>>, vector<1x128x128xbf16>
    %72 = vector.shape_cast %71 : vector<1x128x128xbf16> to vector<128x128xbf16>
    %cst_77 = arith.constant dense<0.000000e+00> : vector<64x128xf32>
    %73 = tpu.matmul %70, %72, %cst_77 {dimension_numbers = #tpu.dot_dimension_numbers<[1], [0], [0], [1], [0, 0, 1, 1], [], []>} : vector<64x128xbf16>, vector<128x128xbf16>, vector<64x128xf32> -> vector<64x128xf32>
    %74 = arith.addf %68, %73 : vector<64x128xf32>
    %cst_78 = arith.constant dense<0.000000e+00> : vector<128xf32>
    %75 = vector.multi_reduction <add>, %74, %cst_78 [0] : vector<64x128xf32> to vector<128xf32>
    %76 = vector.shape_cast %75 : vector<128xf32> to vector<1x128xf32>
    %c0_79 = arith.constant 0 : index
    %c0_80 = arith.constant 0 : index
    %c0_81 = arith.constant 0 : index
    %77 = vector.load %arg6[%c0_79, %c0_80, %c0_81] : memref<1x2x128xf32, #tpu.memory_space<vmem>>, vector<1x1x128xf32>
    %78 = vector.shape_cast %77 : vector<1x1x128xf32> to vector<1x128xf32>
    %79 = vector.shape_cast %76 : vector<1x128xf32> to vector<1x1x128xf32>
    tpu.vector_store %arg6[%c0_79, %c0_80, %c0_81], %79 {strides = array<i32>} : memref<1x2x128xf32, #tpu.memory_space<vmem>>, vector<1x1x128xf32>,
    %80 = arith.mulf %74, %74 : vector<64x128xf32>
    %cst_82 = arith.constant dense<0.000000e+00> : vector<128xf32>
    %81 = vector.multi_reduction <add>, %80, %cst_82 [0] : vector<64x128xf32> to vector<128xf32>
    %82 = vector.shape_cast %81 : vector<128xf32> to vector<1x128xf32>
    %c0_83 = arith.constant 0 : index
    %c1_84 = arith.constant 1 : index
    %c0_85 = arith.constant 0 : index
    %83 = vector.load %arg6[%c0_83, %c1_84, %c0_85] : memref<1x2x128xf32, #tpu.memory_space<vmem>>, vector<1x1x128xf32>
    %84 = vector.shape_cast %83 : vector<1x1x128xf32> to vector<1x128xf32>
    %85 = vector.shape_cast %82 : vector<1x128xf32> to vector<1x1x128xf32>
    tpu.vector_store %arg6[%c0_83, %c1_84, %c0_85], %85 {strides = array<i32>} : memref<1x2x128xf32, #tpu.memory_space<vmem>>, vector<1x1x128xf32>,
    %86 = arith.truncf %74 : vector<64x128xf32> to vector<64x128xbf16>
    %c0_86 = arith.constant 0 : index
    %c0_87 = arith.constant 0 : index
    %c0_88 = arith.constant 0 : index
    %87 = vector.load %arg5[%c0_86, %c0_87, %c0_88] : memref<1x64x128xbf16, #tpu.memory_space<vmem>>, vector<1x64x128xbf16>
    %88 = vector.shape_cast %87 : vector<1x64x128xbf16> to vector<64x128xbf16>
    %89 = vector.shape_cast %86 : vector<64x128xbf16> to vector<1x64x128xbf16>
    tpu.vector_store %arg5[%c0_86, %c0_87, %c0_88], %89 {strides = array<i32>} : memref<1x64x128xbf16, #tpu.memory_space<vmem>>, vector<1x64x128xbf16>,
    return
  }
  func.func @transform_0(%arg0: i32) -> (i32, i32, i32) {
    %c0_i32 = arith.constant 0 : i32
    %c0_i32_0 = arith.constant 0 : i32
    %c0_i32_1 = arith.constant 0 : i32
    return %arg0, %c0_i32, %c0_i32_0 : i32, i32, i32
  }
  func.func @transform_1(%arg0: i32) -> (i32, i32, i32) {
    %c0_i32 = arith.constant 0 : i32
    %c0_i32_0 = arith.constant 0 : i32
    %c0_i32_1 = arith.constant 0 : i32
    %c0_i32_2 = arith.constant 0 : i32
    return %c0_i32, %c0_i32_0, %c0_i32_1 : i32, i32, i32
  }
  func.func @transform_2(%arg0: i32) -> (i32, i32) {
    %c0_i32 = arith.constant 0 : i32
    %c0_i32_0 = arith.constant 0 : i32
    %c0_i32_1 = arith.constant 0 : i32
    return %c0_i32, %c0_i32_0 : i32, i32
  }
  func.func @transform_3(%arg0: i32) -> (i32, i32) {
    %c0_i32 = arith.constant 0 : i32
    %c0_i32_0 = arith.constant 0 : i32
    %c0_i32_1 = arith.constant 0 : i32
    return %c0_i32, %c0_i32_0 : i32, i32
  }
  func.func @transform_4(%arg0: i32) -> (i32, i32, i32) {
    %c0_i32 = arith.constant 0 : i32
    %c0_i32_0 = arith.constant 0 : i32
    %c0_i32_1 = arith.constant 0 : i32
    return %arg0, %c0_i32, %c0_i32_0 : i32, i32, i32
  }
  func.func @transform_5(%arg0: i32) -> (i32, i32, i32) {
    %c0_i32 = arith.constant 0 : i32
    %c0_i32_0 = arith.constant 0 : i32
    %c0_i32_1 = arith.constant 0 : i32
    return %arg0, %c0_i32, %c0_i32_0 : i32, i32, i32
  }
}

module attributes {stable_mosaic.version = 11 : i64} {
  func.func @_bn_relu_kernel(%arg0: i32, %arg1: memref<128x128xbf16, #tpu.memory_space<vmem>>, %arg2: memref<1x128xf32, #tpu.memory_space<vmem>>, %arg3: memref<1x128xf32, #tpu.memory_space<vmem>>, %arg4: memref<128x128xf32, #tpu.memory_space<vmem>>) attributes {dimension_semantics = [#tpu.dimension_semantics<parallel>], iteration_bounds = array<i64: 1>, scalar_prefetch = 0 : i64, scratch_operands = 0 : i64, tpu.core_type = #tpu.core_type<tc>, window_params = [{transform_indices = @transform_0, window_bounds = array<i64: 128, 128>}, {pipeline_mode = #tpu.pipeline_mode<synchronous>, transform_indices = @transform_1, window_bounds = array<i64: 1, 128>}, {pipeline_mode = #tpu.pipeline_mode<synchronous>, transform_indices = @transform_2, window_bounds = array<i64: 1, 128>}, {transform_indices = @transform_3, window_bounds = array<i64: 128, 128>}]} {
    %c0 = arith.constant 0 : index
    %c0_0 = arith.constant 0 : index
    %0 = vector.load %arg1[%c0, %c0_0] : memref<128x128xbf16, #tpu.memory_space<vmem>>, vector<128x128xbf16>
    %1 = arith.extf %0 : vector<128x128xbf16> to vector<128x128xf32>
    %c0_1 = arith.constant 0 : index
    %c0_2 = arith.constant 0 : index
    %2 = vector.load %arg2[%c0_1, %c0_2] : memref<1x128xf32, #tpu.memory_space<vmem>>, vector<1x128xf32>
    %3 = vector.broadcast %2 : vector<1x128xf32> to vector<128x128xf32>
    %4 = arith.mulf %1, %3 : vector<128x128xf32>
    %c0_3 = arith.constant 0 : index
    %c0_4 = arith.constant 0 : index
    %5 = vector.load %arg3[%c0_3, %c0_4] : memref<1x128xf32, #tpu.memory_space<vmem>>, vector<1x128xf32>
    %6 = vector.broadcast %5 : vector<1x128xf32> to vector<128x128xf32>
    %7 = arith.addf %4, %6 : vector<128x128xf32>
    %cst = arith.constant 0.000000e+00 : f32
    %8 = vector.broadcast %cst : f32 to vector<128x128xf32>
    %9 = arith.maximumf %7, %8 : vector<128x128xf32>
    %c0_5 = arith.constant 0 : index
    %c0_6 = arith.constant 0 : index
    %10 = vector.load %arg4[%c0_5, %c0_6] : memref<128x128xf32, #tpu.memory_space<vmem>>, vector<128x128xf32>
    tpu.vector_store %arg4[%c0_5, %c0_6], %9 {strides = array<i32>} : memref<128x128xf32, #tpu.memory_space<vmem>>, vector<128x128xf32>,
    return
  }
  func.func @transform_0(%arg0: i32) -> (i32, i32) {
    %c0_i32 = arith.constant 0 : i32
    %c0_i32_0 = arith.constant 0 : i32
    return %arg0, %c0_i32 : i32, i32
  }
  func.func @transform_1(%arg0: i32) -> (i32, i32) {
    %c0_i32 = arith.constant 0 : i32
    %c0_i32_0 = arith.constant 0 : i32
    %c0_i32_1 = arith.constant 0 : i32
    return %c0_i32, %c0_i32_0 : i32, i32
  }
  func.func @transform_2(%arg0: i32) -> (i32, i32) {
    %c0_i32 = arith.constant 0 : i32
    %c0_i32_0 = arith.constant 0 : i32
    %c0_i32_1 = arith.constant 0 : i32
    return %c0_i32, %c0_i32_0 : i32, i32
  }
  func.func @transform_3(%arg0: i32) -> (i32, i32) {
    %c0_i32 = arith.constant 0 : i32
    %c0_i32_0 = arith.constant 0 : i32
    return %arg0, %c0_i32 : i32, i32
  }
}

</mosaic_0001>

<llo_original>
// kernel: down_forward.5
$region0: #{down_forward.5}
  #allocation0 [shape = 'u32[]', space=smem, size = 0x4, offset = 0x4, fixed_abs, tag = 'smem constant byte address 0x4 - core index']
  #allocation1 [shape = 'u32[72,128]{1,0:T(1,128)}', space=vmem, size = 0x9000, scoped, tag = 'internal scratch']
  %s0 = inlined_call_operand.vmem [shape: bf16[128,128], index: 0, kind: input, shape index: {}]
  %s1 = inlined_call_operand.vmem [shape: f32[1,128], index: 1, kind: input, shape index: {}]
  %s2 = inlined_call_operand.vmem [shape: f32[1,128], index: 2, kind: input, shape index: {}]
  %s3 = inlined_call_operand.vmem [shape: f32[128,128], index: 3, kind: output, shape index: {}]
  %s4 = sld [smem:[#allocation0]]
  $region22: #{down_forward.5} parent=0
    _
  %s6 = ssub.s32 1, %s4
  %s7 = scalar_select 0, %s6, %s4
  // Predicated region
  $region2: #{down_forward.5} parent=0 // pred_check
    _
  $region3: #{down_forward.5} parent=0 // pred_check_branch
    %9 = sbr.rel (0) target = $region5
  $region4: #{down_forward.5} parent=0 // pred_region
    _
  $region5: #{down_forward.5} parent=0 // pred_fallthru
    _
  // Predicated region
  $region6: #{down_forward.5} parent=0 // pred_check
    _
  $region7: #{down_forward.5} parent=0 // pred_check_branch
    %11 = sbr.rel (0) target = $region9
  $region8: #{down_forward.5} parent=0 // pred_region
    _
  $region9: #{down_forward.5} parent=0 // pred_fallthru
    _
  // Predicated region
  $region10: #{down_forward.5} parent=0 // pred_check
    _
  $region11: #{down_forward.5} parent=0 // pred_check_branch
    %13 = sbr.rel (0) target = $region13
  $region12: #{down_forward.5} parent=0 // pred_region
    _
  $region13: #{down_forward.5} parent=0 // pred_fallthru
    _
  %v14 = vld [vmem:[%s0] sm:$0xf]
  %v15 = vld [vmem:[%s0 + $0x4] sm:$0xf]
  %v16 = vld [vmem:[%s0 + $0x8] sm:$0xf]
  %v17 = vld [vmem:[%s0 + $0xc] sm:$0xf]
  %v18 = vld [vmem:[%s0 + $0x10] sm:$0xf]
  %v19 = vld [vmem:[%s0 + $0x14] sm:$0xf]
  %v20 = vld [vmem:[%s0 + $0x18] sm:$0xf]
  %v21 = vld [vmem:[%s0 + $0x1c] sm:$0xf]
  %v22 = vld [vmem:[%s0 + $0x20] sm:$0xf]
  %v23 = vld [vmem:[%s0 + $0x24] sm:$0xf]
  %v24 = vld [vmem:[%s0 + $0x28] sm:$0xf]
  %v25 = vld [vmem:[%s0 + $0x2c] sm:$0xf]
  %v26 = vld [vmem:[%s0 + $0x30] sm:$0xf]
  %v27 = vld [vmem:[%s0 + $0x34] sm:$0xf]
  %v28 = vld [vmem:[%s0 + $0x38] sm:$0xf]
  %v29 = vld [vmem:[%s0 + $0x3c] sm:$0xf]
  %v30 = vunpack.c.l.bf16 %v14
  %v31 = vunpack.c.l.bf16 %v15
  %v32 = vunpack.c.l.bf16 %v16
  %v33 = vunpack.c.l.bf16 %v17
  %v34 = vunpack.c.l.bf16 %v18
  %v35 = vunpack.c.l.bf16 %v19
  %v36 = vunpack.c.l.bf16 %v20
  %v37 = vunpack.c.l.bf16 %v21
  %v38 = vunpack.c.l.bf16 %v22
  %v39 = vunpack.c.l.bf16 %v23
  %v40 = vunpack.c.l.bf16 %v24
  %v41 = vunpack.c.l.bf16 %v25
  %v42 = vunpack.c.l.bf16 %v26
  %v43 = vunpack.c.l.bf16 %v27
  %v44 = vunpack.c.l.bf16 %v28
  %v45 = vunpack.c.l.bf16 %v29
  %v46 = vld [vmem:[%s1] sm:$0x1]
  %v48 = vperm.slane %v46, 0
  %v50 = vmul.f32 %v30, %v48
  %v51 = vmul.f32 %v31, %v48
  %v52 = vmul.f32 %v32, %v48
  %v53 = vmul.f32 %v33, %v48
  %v54 = vmul.f32 %v34, %v48
  %v55 = vmul.f32 %v35, %v48
  %v56 = vmul.f32 %v36, %v48
  %v57 = vmul.f32 %v37, %v48
  %v58 = vmul.f32 %v38, %v48
  %v59 = vmul.f32 %v39, %v48
  %v60 = vmul.f32 %v40, %v48
  %v61 = vmul.f32 %v41, %v48
  %v62 = vmul.f32 %v42, %v48
  %v63 = vmul.f32 %v43, %v48
  %v64 = vmul.f32 %v44, %v48
  %v65 = vmul.f32 %v45, %v48
  %v66 = vld [vmem:[%s2] sm:$0x1]
  %v68 = vperm.slane %v66, 0
  %v70 = vadd.f32 %v50, %v68
  %v71 = vadd.f32 %v51, %v68
  %v72 = vadd.f32 %v52, %v68
  %v73 = vadd.f32 %v53, %v68
  %v74 = vadd.f32 %v54, %v68
  %v75 = vadd.f32 %v55, %v68
  %v76 = vadd.f32 %v56, %v68
  %v77 = vadd.f32 %v57, %v68
  %v78 = vadd.f32 %v58, %v68
  %v79 = vadd.f32 %v59, %v68
  %v80 = vadd.f32 %v60, %v68
  %v81 = vadd.f32 %v61, %v68
  %v82 = vadd.f32 %v62, %v68
  %v83 = vadd.f32 %v63, %v68
  %v84 = vadd.f32 %v64, %v68
  %v85 = vadd.f32 %v65, %v68
  %v86 = vmax.f32 %v70, 0.0
  %v87 = vmax.f32 %v71, 0.0
  %v88 = vmax.f32 %v72, 0.0
  %v89 = vmax.f32 %v73, 0.0
  %v90 = vmax.f32 %v74, 0.0
  %v91 = vmax.f32 %v75, 0.0
  %v92 = vmax.f32 %v76, 0.0
  %v93 = vmax.f32 %v77, 0.0
  %v94 = vmax.f32 %v78, 0.0
  %v95 = vmax.f32 %v79, 0.0
  %v96 = vmax.f32 %v80, 0.0
  %v97 = vmax.f32 %v81, 0.0
  %v98 = vmax.f32 %v82, 0.0
  %v99 = vmax.f32 %v83, 0.0
  %v100 = vmax.f32 %v84, 0.0
  %v101 = vmax.f32 %v85, 0.0
  %102 = vst [vmem:[%s3] sm:$0xff] %v86
  %103 = vst [vmem:[%s3 + $0x8] sm:$0xff] %v87
  %104 = vst [vmem:[%s3 + $0x10] sm:$0xff] %v88
  %105 = vst [vmem:[%s3 + $0x18] sm:$0xff] %v89
  %106 = vst [vmem:[%s3 + $0x20] sm:$0xff] %v90
  %107 = vst [vmem:[%s3 + $0x28] sm:$0xff] %v91
  %108 = vst [vmem:[%s3 + $0x30] sm:$0xff] %v92
  %109 = vst [vmem:[%s3 + $0x38] sm:$0xff] %v93
  %110 = vst [vmem:[%s3 + $0x40] sm:$0xff] %v94
  %111 = vst [vmem:[%s3 + $0x48] sm:$0xff] %v95
  %112 = vst [vmem:[%s3 + $0x50] sm:$0xff] %v96
  %113 = vst [vmem:[%s3 + $0x58] sm:$0xff] %v97
  %114 = vst [vmem:[%s3 + $0x60] sm:$0xff] %v98
  %115 = vst [vmem:[%s3 + $0x68] sm:$0xff] %v99
  %116 = vst [vmem:[%s3 + $0x70] sm:$0xff] %v100
  %117 = vst [vmem:[%s3 + $0x78] sm:$0xff] %v101
  // Predicated region
  $region14: #{down_forward.5} parent=0 // pred_check
    _
  $region15: #{down_forward.5} parent=0 // pred_check_branch
    %119 = sbr.rel (0) target = $region17
  $region16: #{down_forward.5} parent=0 // pred_region
    _
  $region17: #{down_forward.5} parent=0 // pred_fallthru
    _
  // Predicated region
  $region18: #{down_forward.5} parent=0 // pred_check
    _
  $region19: #{down_forward.5} parent=0 // pred_check_branch
    %121 = sbr.rel (0) target = $region21
  $region20: #{down_forward.5} parent=0 // pred_region
    _
  $region21: #{down_forward.5} parent=0 // pred_fallthru
    _

// kernel: down_forward.3
$region0: #{down_forward.3}
  #allocation0 [shape = 'u32[]', space=smem, size = 0x4, offset = 0x4, fixed_abs, tag = 'smem constant byte address 0x4 - core index']
  #allocation1 [shape = 'u32[72,128]{1,0:T(1,128)}', space=vmem, size = 0x9000, scoped, tag = 'internal scratch']
  #allocation2 [shape = 'bf16[10,10,4]{2,1,0:T(8,128)(2,1)}', space=vmem, size = 0xa000, scoped, tag = 'scratch operand']
  %s0 = inlined_call_operand.vmem [shape: bf16[2,8,2,8,8], index: 0, kind: input, shape index: {}]
  %s1 = inlined_call_operand.vmem [shape: bf16[9,4,128], index: 1, kind: input, shape index: {}]
  %s2 = inlined_call_operand.vmem [shape: bf16[2,64,128], index: 2, kind: output, shape index: {0}]
  %s3 = inlined_call_operand.vmem [shape: f32[2,2,128], index: 3, kind: output, shape index: {1}]
  %4 = xla_tuple %s2, %s3
  %s5 = sld [smem:[#allocation0]]
  $region49: #{down_forward.3} parent=0
    _
  %s7 = ssub.s32 1, %s5
  %s8 = scalar_select 0, %s7, %s5
  loop: start=0, step=1, limit=4
  $region2: #{down_forward.3} parent=0 // loop_pre_header
    _
  $region3: #{down_forward.3} parent=0 // loop_header
    %s10 = sphi 0, %s14
    %p11 = scmp.ge.s32.totalorder %s10, 4
    %s20 = sphi 0, %s22
    %s23 = sphi 0, %s20
    %s24 = sphi 0, %s23
    %s40 = sphi 0, %s24
    %s44 = sphi 0, %s44
    %s46 = sphi 0, %s44
    %s47 = sphi 0, %s46
    %s61 = sphi 0, %s47
    %s67 = sphi 0, %s69
    %s70 = sphi 0, %s67
    %s71 = sphi 0, %s70
    %s87 = sphi 0, %s71
    %s93 = sphi 0, %s95
    %s96 = sphi 0, %s93
    %s97 = sphi 0, %s96
    %s113 = sphi 0, %s97
  $region4: #{down_forward.3} parent=0 // loop_header_branch
    %13 = sbr.rel (%p11) target = $region8
  $region5: #{down_forward.3} parent=0 // loop_body
    %s15 = ssub.s32 %s10, 1
    %s16 = ssub.s32 %s10, 2
    %s17 = sadd.s32 %s10, 1
    %s18 = ssub.s32 %s10, %s17
    %p19 = scmp.eq.s32.totalorder %s18, 0
    %s21 = sadd.s32 %s20, 1
    %s22 = scalar_select %p19, %s20, %s21
    %p25 = pneg %p19
    %p26 = scmp.eq.s32.totalorder %s10, 1
    %p27 = por %p25, %p26
    %p28 = scmp.ne.s32.totalorder %s20, %s23
    %p29 = scmp.eq.s32.totalorder %s10, 0
    %p30 = por %p28, %p29
    %p31 = scmp.ne.s32.totalorder %s20, %s23
    %p32 = scmp.eq.s32.totalorder %s15, 1
    %p33 = por %p31, %p32
    %p34 = scmp.ne.s32.totalorder %s23, %s24
    %p35 = scmp.eq.s32.totalorder %s15, 0
    %p36 = por %p34, %p35
    %p37 = scmp.ne.s32.totalorder %s23, %s24
    %p38 = scmp.eq.s32.totalorder %s16, 1
    %p39 = por %p37, %p38
    %p41 = scmp.ne.s32.totalorder %s24, %s40
    %p42 = scmp.eq.s32.totalorder %s16, 0
    %p43 = por %p41, %p42
    %s45 = sadd.s32 %s44, 1
    %p48 = scmp.eq.s32.totalorder %s10, 1
    %p49 = scmp.ne.s32.totalorder %s44, %s46
    %p50 = scmp.eq.s32.totalorder %s10, 0
    %p51 = por %p49, %p50
    %p52 = scmp.ne.s32.totalorder %s44, %s46
    %p53 = scmp.eq.s32.totalorder %s15, 1
    %p54 = por %p52, %p53
    %p55 = scmp.ne.s32.totalorder %s46, %s47
    %p56 = scmp.eq.s32.totalorder %s15, 0
    %p57 = por %p55, %p56
    %p58 = scmp.ne.s32.totalorder %s46, %s47
    %p59 = scmp.eq.s32.totalorder %s16, 1
    %p60 = por %p58, %p59
    %p62 = scmp.ne.s32.totalorder %s47, %s61
    %p63 = scmp.eq.s32.totalorder %s16, 0
    %p64 = por %p62, %p63
    %s65 = ssub.s32 %s10, %s17
    %p66 = scmp.eq.s32.totalorder %s65, 0
    %s68 = sadd.s32 %s67, 1
    %s69 = scalar_select %p66, %s67, %s68
    %p72 = pneg %p66
    %p73 = scmp.eq.s32.totalorder %s10, 1
    %p74 = por %p72, %p73
    %p75 = scmp.ne.s32.totalorder %s67, %s70
    %p76 = scmp.eq.s32.totalorder %s10, 0
    %p77 = por %p75, %p76
    %p78 = scmp.ne.s32.totalorder %s67, %s70
    %p79 = scmp.eq.s32.totalorder %s15, 1
    %p80 = por %p78, %p79
    %p81 = scmp.ne.s32.totalorder %s70, %s71
    %p82 = scmp.eq.s32.totalorder %s15, 0
    %p83 = por %p81, %p82
    %p84 = scmp.ne.s32.totalorder %s70, %s71
    %p85 = scmp.eq.s32.totalorder %s16, 1
    %p86 = por %p84, %p85
    %p88 = scmp.ne.s32.totalorder %s71, %s87
    %p89 = scmp.eq.s32.totalorder %s16, 0
    %p90 = por %p88, %p89
    %s91 = ssub.s32 %s10, %s17
    %p92 = scmp.eq.s32.totalorder %s91, 0
    %s94 = sadd.s32 %s93, 1
    %s95 = scalar_select %p92, %s93, %s94
    %p98 = pneg %p92
    %p99 = scmp.eq.s32.totalorder %s10, 1
    %p100 = por %p98, %p99
    %p101 = scmp.ne.s32.totalorder %s93, %s96
    %p102 = scmp.eq.s32.totalorder %s10, 0
    %p103 = por %p101, %p102
    %p104 = scmp.ne.s32.totalorder %s93, %s96
    %p105 = scmp.eq.s32.totalorder %s15, 1
    %p106 = por %p104, %p105
    %p107 = scmp.ne.s32.totalorder %s96, %s97
    %p108 = scmp.eq.s32.totalorder %s15, 0
    %p109 = por %p107, %p108
    %p110 = scmp.ne.s32.totalorder %s96, %s97
    %p111 = scmp.eq.s32.totalorder %s16, 1
    %p112 = por %p110, %p111
    %p114 = scmp.ne.s32.totalorder %s97, %s113
    %p115 = scmp.eq.s32.totalorder %s16, 0
    %p116 = por %p114, %p115
    %p117 = scmp.le.s32.totalorder 1, %s10
    %p118 = scmp.lt.s32.totalorder %s10, 3
    %p119 = pnand %p117, %p118
    %p120 = pneg %p119
    // Predicated region
    $region9: #{down_forward.3} parent=5 // pred_check
      _
    $region10: #{down_forward.3} parent=5 // pred_check_branch
      %122 = sbr.rel (%p119) target = $region12
    $region11: #{down_forward.3} parent=5 // pred_region
      %s123 = ssub.s32 %s10, 1
      // Predicated region
      $region13: #{down_forward.3} parent=11 // pred_check
        %p124 = pneg %p57
      $region14: #{down_forward.3} parent=11 // pred_check_branch
        %126 = sbr.rel (%p124) target = $region16
      $region15: #{down_forward.3} parent=11 // pred_region
        _
      $region16: #{down_forward.3} parent=11 // pred_fallthru
        _
    $region12: #{down_forward.3} parent=5 // pred_fallthru
      _
    %p127 = scmp.lt.s32.totalorder %s10, 2
    // Predicated region
    $region17: #{down_forward.3} parent=5 // pred_check
      %p128 = pneg %p127
    $region18: #{down_forward.3} parent=5 // pred_check_branch
      %130 = sbr.rel (%p128) target = $region20
    $region19: #{down_forward.3} parent=5 // pred_region
      // Predicated region
      $region21: #{down_forward.3} parent=19 // pred_check
        %p131 = pneg %p30
      $region22: #{down_forward.3} parent=19 // pred_check_branch
        %133 = sbr.rel (%p131) target = $region24
      $region23: #{down_forward.3} parent=19 // pred_region
        %p134 = scmp.lt.s32.totalorder %s10, 1
        %s135 = scalar_select %p134, %s10, 1
        %s136 = smul.addr %s135, 16
        %s137 = smul.addr %s136, 4
        %s138 = scalar_lea.vmem %s0, %s137
      $region24: #{down_forward.3} parent=19 // pred_fallthru
        _
    $region20: #{down_forward.3} parent=5 // pred_fallthru
      _
    %p139 = scmp.le.s32.totalorder 1, %s10
    %p140 = scmp.lt.s32.totalorder %s10, 3
    %p141 = pnand %p139, %p140
    %p142 = pneg %p141
    // Predicated region
    $region25: #{down_forward.3} parent=5 // pred_check
      _
    $region26: #{down_forward.3} parent=5 // pred_check_branch
      %144 = sbr.rel (%p141) target = $region28
    $region27: #{down_forward.3} parent=5 // pred_region
      %s145 = ssub.s32 %s10, 1
      %p146 = scmp.lt.s32.totalorder %s15, 1
      %s147 = scalar_select %p146, %s15, 1
      %s148 = smul.addr %s147, 16
      %s149 = smul.addr %s148, 4
      %s150 = scalar_lea.vmem %s0, %s149
      %p151 = pneg %p36
      %p152 = pneg %p33
      %p153 = pneg %p57
      %p154 = pneg %p54
      %p155 = pneg %p83
      %p156 = pneg %p80
      %p157 = scmp.lt.s32.totalorder %s15, 1
      %s158 = scalar_select %p157, %s15, 1
      %s159 = smul.addr %s158, 8
      %s160 = smul.addr %s159, 4
      %s161 = scalar_lea.vmem %s2, %s160
      %p162 = pneg %p109
      %p163 = pneg %p106
      %p164 = scmp.lt.s32.totalorder %s15, 1
      %s165 = scalar_select %p164, %s15, 1
      %s166 = smul.addr %s165, 2
      %s167 = scalar_lea.vmem %s3, %s166
      %p168 = scmp.lt.s32.totalorder %s15, 1
      %s169 = scalar_select %p168, %s15, 1
      %s170 = smul.addr %s169, 16
      %s171 = smul.addr %s170, 4
      %s172 = scalar_lea.vmem %s0, %s171
      %p173 = scmp.lt.s32.totalorder %s15, 1
      %s174 = scalar_select %p173, %s15, 1
      %s175 = smul.addr %s174, 8
      %s176 = smul.addr %s175, 4
      %s177 = scalar_lea.vmem %s2, %s176
      %p178 = scmp.lt.s32.totalorder %s15, 1
      %s179 = scalar_select %p178, %s15, 1
      %s180 = smul.addr %s179, 2
      %s181 = scalar_lea.vmem %s3, %s180
      %v183 = vld [vmem:[%s172] sm:$0xf]
      %v184 = vld [vmem:[%s172 + $0x4] sm:$0xf]
      %v185 = vld [vmem:[%s172 + $0x8] sm:$0xf]
      %v186 = vld [vmem:[%s172 + $0xc] sm:$0xf]
      %v187 = vld [vmem:[%s172 + $0x10] sm:$0xf]
      %v188 = vld [vmem:[%s172 + $0x14] sm:$0xf]
      %v189 = vld [vmem:[%s172 + $0x18] sm:$0xf]
      %v190 = vld [vmem:[%s172 + $0x1c] sm:$0xf]
      %v191 = vld [vmem:[%s172 + $0x20] sm:$0xf]
      %v192 = vld [vmem:[%s172 + $0x24] sm:$0xf]
      %v193 = vld [vmem:[%s172 + $0x28] sm:$0xf]
      %v194 = vld [vmem:[%s172 + $0x2c] sm:$0xf]
      %v195 = vld [vmem:[%s172 + $0x30] sm:$0xf]
      %v196 = vld [vmem:[%s172 + $0x34] sm:$0xf]
      %v197 = vld [vmem:[%s172 + $0x38] sm:$0xf]
      %v198 = vld [vmem:[%s172 + $0x3c] sm:$0xf]
      %v199 = vunpack.c.l.bf16 %v183
      %v200 = vunpack.c.l.bf16 %v185
      %v201 = vunpack.c.l.bf16 %v187
      %v202 = vunpack.c.l.bf16 %v189
      %v203 = vunpack.c.l.bf16 %v191
      %v204 = vunpack.c.l.bf16 %v193
      %v205 = vunpack.c.l.bf16 %v195
      %v206 = vunpack.c.l.bf16 %v197
      %v207 = vunpack.c.l.bf16 %v184
      %v208 = vunpack.c.l.bf16 %v186
      %v209 = vunpack.c.l.bf16 %v188
      %v210 = vunpack.c.l.bf16 %v190
      %v211 = vunpack.c.l.bf16 %v192
      %v212 = vunpack.c.l.bf16 %v194
      %v213 = vunpack.c.l.bf16 %v196
      %v214 = vunpack.c.l.bf16 %v198
      %v215 = vmax.f32 %v199, %v207
      %v216 = vmax.f32 %v200, %v208
      %v217 = vmax.f32 %v201, %v209
      %v218 = vmax.f32 %v202, %v210
      %v219 = vmax.f32 %v203, %v211
      %v220 = vmax.f32 %v204, %v212
      %v221 = vmax.f32 %v205, %v213
      %v222 = vmax.f32 %v206, %v214
      %v223 = vpack.c.bf16 %v215, %v215
      %v224 = vpack.c.bf16 %v216, %v216
      %v225 = vpack.c.bf16 %v217, %v217
      %v226 = vpack.c.bf16 %v218, %v218
      %v227 = vpack.c.bf16 %v219, %v219
      %v228 = vpack.c.bf16 %v220, %v220
      %v229 = vpack.c.bf16 %v221, %v221
      %v230 = vpack.c.bf16 %v222, %v222
      %v231 = vunpack.c.l.bf16 %v223
      %v232 = vunpack.c.l.bf16 %v224
      %v233 = vunpack.c.l.bf16 %v225
      %v234 = vunpack.c.l.bf16 %v226
      %v235 = vunpack.c.l.bf16 %v227
      %v236 = vunpack.c.l.bf16 %v228
      %v237 = vunpack.c.l.bf16 %v229
      %v238 = vunpack.c.l.bf16 %v230
      %247 = vrot.lane.b32.xlu0 %v231, 124
      %v248 = vpop.permute.xlu0 %247
      %249 = vrot.lane.b32.xlu0 %v232, 124
      %v250 = vpop.permute.xlu0 %249
      %251 = vrot.lane.b32.xlu0 %v233, 124
      %v252 = vpop.permute.xlu0 %251
      %253 = vrot.lane.b32.xlu0 %v234, 124
      %v254 = vpop.permute.xlu0 %253
      %255 = vrot.lane.b32.xlu0 %v235, 124
      %v256 = vpop.permute.xlu0 %255
      %257 = vrot.lane.b32.xlu0 %v236, 124
      %v258 = vpop.permute.xlu0 %257
      %259 = vrot.lane.b32.xlu0 %v237, 124
      %v260 = vpop.permute.xlu0 %259
      %261 = vrot.lane.b32.xlu0 %v238, 124
      %v262 = vpop.permute.xlu0 %261
      %v271 = vmax.f32 %v231, %v248
      %v272 = vmax.f32 %v232, %v250
      %v273 = vmax.f32 %v233, %v252
      %v274 = vmax.f32 %v234, %v254
      %v275 = vmax.f32 %v235, %v256
      %v276 = vmax.f32 %v236, %v258
      %v277 = vmax.f32 %v237, %v260
      %v278 = vmax.f32 %v238, %v262
      %v279 = vpack.c.bf16 %v271, %v271
      %v280 = vpack.c.bf16 %v272, %v272
      %v281 = vpack.c.bf16 %v273, %v273
      %v282 = vpack.c.bf16 %v274, %v274
      %v283 = vpack.c.bf16 %v275, %v275
      %v284 = vpack.c.bf16 %v276, %v276
      %v285 = vpack.c.bf16 %v277, %v277
      %v286 = vpack.c.bf16 %v278, %v278
      %vm287 = vcmask 27648
      %288 = vst.msk [vmem:[#allocation2] sm:$0xf] %vm287, 0
      %vm289 = vcmask 24576
      %290 = vst.msk [vmem:[#allocation2 + $0x4] sm:$0x1] %vm289, 0
      %s291 = scalar_lea.vmem [#allocation2], 72
      %292 = vst.msk [vmem:[%s291] sm:$0xf] %vm287, 0
      %293 = vst.msk [vmem:[%s291 + $0x4] sm:$0x1] %vm289, 0
      %s294 = scalar_lea.vmem [#allocation2], 8
      %vm295 = vcmask 24576
      %vm296 = vsmask.f32 256
      %vm297 = vmand %vm295, %vm296
      %v298 = vld [vmem:[%s294] sm:$0x1]
      %v299 = vsel %vm297, 0, %v298
      %300 = vst [vmem:[%s294] sm:$0x1] %v299
      %v301 = vld [vmem:[%s294 + $0x8] sm:$0x1]
      %v302 = vsel %vm297, 0, %v301
      %303 = vst [vmem:[%s294 + $0x8] sm:$0x1] %v302
      %v304 = vld [vmem:[%s294 + $0x10] sm:$0x1]
      %v305 = vsel %vm297, 0, %v304
      %306 = vst [vmem:[%s294 + $0x10] sm:$0x1] %v305
      %v307 = vld [vmem:[%s294 + $0x18] sm:$0x1]
      %v308 = vsel %vm297, 0, %v307
      %309 = vst [vmem:[%s294 + $0x18] sm:$0x1] %v308
      %v310 = vld [vmem:[%s294 + $0x20] sm:$0x1]
      %v311 = vsel %vm297, 0, %v310
      %312 = vst [vmem:[%s294 + $0x20] sm:$0x1] %v311
      %v313 = vld [vmem:[%s294 + $0x28] sm:$0x1]
      %v314 = vsel %vm297, 0, %v313
      %315 = vst [vmem:[%s294 + $0x28] sm:$0x1] %v314
      %v316 = vld [vmem:[%s294 + $0x30] sm:$0x1]
      %v317 = vsel %vm297, 0, %v316
      %318 = vst [vmem:[%s294 + $0x30] sm:$0x1] %v317
      %v319 = vld [vmem:[%s294 + $0x38] sm:$0x1]
      %v320 = vsel %vm297, 0, %v319
      %321 = vst [vmem:[%s294 + $0x38] sm:$0x1] %v320
      %vm322 = vsmask.f32 7938
      %vm323 = vmand %vm295, %vm322
      %v324 = vld [vmem:[%s294 + $0x4] sm:$0x1]
      %v325 = vsel %vm323, 0, %v324
      %326 = vst [vmem:[%s294 + $0x4] sm:$0x1] %v325
      %v327 = vld [vmem:[%s294 + $0xc] sm:$0x1]
      %v328 = vsel %vm323, 0, %v327
      %329 = vst [vmem:[%s294 + $0xc] sm:$0x1] %v328
      %v330 = vld [vmem:[%s294 + $0x14] sm:$0x1]
      %v331 = vsel %vm323, 0, %v330
      %332 = vst [vmem:[%s294 + $0x14] sm:$0x1] %v331
      %v333 = vld [vmem:[%s294 + $0x1c] sm:$0x1]
      %v334 = vsel %vm323, 0, %v333
      %335 = vst [vmem:[%s294 + $0x1c] sm:$0x1] %v334
      %v336 = vld [vmem:[%s294 + $0x24] sm:$0x1]
      %v337 = vsel %vm323, 0, %v336
      %338 = vst [vmem:[%s294 + $0x24] sm:$0x1] %v337
      %v339 = vld [vmem:[%s294 + $0x2c] sm:$0x1]
      %v340 = vsel %vm323, 0, %v339
      %341 = vst [vmem:[%s294 + $0x2c] sm:$0x1] %v340
      %v342 = vld [vmem:[%s294 + $0x34] sm:$0x1]
      %v343 = vsel %vm323, 0, %v342
      %344 = vst [vmem:[%s294 + $0x34] sm:$0x1] %v343
      %v345 = vld [vmem:[%s294 + $0x3c] sm:$0x1]
      %v346 = vsel %vm323, 0, %v345
      %347 = vst [vmem:[%s294 + $0x3c] sm:$0x1] %v346
      %v349 = vshrl.u32 %v279, 16
      %v351 = vrot.slane %v349, 7
      %v352 = vshll.u32 %v279, 16
      %v354 = vor.u32 %v351, %v352
      %v355 = vrot.slane %v351, 4
      %v357 = vshrl.u32 %v280, 16
      %v359 = vrot.slane %v357, 7
      %v360 = vshll.u32 %v280, 16
      %v362 = vor.u32 %v359, %v360
      %v363 = vrot.slane %v359, 4
      %v365 = vshrl.u32 %v281, 16
      %v367 = vrot.slane %v365, 7
      %v368 = vshll.u32 %v281, 16
      %v370 = vor.u32 %v367, %v368
      %v371 = vrot.slane %v367, 4
      %v373 = vshrl.u32 %v282, 16
      %v375 = vrot.slane %v373, 7
      %v376 = vshll.u32 %v282, 16
      %v378 = vor.u32 %v375, %v376
      %v379 = vrot.slane %v375, 4
      %v381 = vshrl.u32 %v283, 16
      %v383 = vrot.slane %v381, 7
      %v384 = vshll.u32 %v283, 16
      %v386 = vor.u32 %v383, %v384
      %v387 = vrot.slane %v383, 4
      %v389 = vshrl.u32 %v284, 16
      %v391 = vrot.slane %v389, 7
      %v392 = vshll.u32 %v284, 16
      %v394 = vor.u32 %v391, %v392
      %v395 = vrot.slane %v391, 4
      %v397 = vshrl.u32 %v285, 16
      %v399 = vrot.slane %v397, 7
      %v400 = vshll.u32 %v285, 16
      %v402 = vor.u32 %v399, %v400
      %v403 = vrot.slane %v399, 4
      %v405 = vshrl.u32 %v286, 16
      %v407 = vrot.slane %v405, 7
      %v408 = vshll.u32 %v286, 16
      %v410 = vor.u32 %v407, %v408
      %v411 = vrot.slane %v407, 4
      %vm428 = vcmask 27648
      %vm429 = vmand %vm428, %vm322
      %v430 = vld [vmem:[%s294] sm:$0xf]
      %v431 = vsel %vm429, %v354, %v430
      %432 = vst [vmem:[%s294] sm:$0xf] %v431
      %v433 = vld [vmem:[%s294 + $0x4] sm:$0x1]
      %v434 = vsel %vm297, %v355, %v433
      %435 = vst [vmem:[%s294 + $0x4] sm:$0x1] %v434
      %v436 = vld [vmem:[%s294 + $0x8] sm:$0xf]
      %v437 = vsel %vm429, %v362, %v436
      %438 = vst [vmem:[%s294 + $0x8] sm:$0xf] %v437
      %v439 = vld [vmem:[%s294 + $0xc] sm:$0x1]
      %v440 = vsel %vm297, %v363, %v439
      %441 = vst [vmem:[%s294 + $0xc] sm:$0x1] %v440
      %v442 = vld [vmem:[%s294 + $0x10] sm:$0xf]
      %v443 = vsel %vm429, %v370, %v442
      %444 = vst [vmem:[%s294 + $0x10] sm:$0xf] %v443
      %v445 = vld [vmem:[%s294 + $0x14] sm:$0x1]
      %v446 = vsel %vm297, %v371, %v445
      %447 = vst [vmem:[%s294 + $0x14] sm:$0x1] %v446
      %v448 = vld [vmem:[%s294 + $0x18] sm:$0xf]
      %v449 = vsel %vm429, %v378, %v448
      %450 = vst [vmem:[%s294 + $0x18] sm:$0xf] %v449
      %v451 = vld [vmem:[%s294 + $0x1c] sm:$0x1]
      %v452 = vsel %vm297, %v379, %v451
      %453 = vst [vmem:[%s294 + $0x1c] sm:$0x1] %v452
      %v454 = vld [vmem:[%s294 + $0x20] sm:$0xf]
      %v455 = vsel %vm429, %v386, %v454
      %456 = vst [vmem:[%s294 + $0x20] sm:$0xf] %v455
      %v457 = vld [vmem:[%s294 + $0x24] sm:$0x1]
      %v458 = vsel %vm297, %v387, %v457
      %459 = vst [vmem:[%s294 + $0x24] sm:$0x1] %v458
      %v460 = vld [vmem:[%s294 + $0x28] sm:$0xf]
      %v461 = vsel %vm429, %v394, %v460
      %462 = vst [vmem:[%s294 + $0x28] sm:$0xf] %v461
      %v463 = vld [vmem:[%s294 + $0x2c] sm:$0x1]
      %v464 = vsel %vm297, %v395, %v463
      %465 = vst [vmem:[%s294 + $0x2c] sm:$0x1] %v464
      %v466 = vld [vmem:[%s294 + $0x30] sm:$0xf]
      %v467 = vsel %vm429, %v402, %v466
      %468 = vst [vmem:[%s294 + $0x30] sm:$0xf] %v467
      %v469 = vld [vmem:[%s294 + $0x34] sm:$0x1]
      %v470 = vsel %vm297, %v403, %v469
      %471 = vst [vmem:[%s294 + $0x34] sm:$0x1] %v470
      %v472 = vld [vmem:[%s294 + $0x38] sm:$0xf]
      %v473 = vsel %vm429, %v410, %v472
      %474 = vst [vmem:[%s294 + $0x38] sm:$0xf] %v473
      %v475 = vld [vmem:[%s294 + $0x3c] sm:$0x1]
      %v476 = vsel %vm297, %v411, %v475
      %477 = vst [vmem:[%s294 + $0x3c] sm:$0x1] %v476
      %v478 = vld [vmem:[#allocation2] sm:$0xf]
      %v479 = vld [vmem:[#allocation2 + $0x8] sm:$0xf]
      %v480 = vld [vmem:[#allocation2 + $0x10] sm:$0xf]
      %v481 = vld [vmem:[#allocation2 + $0x18] sm:$0xf]
      %v482 = vld [vmem:[#allocation2 + $0x20] sm:$0xf]
      %v483 = vld [vmem:[#allocation2 + $0x28] sm:$0xf]
      %v484 = vld [vmem:[#allocation2 + $0x30] sm:$0xf]
      %v485 = vld [vmem:[#allocation2 + $0x38] sm:$0xf]
      %v486 = vld [vmem:[%s1] sm:$0x3]
      %v487 = vld [vmem:[#allocation2 + $0x4] sm:$0x1]
      %v488 = vld [vmem:[#allocation2 + $0xc] sm:$0x1]
      %v489 = vld [vmem:[#allocation2 + $0x14] sm:$0x1]
      %v490 = vld [vmem:[#allocation2 + $0x1c] sm:$0x1]
      %v491 = vld [vmem:[#allocation2 + $0x24] sm:$0x1]
      %v492 = vld [vmem:[#allocation2 + $0x2c] sm:$0x1]
      %v493 = vld [vmem:[#allocation2 + $0x34] sm:$0x1]
      %v494 = vld [vmem:[#allocation2 + $0x3c] sm:$0x1]
      %vm495 = vsmask.f32 3328
      %vm496 = vsmask.f32 7440
      %vm497 = vmor %vm495, %vm496
      %v499 = vshrl.u32 %v478, 16
      %v501 = vrot.slane %v499, 4
      %v502 = vshll.u32 %v478, 16
      %v504 = vrot.slane %v502, 5
      %v505 = vor.u32 %v501, %v504
      %v506 = vrot.slane %v505, 4
      %v508 = vshll.u32 %v487, 16
      %v510 = vrot.slane %v508, 5
      %v511 = vsel %vm497, %v506, %v510
      %v513 = vshrl.u32 %v479, 16
      %v515 = vrot.slane %v513, 4
      %v516 = vshll.u32 %v479, 16
      %v518 = vrot.slane %v516, 5
      %v519 = vor.u32 %v515, %v518
      %v520 = vrot.slane %v519, 4
      %v522 = vshll.u32 %v488, 16
      %v524 = vrot.slane %v522, 5
      %v525 = vsel %vm497, %v520, %v524
      %v527 = vshrl.u32 %v480, 16
      %v529 = vrot.slane %v527, 4
      %v530 = vshll.u32 %v480, 16
      %v532 = vrot.slane %v530, 5
      %v533 = vor.u32 %v529, %v532
      %v534 = vrot.slane %v533, 4
      %v536 = vshll.u32 %v489, 16
      %v538 = vrot.slane %v536, 5
      %v539 = vsel %vm497, %v534, %v538
      %v541 = vshrl.u32 %v481, 16
      %v543 = vrot.slane %v541, 4
      %v544 = vshll.u32 %v481, 16
      %v546 = vrot.slane %v544, 5
      %v547 = vor.u32 %v543, %v546
      %v548 = vrot.slane %v547, 4
      %v550 = vshll.u32 %v490, 16
      %v552 = vrot.slane %v550, 5
      %v553 = vsel %vm497, %v548, %v552
      %v555 = vshrl.u32 %v482, 16
      %v557 = vrot.slane %v555, 4
      %v558 = vshll.u32 %v482, 16
      %v560 = vrot.slane %v558, 5
      %v561 = vor.u32 %v557, %v560
      %v562 = vrot.slane %v561, 4
      %v564 = vshll.u32 %v491, 16
      %v566 = vrot.slane %v564, 5
      %v567 = vsel %vm497, %v562, %v566
      %v569 = vshrl.u32 %v483, 16
      %v571 = vrot.slane %v569, 4
      %v572 = vshll.u32 %v483, 16
      %v574 = vrot.slane %v572, 5
      %v575 = vor.u32 %v571, %v574
      %v576 = vrot.slane %v575, 4
      %v578 = vshll.u32 %v492, 16
      %v580 = vrot.slane %v578, 5
      %v581 = vsel %vm497, %v576, %v580
      %v583 = vshrl.u32 %v484, 16
      %v585 = vrot.slane %v583, 4
      %v586 = vshll.u32 %v484, 16
      %v588 = vrot.slane %v586, 5
      %v589 = vor.u32 %v585, %v588
      %v590 = vrot.slane %v589, 4
      %v592 = vshll.u32 %v493, 16
      %v594 = vrot.slane %v592, 5
      %v595 = vsel %vm497, %v590, %v594
      %v597 = vshrl.u32 %v485, 16
      %v599 = vrot.slane %v597, 4
      %v600 = vshll.u32 %v485, 16
      %v602 = vrot.slane %v600, 5
      %v603 = vor.u32 %v599, %v602
      %v604 = vrot.slane %v603, 4
      %v606 = vshll.u32 %v494, 16
      %v608 = vrot.slane %v606, 5
      %v609 = vsel %vm497, %v604, %v608
      %s610 = scalar_lea.vmem %s1, 2
      %v611 = vld [vmem:[%s610] sm:$0x3]
      %v612 = vunpack.c.l.b16 %v511
      %v613 = vunpack.c.l.b16 %v525
      %v614 = vunpack.c.l.b16 %v539
      %v615 = vunpack.c.l.b16 %v553
      %v616 = vunpack.c.l.b16 %v567
      %v617 = vunpack.c.l.b16 %v581
      %v618 = vunpack.c.l.b16 %v595
      %v619 = vunpack.c.l.b16 %v609
      %v620 = vpack.c.b16 %v613, %v612
      %v621 = vpack.c.b16 %v615, %v614
      %v622 = vpack.c.b16 %v617, %v616
      %v623 = vpack.c.b16 %v619, %v618
      %vm624 = vcmask 31744
      %v626 = vsel %vm624, %v620, 0
      %v629 = vsel %vm624, %v621, 0
      %v632 = vsel %vm624, %v622, 0
      %v635 = vsel %vm624, %v623, 0
      %vm637 = vcmask 1041408
      %v639 = vsel %vm637, %v611, 0
      %641 = vmatpush.bf16.msra.mxu0 0
      %642 = vmatpush.bf16.msra.mxu0 0
      %643 = vmatpush.bf16.msra.mxu0 0
      %644 = vmatpush.bf16.msra.mxu0 0
      %645 = vmatpush.bf16.msra.mxu0 0
      %646 = vmatpush.bf16.msra.mxu0 0
      %647 = vmatpush.bf16.msra.mxu0 0
      %648 = vmatpush.bf16.msra.mxu0 %v639
      %649 = vmatmul.bf16.gmra.mxu0 %v626
      %v650 = vpop.f32.mrf.mxu0
      %v651 = vadd.f32 0.0, %v650
      %v652 = vpop.f32.mrf.mxu0
      %v653 = vadd.f32 0.0, %v652
      %654 = vmatmul.bf16.gmra.mxu0 %v629
      %v655 = vpop.f32.mrf.mxu0
      %v656 = vadd.f32 0.0, %v655
      %v657 = vpop.f32.mrf.mxu0
      %v658 = vadd.f32 0.0, %v657
      %659 = vmatmul.bf16.gmra.mxu0 %v632
      %v660 = vpop.f32.mrf.mxu0
      %v661 = vadd.f32 0.0, %v660
      %v662 = vpop.f32.mrf.mxu0
      %v663 = vadd.f32 0.0, %v662
      %664 = vmatmul.bf16.gmra.mxu0 %v635
      %v665 = vpop.f32.mrf.mxu0
      %v666 = vadd.f32 0.0, %v665
      %v667 = vpop.f32.mrf.mxu0
      %v668 = vadd.f32 0.0, %v667
      %669 = vdwg.mxu0
      %v678 = vunpack.c.l.b16 %v478
      %v679 = vunpack.c.l.b16 %v479
      %v680 = vunpack.c.l.b16 %v480
      %v681 = vunpack.c.l.b16 %v481
      %v682 = vunpack.c.l.b16 %v482
      %v683 = vunpack.c.l.b16 %v483
      %v684 = vunpack.c.l.b16 %v484
      %v685 = vunpack.c.l.b16 %v485
      %v686 = vpack.c.b16 %v679, %v678
      %v687 = vpack.c.b16 %v681, %v680
      %v688 = vpack.c.b16 %v683, %v682
      %v689 = vpack.c.b16 %v685, %v684
      %v691 = vsel %vm624, %v686, 0
      %v694 = vsel %vm624, %v687, 0
      %v697 = vsel %vm624, %v688, 0
      %v700 = vsel %vm624, %v689, 0
      %v703 = vsel %vm637, %v486, 0
      %705 = vmatpush.bf16.msra.mxu0 0
      %706 = vmatpush.bf16.msra.mxu0 0
      %707 = vmatpush.bf16.msra.mxu0 0
      %708 = vmatpush.bf16.msra.mxu0 0
      %709 = vmatpush.bf16.msra.mxu0 0
      %710 = vmatpush.bf16.msra.mxu0 0
      %711 = vmatpush.bf16.msra.mxu0 0
      %712 = vmatpush.bf16.msra.mxu0 %v703
      %713 = vmatmul.bf16.gmra.mxu0 %v691
      %v714 = vpop.f32.mrf.mxu0
      %v715 = vadd.f32 %v651, %v714
      %v716 = vpop.f32.mrf.mxu0
      %v717 = vadd.f32 %v653, %v716
      %718 = vmatmul.bf16.gmra.mxu0 %v694
      %v719 = vpop.f32.mrf.mxu0
      %v720 = vadd.f32 %v656, %v719
      %v721 = vpop.f32.mrf.mxu0
      %v722 = vadd.f32 %v658, %v721
      %723 = vmatmul.bf16.gmra.mxu0 %v697
      %v724 = vpop.f32.mrf.mxu0
      %v725 = vadd.f32 %v661, %v724
      %v726 = vpop.f32.mrf.mxu0
      %v727 = vadd.f32 %v663, %v726
      %728 = vmatmul.bf16.gmra.mxu0 %v700
      %v729 = vpop.f32.mrf.mxu0
      %v730 = vadd.f32 %v666, %v729
      %v731 = vpop.f32.mrf.mxu0
      %v732 = vadd.f32 %v668, %v731
      %733 = vdwg.mxu0
      %v734 = vld [vmem:[#allocation2] sm:$0xe]
      %v735 = vld [vmem:[#allocation2 + $0x8] sm:$0xe]
      %v736 = vld [vmem:[#allocation2 + $0x10] sm:$0xe]
      %v737 = vld [vmem:[#allocation2 + $0x18] sm:$0xe]
      %v738 = vld [vmem:[#allocation2 + $0x20] sm:$0xe]
      %v739 = vld [vmem:[#allocation2 + $0x28] sm:$0xe]
      %v740 = vld [vmem:[#allocation2 + $0x30] sm:$0xe]
      %v741 = vld [vmem:[#allocation2 + $0x38] sm:$0xe]
      %vm758 = vcmask 1042432
      %vm759 = vcmask 1046532
      %vm760 = vmor %vm758, %vm759
      %v761 = vrot.slane %v734, 5
      %v762 = vrot.slane %v761, 4
      %v763 = vrot.slane %v487, 5
      %v764 = vsel %vm760, %v762, %v763
      %v765 = vrot.slane %v735, 5
      %v766 = vrot.slane %v765, 4
      %v767 = vrot.slane %v488, 5
      %v768 = vsel %vm760, %v766, %v767
      %v769 = vrot.slane %v736, 5
      %v770 = vrot.slane %v769, 4
      %v771 = vrot.slane %v489, 5
      %v772 = vsel %vm760, %v770, %v771
      %v773 = vrot.slane %v737, 5
      %v774 = vrot.slane %v773, 4
      %v775 = vrot.slane %v490, 5
      %v776 = vsel %vm760, %v774, %v775
      %v777 = vrot.slane %v738, 5
      %v778 = vrot.slane %v777, 4
      %v779 = vrot.slane %v491, 5
      %v780 = vsel %vm760, %v778, %v779
      %v781 = vrot.slane %v739, 5
      %v782 = vrot.slane %v781, 4
      %v783 = vrot.slane %v492, 5
      %v784 = vsel %vm760, %v782, %v783
      %v785 = vrot.slane %v740, 5
      %v786 = vrot.slane %v785, 4
      %v787 = vrot.slane %v493, 5
      %v788 = vsel %vm760, %v786, %v787
      %v789 = vrot.slane %v741, 5
      %v790 = vrot.slane %v789, 4
      %v791 = vrot.slane %v494, 5
      %v792 = vsel %vm760, %v790, %v791
      %s793 = scalar_lea.vmem %s1, 4
      %v794 = vld [vmem:[%s793] sm:$0x3]
      %v795 = vunpack.c.l.b16 %v764
      %v796 = vunpack.c.l.b16 %v768
      %v797 = vunpack.c.l.b16 %v772
      %v798 = vunpack.c.l.b16 %v776
      %v799 = vunpack.c.l.b16 %v780
      %v800 = vunpack.c.l.b16 %v784
      %v801 = vunpack.c.l.b16 %v788
      %v802 = vunpack.c.l.b16 %v792
      %v803 = vpack.c.b16 %v796, %v795
      %v804 = vpack.c.b16 %v798, %v797
      %v805 = vpack.c.b16 %v800, %v799
      %v806 = vpack.c.b16 %v802, %v801
      %v808 = vsel %vm624, %v803, 0
      %v811 = vsel %vm624, %v804, 0
      %v814 = vsel %vm624, %v805, 0
      %v817 = vsel %vm624, %v806, 0
      %v820 = vsel %vm637, %v794, 0
      %822 = vmatpush.bf16.msra.mxu0 0
      %823 = vmatpush.bf16.msra.mxu0 0
      %824 = vmatpush.bf16.msra.mxu0 0
      %825 = vmatpush.bf16.msra.mxu0 0
      %826 = vmatpush.bf16.msra.mxu0 0
      %827 = vmatpush.bf16.msra.mxu0 0
      %828 = vmatpush.bf16.msra.mxu0 0
      %829 = vmatpush.bf16.msra.mxu0 %v820
      %830 = vmatmul.bf16.gmra.mxu0 %v808
      %v831 = vpop.f32.mrf.mxu0
      %v832 = vadd.f32 0.0, %v831
      %v833 = vpop.f32.mrf.mxu0
      %v834 = vadd.f32 0.0, %v833
      %835 = vmatmul.bf16.gmra.mxu0 %v811
      %v836 = vpop.f32.mrf.mxu0
      %v837 = vadd.f32 0.0, %v836
      %v838 = vpop.f32.mrf.mxu0
      %v839 = vadd.f32 0.0, %v838
      %840 = vmatmul.bf16.gmra.mxu0 %v814
      %v841 = vpop.f32.mrf.mxu0
      %v842 = vadd.f32 0.0, %v841
      %v843 = vpop.f32.mrf.mxu0
      %v844 = vadd.f32 0.0, %v843
      %845 = vmatmul.bf16.gmra.mxu0 %v817
      %v846 = vpop.f32.mrf.mxu0
      %v847 = vadd.f32 0.0, %v846
      %v848 = vpop.f32.mrf.mxu0
      %v849 = vadd.f32 0.0, %v848
      %850 = vdwg.mxu0
      %v851 = vadd.f32 %v715, %v832
      %v852 = vadd.f32 %v717, %v834
      %v853 = vadd.f32 %v720, %v837
      %v854 = vadd.f32 %v722, %v839
      %v855 = vadd.f32 %v725, %v842
      %v856 = vadd.f32 %v727, %v844
      %v857 = vadd.f32 %v730, %v847
      %v858 = vadd.f32 %v732, %v849
      %v859 = vld [vmem:[%s294] sm:$0xf]
      %v860 = vld [vmem:[%s294 + $0x8] sm:$0xf]
      %v861 = vld [vmem:[%s294 + $0x10] sm:$0xf]
      %v862 = vld [vmem:[%s294 + $0x18] sm:$0xf]
      %v863 = vld [vmem:[%s294 + $0x20] sm:$0xf]
      %v864 = vld [vmem:[%s294 + $0x28] sm:$0xf]
      %v865 = vld [vmem:[%s294 + $0x30] sm:$0xf]
      %v866 = vld [vmem:[%s294 + $0x38] sm:$0xf]
      %s867 = scalar_lea.vmem %s1, 6
      %v868 = vld [vmem:[%s867] sm:$0x3]
      %v877 = vunpack.c.l.b16 %v859
      %v878 = vunpack.c.l.b16 %v860
      %v879 = vunpack.c.l.b16 %v861
      %v880 = vunpack.c.l.b16 %v862
      %v881 = vunpack.c.l.b16 %v863
      %v882 = vunpack.c.l.b16 %v864
      %v883 = vunpack.c.l.b16 %v865
      %v884 = vunpack.c.l.b16 %v866
      %v885 = vpack.c.b16 %v878, %v877
      %v886 = vpack.c.b16 %v880, %v879
      %v887 = vpack.c.b16 %v882, %v881
      %v888 = vpack.c.b16 %v884, %v883
      %v890 = vsel %vm624, %v885, 0
      %v893 = vsel %vm624, %v886, 0
      %v896 = vsel %vm624, %v887, 0
      %v899 = vsel %vm624, %v888, 0
      %v902 = vsel %vm637, %v868, 0
      %904 = vmatpush.bf16.msra.mxu0 0
      %905 = vmatpush.bf16.msra.mxu0 0
      %906 = vmatpush.bf16.msra.mxu0 0
      %907 = vmatpush.bf16.msra.mxu0 0
      %908 = vmatpush.bf16.msra.mxu0 0
      %909 = vmatpush.bf16.msra.mxu0 0
      %910 = vmatpush.bf16.msra.mxu0 0
      %911 = vmatpush.bf16.msra.mxu0 %v902
      %912 = vmatmul.bf16.gmra.mxu0 %v890
      %v913 = vpop.f32.mrf.mxu0
      %v914 = vadd.f32 0.0, %v913
      %v915 = vpop.f32.mrf.mxu0
      %v916 = vadd.f32 0.0, %v915
      %917 = vmatmul.bf16.gmra.mxu0 %v893
      %v918 = vpop.f32.mrf.mxu0
      %v919 = vadd.f32 0.0, %v918
      %v920 = vpop.f32.mrf.mxu0
      %v921 = vadd.f32 0.0, %v920
      %922 = vmatmul.bf16.gmra.mxu0 %v896
      %v923 = vpop.f32.mrf.mxu0
      %v924 = vadd.f32 0.0, %v923
      %v925 = vpop.f32.mrf.mxu0
      %v926 = vadd.f32 0.0, %v925
      %927 = vmatmul.bf16.gmra.mxu0 %v899
      %v928 = vpop.f32.mrf.mxu0
      %v929 = vadd.f32 0.0, %v928
      %v930 = vpop.f32.mrf.mxu0
      %v931 = vadd.f32 0.0, %v930
      %932 = vdwg.mxu0
      %v933 = vadd.f32 %v851, %v914
      %v934 = vadd.f32 %v852, %v916
      %v935 = vadd.f32 %v853, %v919
      %v936 = vadd.f32 %v854, %v921
      %v937 = vadd.f32 %v855, %v924
      %v938 = vadd.f32 %v856, %v926
      %v939 = vadd.f32 %v857, %v929
      %v940 = vadd.f32 %v858, %v931
      %v941 = vld [vmem:[%s294] sm:$0xf]
      %v942 = vld [vmem:[%s294 + $0x4] sm:$0x1]
      %v943 = vld [vmem:[%s294 + $0x8] sm:$0xf]
      %v944 = vld [vmem:[%s294 + $0xc] sm:$0x1]
      %v945 = vld [vmem:[%s294 + $0x10] sm:$0xf]
      %v946 = vld [vmem:[%s294 + $0x14] sm:$0x1]
      %v947 = vld [vmem:[%s294 + $0x18] sm:$0xf]
      %v948 = vld [vmem:[%s294 + $0x1c] sm:$0x1]
      %v949 = vld [vmem:[%s294 + $0x20] sm:$0xf]
      %v950 = vld [vmem:[%s294 + $0x24] sm:$0x1]
      %v951 = vld [vmem:[%s294 + $0x28] sm:$0xf]
      %v952 = vld [vmem:[%s294 + $0x2c] sm:$0x1]
      %v953 = vld [vmem:[%s294 + $0x30] sm:$0xf]
      %v954 = vld [vmem:[%s294 + $0x34] sm:$0x1]
      %v955 = vld [vmem:[%s294 + $0x38] sm:$0xf]
      %v956 = vld [vmem:[%s294 + $0x3c] sm:$0x1]
      %v958 = vshrl.u32 %v941, 16
      %v960 = vrot.slane %v958, 4
      %v961 = vshll.u32 %v941, 16
      %v963 = vrot.slane %v961, 5
      %v964 = vor.u32 %v960, %v963
      %v965 = vrot.slane %v964, 4
      %v967 = vshll.u32 %v942, 16
      %v969 = vrot.slane %v967, 5
      %v970 = vsel %vm497, %v965, %v969
      %v972 = vshrl.u32 %v943, 16
      %v974 = vrot.slane %v972, 4
      %v975 = vshll.u32 %v943, 16
      %v977 = vrot.slane %v975, 5
      %v978 = vor.u32 %v974, %v977
      %v979 = vrot.slane %v978, 4
      %v981 = vshll.u32 %v944, 16
      %v983 = vrot.slane %v981, 5
      %v984 = vsel %vm497, %v979, %v983
      %v986 = vshrl.u32 %v945, 16
      %v988 = vrot.slane %v986, 4
      %v989 = vshll.u32 %v945, 16
      %v991 = vrot.slane %v989, 5
      %v992 = vor.u32 %v988, %v991
      %v993 = vrot.slane %v992, 4
      %v995 = vshll.u32 %v946, 16
      %v997 = vrot.slane %v995, 5
      %v998 = vsel %vm497, %v993, %v997
      %v1000 = vshrl.u32 %v947, 16
      %v1002 = vrot.slane %v1000, 4
      %v1003 = vshll.u32 %v947, 16
      %v1005 = vrot.slane %v1003, 5
      %v1006 = vor.u32 %v1002, %v1005
      %v1007 = vrot.slane %v1006, 4
      %v1009 = vshll.u32 %v948, 16
      %v1011 = vrot.slane %v1009, 5
      %v1012 = vsel %vm497, %v1007, %v1011
      %v1014 = vshrl.u32 %v949, 16
      %v1016 = vrot.slane %v1014, 4
      %v1017 = vshll.u32 %v949, 16
      %v1019 = vrot.slane %v1017, 5
      %v1020 = vor.u32 %v1016, %v1019
      %v1021 = vrot.slane %v1020, 4
      %v1023 = vshll.u32 %v950, 16
      %v1025 = vrot.slane %v1023, 5
      %v1026 = vsel %vm497, %v1021, %v1025
      %v1028 = vshrl.u32 %v951, 16
      %v1030 = vrot.slane %v1028, 4
      %v1031 = vshll.u32 %v951, 16
      %v1033 = vrot.slane %v1031, 5
      %v1034 = vor.u32 %v1030, %v1033
      %v1035 = vrot.slane %v1034, 4
      %v1037 = vshll.u32 %v952, 16
      %v1039 = vrot.slane %v1037, 5
      %v1040 = vsel %vm497, %v1035, %v1039
      %v1042 = vshrl.u32 %v953, 16
      %v1044 = vrot.slane %v1042, 4
      %v1045 = vshll.u32 %v953, 16
      %v1047 = vrot.slane %v1045, 5
      %v1048 = vor.u32 %v1044, %v1047
      %v1049 = vrot.slane %v1048, 4
      %v1051 = vshll.u32 %v954, 16
      %v1053 = vrot.slane %v1051, 5
      %v1054 = vsel %vm497, %v1049, %v1053
      %v1056 = vshrl.u32 %v955, 16
      %v1058 = vrot.slane %v1056, 4
      %v1059 = vshll.u32 %v955, 16
      %v1061 = vrot.slane %v1059, 5
      %v1062 = vor.u32 %v1058, %v1061
      %v1063 = vrot.slane %v1062, 4
      %v1065 = vshll.u32 %v956, 16
      %v1067 = vrot.slane %v1065, 5
      %v1068 = vsel %vm497, %v1063, %v1067
      %s1069 = scalar_lea.vmem %s1, 8
      %v1070 = vld [vmem:[%s1069] sm:$0x3]
      %v1071 = vunpack.c.l.b16 %v970
      %v1072 = vunpack.c.l.b16 %v984
      %v1073 = vunpack.c.l.b16 %v998
      %v1074 = vunpack.c.l.b16 %v1012
      %v1075 = vunpack.c.l.b16 %v1026
      %v1076 = vunpack.c.l.b16 %v1040
      %v1077 = vunpack.c.l.b16 %v1054
      %v1078 = vunpack.c.l.b16 %v1068
      %v1079 = vpack.c.b16 %v1072, %v1071
      %v1080 = vpack.c.b16 %v1074, %v1073
      %v1081 = vpack.c.b16 %v1076, %v1075
      %v1082 = vpack.c.b16 %v1078, %v1077
      %v1084 = vsel %vm624, %v1079, 0
      %v1087 = vsel %vm624, %v1080, 0
      %v1090 = vsel %vm624, %v1081, 0
      %v1093 = vsel %vm624, %v1082, 0
      %v1096 = vsel %vm637, %v1070, 0
      %1098 = vmatpush.bf16.msra.mxu0 0
      %1099 = vmatpush.bf16.msra.mxu0 0
      %1100 = vmatpush.bf16.msra.mxu0 0
      %1101 = vmatpush.bf16.msra.mxu0 0
      %1102 = vmatpush.bf16.msra.mxu0 0
      %1103 = vmatpush.bf16.msra.mxu0 0
      %1104 = vmatpush.bf16.msra.mxu0 0
      %1105 = vmatpush.bf16.msra.mxu0 %v1096
      %1106 = vmatmul.bf16.gmra.mxu0 %v1084
      %v1107 = vpop.f32.mrf.mxu0
      %v1108 = vadd.f32 0.0, %v1107
      %v1109 = vpop.f32.mrf.mxu0
      %v1110 = vadd.f32 0.0, %v1109
      %1111 = vmatmul.bf16.gmra.mxu0 %v1087
      %v1112 = vpop.f32.mrf.mxu0
      %v1113 = vadd.f32 0.0, %v1112
      %v1114 = vpop.f32.mrf.mxu0
      %v1115 = vadd.f32 0.0, %v1114
      %1116 = vmatmul.bf16.gmra.mxu0 %v1090
      %v1117 = vpop.f32.mrf.mxu0
      %v1118 = vadd.f32 0.0, %v1117
      %v1119 = vpop.f32.mrf.mxu0
      %v1120 = vadd.f32 0.0, %v1119
      %1121 = vmatmul.bf16.gmra.mxu0 %v1093
      %v1122 = vpop.f32.mrf.mxu0
      %v1123 = vadd.f32 0.0, %v1122
      %v1124 = vpop.f32.mrf.mxu0
      %v1125 = vadd.f32 0.0, %v1124
      %1126 = vdwg.mxu0
      %v1127 = vadd.f32 %v933, %v1108
      %v1128 = vadd.f32 %v934, %v1110
      %v1129 = vadd.f32 %v935, %v1113
      %v1130 = vadd.f32 %v936, %v1115
      %v1131 = vadd.f32 %v937, %v1118
      %v1132 = vadd.f32 %v938, %v1120
      %v1133 = vadd.f32 %v939, %v1123
      %v1134 = vadd.f32 %v940, %v1125
      %v1135 = vld [vmem:[%s294] sm:$0xe]
      %v1136 = vld [vmem:[%s294 + $0x8] sm:$0xe]
      %v1137 = vld [vmem:[%s294 + $0x10] sm:$0xe]
      %v1138 = vld [vmem:[%s294 + $0x18] sm:$0xe]
      %v1139 = vld [vmem:[%s294 + $0x20] sm:$0xe]
      %v1140 = vld [vmem:[%s294 + $0x28] sm:$0xe]
      %v1141 = vld [vmem:[%s294 + $0x30] sm:$0xe]
      %v1142 = vld [vmem:[%s294 + $0x38] sm:$0xe]
      %v1159 = vrot.slane %v1135, 5
      %v1160 = vrot.slane %v1159, 4
      %v1161 = vrot.slane %v942, 5
      %v1162 = vsel %vm760, %v1160, %v1161
      %v1163 = vrot.slane %v1136, 5
      %v1164 = vrot.slane %v1163, 4
      %v1165 = vrot.slane %v944, 5
      %v1166 = vsel %vm760, %v1164, %v1165
      %v1167 = vrot.slane %v1137, 5
      %v1168 = vrot.slane %v1167, 4
      %v1169 = vrot.slane %v946, 5
      %v1170 = vsel %vm760, %v1168, %v1169
      %v1171 = vrot.slane %v1138, 5
      %v1172 = vrot.slane %v1171, 4
      %v1173 = vrot.slane %v948, 5
      %v1174 = vsel %vm760, %v1172, %v1173
      %v1175 = vrot.slane %v1139, 5
      %v1176 = vrot.slane %v1175, 4
      %v1177 = vrot.slane %v950, 5
      %v1178 = vsel %vm760, %v1176, %v1177
      %v1179 = vrot.slane %v1140, 5
      %v1180 = vrot.slane %v1179, 4
      %v1181 = vrot.slane %v952, 5
      %v1182 = vsel %vm760, %v1180, %v1181
      %v1183 = vrot.slane %v1141, 5
      %v1184 = vrot.slane %v1183, 4
      %v1185 = vrot.slane %v954, 5
      %v1186 = vsel %vm760, %v1184, %v1185
      %v1187 = vrot.slane %v1142, 5
      %v1188 = vrot.slane %v1187, 4
      %v1189 = vrot.slane %v956, 5
      %v1190 = vsel %vm760, %v1188, %v1189
      %s1191 = scalar_lea.vmem %s1, 10
      %v1192 = vld [vmem:[%s1191] sm:$0x3]
      %v1193 = vunpack.c.l.b16 %v1162
      %v1194 = vunpack.c.l.b16 %v1166
      %v1195 = vunpack.c.l.b16 %v1170
      %v1196 = vunpack.c.l.b16 %v1174
      %v1197 = vunpack.c.l.b16 %v1178
      %v1198 = vunpack.c.l.b16 %v1182
      %v1199 = vunpack.c.l.b16 %v1186
      %v1200 = vunpack.c.l.b16 %v1190
      %v1201 = vpack.c.b16 %v1194, %v1193
      %v1202 = vpack.c.b16 %v1196, %v1195
      %v1203 = vpack.c.b16 %v1198, %v1197
      %v1204 = vpack.c.b16 %v1200, %v1199
      %v1206 = vsel %vm624, %v1201, 0
      %v1209 = vsel %vm624, %v1202, 0
      %v1212 = vsel %vm624, %v1203, 0
      %v1215 = vsel %vm624, %v1204, 0
      %v1218 = vsel %vm637, %v1192, 0
      %1220 = vmatpush.bf16.msra.mxu0 0
      %1221 = vmatpush.bf16.msra.mxu0 0
      %1222 = vmatpush.bf16.msra.mxu0 0
      %1223 = vmatpush.bf16.msra.mxu0 0
      %1224 = vmatpush.bf16.msra.mxu0 0
      %1225 = vmatpush.bf16.msra.mxu0 0
      %1226 = vmatpush.bf16.msra.mxu0 0
      %1227 = vmatpush.bf16.msra.mxu0 %v1218
      %1228 = vmatmul.bf16.gmra.mxu0 %v1206
      %v1229 = vpop.f32.mrf.mxu0
      %v1230 = vadd.f32 0.0, %v1229
      %v1231 = vpop.f32.mrf.mxu0
      %v1232 = vadd.f32 0.0, %v1231
      %1233 = vmatmul.bf16.gmra.mxu0 %v1209
      %v1234 = vpop.f32.mrf.mxu0
      %v1235 = vadd.f32 0.0, %v1234
      %v1236 = vpop.f32.mrf.mxu0
      %v1237 = vadd.f32 0.0, %v1236
      %1238 = vmatmul.bf16.gmra.mxu0 %v1212
      %v1239 = vpop.f32.mrf.mxu0
      %v1240 = vadd.f32 0.0, %v1239
      %v1241 = vpop.f32.mrf.mxu0
      %v1242 = vadd.f32 0.0, %v1241
      %1243 = vmatmul.bf16.gmra.mxu0 %v1215
      %v1244 = vpop.f32.mrf.mxu0
      %v1245 = vadd.f32 0.0, %v1244
      %v1246 = vpop.f32.mrf.mxu0
      %v1247 = vadd.f32 0.0, %v1246
      %1248 = vdwg.mxu0
      %v1249 = vadd.f32 %v1127, %v1230
      %v1250 = vadd.f32 %v1128, %v1232
      %v1251 = vadd.f32 %v1129, %v1235
      %v1252 = vadd.f32 %v1130, %v1237
      %v1253 = vadd.f32 %v1131, %v1240
      %v1254 = vadd.f32 %v1132, %v1242
      %v1255 = vadd.f32 %v1133, %v1245
      %v1256 = vadd.f32 %v1134, %v1247
      %s1257 = scalar_lea.vmem [#allocation2], 16
      %v1258 = vld [vmem:[%s1257] sm:$0xf]
      %v1259 = vld [vmem:[%s1257 + $0x8] sm:$0xf]
      %v1260 = vld [vmem:[%s1257 + $0x10] sm:$0xf]
      %v1261 = vld [vmem:[%s1257 + $0x18] sm:$0xf]
      %v1262 = vld [vmem:[%s1257 + $0x20] sm:$0xf]
      %v1263 = vld [vmem:[%s1257 + $0x28] sm:$0xf]
      %v1264 = vld [vmem:[%s1257 + $0x30] sm:$0xf]
      %v1265 = vld [vmem:[%s1257 + $0x38] sm:$0xf]
      %s1266 = scalar_lea.vmem %s1, 12
      %v1267 = vld [vmem:[%s1266] sm:$0x3]
      %v1276 = vunpack.c.l.b16 %v1258
      %v1277 = vunpack.c.l.b16 %v1259
      %v1278 = vunpack.c.l.b16 %v1260
      %v1279 = vunpack.c.l.b16 %v1261
      %v1280 = vunpack.c.l.b16 %v1262
      %v1281 = vunpack.c.l.b16 %v1263
      %v1282 = vunpack.c.l.b16 %v1264
      %v1283 = vunpack.c.l.b16 %v1265
      %v1284 = vpack.c.b16 %v1277, %v1276
      %v1285 = vpack.c.b16 %v1279, %v1278
      %v1286 = vpack.c.b16 %v1281, %v1280
      %v1287 = vpack.c.b16 %v1283, %v1282
      %v1289 = vsel %vm624, %v1284, 0
      %v1292 = vsel %vm624, %v1285, 0
      %v1295 = vsel %vm624, %v1286, 0
      %v1298 = vsel %vm624, %v1287, 0
      %v1301 = vsel %vm637, %v1267, 0
      %1303 = vmatpush.bf16.msra.mxu0 0
      %1304 = vmatpush.bf16.msra.mxu0 0
      %1305 = vmatpush.bf16.msra.mxu0 0
      %1306 = vmatpush.bf16.msra.mxu0 0
      %1307 = vmatpush.bf16.msra.mxu0 0
      %1308 = vmatpush.bf16.msra.mxu0 0
      %1309 = vmatpush.bf16.msra.mxu0 0
      %1310 = vmatpush.bf16.msra.mxu0 %v1301
      %1311 = vmatmul.bf16.gmra.mxu0 %v1289
      %v1312 = vpop.f32.mrf.mxu0
      %v1313 = vadd.f32 0.0, %v1312
      %v1314 = vpop.f32.mrf.mxu0
      %v1315 = vadd.f32 0.0, %v1314
      %1316 = vmatmul.bf16.gmra.mxu0 %v1292
      %v1317 = vpop.f32.mrf.mxu0
      %v1318 = vadd.f32 0.0, %v1317
      %v1319 = vpop.f32.mrf.mxu0
      %v1320 = vadd.f32 0.0, %v1319
      %1321 = vmatmul.bf16.gmra.mxu0 %v1295
      %v1322 = vpop.f32.mrf.mxu0
      %v1323 = vadd.f32 0.0, %v1322
      %v1324 = vpop.f32.mrf.mxu0
      %v1325 = vadd.f32 0.0, %v1324
      %1326 = vmatmul.bf16.gmra.mxu0 %v1298
      %v1327 = vpop.f32.mrf.mxu0
      %v1328 = vadd.f32 0.0, %v1327
      %v1329 = vpop.f32.mrf.mxu0
      %v1330 = vadd.f32 0.0, %v1329
      %1331 = vdwg.mxu0
      %v1332 = vadd.f32 %v1249, %v1313
      %v1333 = vadd.f32 %v1250, %v1315
      %v1334 = vadd.f32 %v1251, %v1318
      %v1335 = vadd.f32 %v1252, %v1320
      %v1336 = vadd.f32 %v1253, %v1323
      %v1337 = vadd.f32 %v1254, %v1325
      %v1338 = vadd.f32 %v1255, %v1328
      %v1339 = vadd.f32 %v1256, %v1330
      %v1340 = vld [vmem:[%s1257] sm:$0xf]
      %v1341 = vld [vmem:[%s1257 + $0x4] sm:$0x1]
      %v1342 = vld [vmem:[%s1257 + $0x8] sm:$0xf]
      %v1343 = vld [vmem:[%s1257 + $0xc] sm:$0x1]
      %v1344 = vld [vmem:[%s1257 + $0x10] sm:$0xf]
      %v1345 = vld [vmem:[%s1257 + $0x14] sm:$0x1]
      %v1346 = vld [vmem:[%s1257 + $0x18] sm:$0xf]
      %v1347 = vld [vmem:[%s1257 + $0x1c] sm:$0x1]
      %v1348 = vld [vmem:[%s1257 + $0x20] sm:$0xf]
      %v1349 = vld [vmem:[%s1257 + $0x24] sm:$0x1]
      %v1350 = vld [vmem:[%s1257 + $0x28] sm:$0xf]
      %v1351 = vld [vmem:[%s1257 + $0x2c] sm:$0x1]
      %v1352 = vld [vmem:[%s1257 + $0x30] sm:$0xf]
      %v1353 = vld [vmem:[%s1257 + $0x34] sm:$0x1]
      %v1354 = vld [vmem:[%s1257 + $0x38] sm:$0xf]
      %v1355 = vld [vmem:[%s1257 + $0x3c] sm:$0x1]
      %v1357 = vshrl.u32 %v1340, 16
      %v1359 = vrot.slane %v1357, 4
      %v1360 = vshll.u32 %v1340, 16
      %v1362 = vrot.slane %v1360, 5
      %v1363 = vor.u32 %v1359, %v1362
      %v1364 = vrot.slane %v1363, 4
      %v1366 = vshll.u32 %v1341, 16
      %v1368 = vrot.slane %v1366, 5
      %v1369 = vsel %vm497, %v1364, %v1368
      %v1371 = vshrl.u32 %v1342, 16
      %v1373 = vrot.slane %v1371, 4
      %v1374 = vshll.u32 %v1342, 16
      %v1376 = vrot.slane %v1374, 5
      %v1377 = vor.u32 %v1373, %v1376
      %v1378 = vrot.slane %v1377, 4
      %v1380 = vshll.u32 %v1343, 16
      %v1382 = vrot.slane %v1380, 5
      %v1383 = vsel %vm497, %v1378, %v1382
      %v1385 = vshrl.u32 %v1344, 16
      %v1387 = vrot.slane %v1385, 4
      %v1388 = vshll.u32 %v1344, 16
      %v1390 = vrot.slane %v1388, 5
      %v1391 = vor.u32 %v1387, %v1390
      %v1392 = vrot.slane %v1391, 4
      %v1394 = vshll.u32 %v1345, 16
      %v1396 = vrot.slane %v1394, 5
      %v1397 = vsel %vm497, %v1392, %v1396
      %v1399 = vshrl.u32 %v1346, 16
      %v1401 = vrot.slane %v1399, 4
      %v1402 = vshll.u32 %v1346, 16
      %v1404 = vrot.slane %v1402, 5
      %v1405 = vor.u32 %v1401, %v1404
      %v1406 = vrot.slane %v1405, 4
      %v1408 = vshll.u32 %v1347, 16
      %v1410 = vrot.slane %v1408, 5
      %v1411 = vsel %vm497, %v1406, %v1410
      %v1413 = vshrl.u32 %v1348, 16
      %v1415 = vrot.slane %v1413, 4
      %v1416 = vshll.u32 %v1348, 16
      %v1418 = vrot.slane %v1416, 5
      %v1419 = vor.u32 %v1415, %v1418
      %v1420 = vrot.slane %v1419, 4
      %v1422 = vshll.u32 %v1349, 16
      %v1424 = vrot.slane %v1422, 5
      %v1425 = vsel %vm497, %v1420, %v1424
      %v1427 = vshrl.u32 %v1350, 16
      %v1429 = vrot.slane %v1427, 4
      %v1430 = vshll.u32 %v1350, 16
      %v1432 = vrot.slane %v1430, 5
      %v1433 = vor.u32 %v1429, %v1432
      %v1434 = vrot.slane %v1433, 4
      %v1436 = vshll.u32 %v1351, 16
      %v1438 = vrot.slane %v1436, 5
      %v1439 = vsel %vm497, %v1434, %v1438
      %v1441 = vshrl.u32 %v1352, 16
      %v1443 = vrot.slane %v1441, 4
      %v1444 = vshll.u32 %v1352, 16
      %v1446 = vrot.slane %v1444, 5
      %v1447 = vor.u32 %v1443, %v1446
      %v1448 = vrot.slane %v1447, 4
      %v1450 = vshll.u32 %v1353, 16
      %v1452 = vrot.slane %v1450, 5
      %v1453 = vsel %vm497, %v1448, %v1452
      %v1455 = vshrl.u32 %v1354, 16
      %v1457 = vrot.slane %v1455, 4
      %v1458 = vshll.u32 %v1354, 16
      %v1460 = vrot.slane %v1458, 5
      %v1461 = vor.u32 %v1457, %v1460
      %v1462 = vrot.slane %v1461, 4
      %v1464 = vshll.u32 %v1355, 16
      %v1466 = vrot.slane %v1464, 5
      %v1467 = vsel %vm497, %v1462, %v1466
      %s1468 = scalar_lea.vmem %s1, 14
      %v1469 = vld [vmem:[%s1468] sm:$0x3]
      %v1470 = vunpack.c.l.b16 %v1369
      %v1471 = vunpack.c.l.b16 %v1383
      %v1472 = vunpack.c.l.b16 %v1397
      %v1473 = vunpack.c.l.b16 %v1411
      %v1474 = vunpack.c.l.b16 %v1425
      %v1475 = vunpack.c.l.b16 %v1439
      %v1476 = vunpack.c.l.b16 %v1453
      %v1477 = vunpack.c.l.b16 %v1467
      %v1478 = vpack.c.b16 %v1471, %v1470
      %v1479 = vpack.c.b16 %v1473, %v1472
      %v1480 = vpack.c.b16 %v1475, %v1474
      %v1481 = vpack.c.b16 %v1477, %v1476
      %v1483 = vsel %vm624, %v1478, 0
      %v1486 = vsel %vm624, %v1479, 0
      %v1489 = vsel %vm624, %v1480, 0
      %v1492 = vsel %vm624, %v1481, 0
      %v1495 = vsel %vm637, %v1469, 0
      %1497 = vmatpush.bf16.msra.mxu0 0
      %1498 = vmatpush.bf16.msra.mxu0 0
      %1499 = vmatpush.bf16.msra.mxu0 0
      %1500 = vmatpush.bf16.msra.mxu0 0
      %1501 = vmatpush.bf16.msra.mxu0 0
      %1502 = vmatpush.bf16.msra.mxu0 0
      %1503 = vmatpush.bf16.msra.mxu0 0
      %1504 = vmatpush.bf16.msra.mxu0 %v1495
      %1505 = vmatmul.bf16.gmra.mxu0 %v1483
      %v1506 = vpop.f32.mrf.mxu0
      %v1507 = vadd.f32 0.0, %v1506
      %v1508 = vpop.f32.mrf.mxu0
      %v1509 = vadd.f32 0.0, %v1508
      %1510 = vmatmul.bf16.gmra.mxu0 %v1486
      %v1511 = vpop.f32.mrf.mxu0
      %v1512 = vadd.f32 0.0, %v1511
      %v1513 = vpop.f32.mrf.mxu0
      %v1514 = vadd.f32 0.0, %v1513
      %1515 = vmatmul.bf16.gmra.mxu0 %v1489
      %v1516 = vpop.f32.mrf.mxu0
      %v1517 = vadd.f32 0.0, %v1516
      %v1518 = vpop.f32.mrf.mxu0
      %v1519 = vadd.f32 0.0, %v1518
      %1520 = vmatmul.bf16.gmra.mxu0 %v1492
      %v1521 = vpop.f32.mrf.mxu0
      %v1522 = vadd.f32 0.0, %v1521
      %v1523 = vpop.f32.mrf.mxu0
      %v1524 = vadd.f32 0.0, %v1523
      %1525 = vdwg.mxu0
      %v1526 = vadd.f32 %v1332, %v1507
      %v1527 = vadd.f32 %v1333, %v1509
      %v1528 = vadd.f32 %v1334, %v1512
      %v1529 = vadd.f32 %v1335, %v1514
      %v1530 = vadd.f32 %v1336, %v1517
      %v1531 = vadd.f32 %v1337, %v1519
      %v1532 = vadd.f32 %v1338, %v1522
      %v1533 = vadd.f32 %v1339, %v1524
      %v1534 = vld [vmem:[%s1257] sm:$0xe]
      %v1535 = vld [vmem:[%s1257 + $0x8] sm:$0xe]
      %v1536 = vld [vmem:[%s1257 + $0x10] sm:$0xe]
      %v1537 = vld [vmem:[%s1257 + $0x18] sm:$0xe]
      %v1538 = vld [vmem:[%s1257 + $0x20] sm:$0xe]
      %v1539 = vld [vmem:[%s1257 + $0x28] sm:$0xe]
      %v1540 = vld [vmem:[%s1257 + $0x30] sm:$0xe]
      %v1541 = vld [vmem:[%s1257 + $0x38] sm:$0xe]
      %v1558 = vrot.slane %v1534, 5
      %v1559 = vrot.slane %v1558, 4
      %v1560 = vrot.slane %v1341, 5
      %v1561 = vsel %vm760, %v1559, %v1560
      %v1562 = vrot.slane %v1535, 5
      %v1563 = vrot.slane %v1562, 4
      %v1564 = vrot.slane %v1343, 5
      %v1565 = vsel %vm760, %v1563, %v1564
      %v1566 = vrot.slane %v1536, 5
      %v1567 = vrot.slane %v1566, 4
      %v1568 = vrot.slane %v1345, 5
      %v1569 = vsel %vm760, %v1567, %v1568
      %v1570 = vrot.slane %v1537, 5
      %v1571 = vrot.slane %v1570, 4
      %v1572 = vrot.slane %v1347, 5
      %v1573 = vsel %vm760, %v1571, %v1572
      %v1574 = vrot.slane %v1538, 5
      %v1575 = vrot.slane %v1574, 4
      %v1576 = vrot.slane %v1349, 5
      %v1577 = vsel %vm760, %v1575, %v1576
      %v1578 = vrot.slane %v1539, 5
      %v1579 = vrot.slane %v1578, 4
      %v1580 = vrot.slane %v1351, 5
      %v1581 = vsel %vm760, %v1579, %v1580
      %v1582 = vrot.slane %v1540, 5
      %v1583 = vrot.slane %v1582, 4
      %v1584 = vrot.slane %v1353, 5
      %v1585 = vsel %vm760, %v1583, %v1584
      %v1586 = vrot.slane %v1541, 5
      %v1587 = vrot.slane %v1586, 4
      %v1588 = vrot.slane %v1355, 5
      %v1589 = vsel %vm760, %v1587, %v1588
      %s1590 = scalar_lea.vmem %s1, 16
      %v1591 = vld [vmem:[%s1590] sm:$0x3]
      %v1592 = vunpack.c.l.b16 %v1561
      %v1593 = vunpack.c.l.b16 %v1565
      %v1594 = vunpack.c.l.b16 %v1569
      %v1595 = vunpack.c.l.b16 %v1573
      %v1596 = vunpack.c.l.b16 %v1577
      %v1597 = vunpack.c.l.b16 %v1581
      %v1598 = vunpack.c.l.b16 %v1585
      %v1599 = vunpack.c.l.b16 %v1589
      %v1600 = vpack.c.b16 %v1593, %v1592
      %v1601 = vpack.c.b16 %v1595, %v1594
      %v1602 = vpack.c.b16 %v1597, %v1596
      %v1603 = vpack.c.b16 %v1599, %v1598
      %v1605 = vsel %vm624, %v1600, 0
      %v1608 = vsel %vm624, %v1601, 0
      %v1611 = vsel %vm624, %v1602, 0
      %v1614 = vsel %vm624, %v1603, 0
      %v1617 = vsel %vm637, %v1591, 0
      %1619 = vmatpush.bf16.msra.mxu0 0
      %1620 = vmatpush.bf16.msra.mxu0 0
      %1621 = vmatpush.bf16.msra.mxu0 0
      %1622 = vmatpush.bf16.msra.mxu0 0
      %1623 = vmatpush.bf16.msra.mxu0 0
      %1624 = vmatpush.bf16.msra.mxu0 0
      %1625 = vmatpush.bf16.msra.mxu0 0
      %1626 = vmatpush.bf16.msra.mxu0 %v1617
      %1627 = vmatmul.bf16.gmra.mxu0 %v1605
      %v1628 = vpop.f32.mrf.mxu0
      %v1629 = vadd.f32 0.0, %v1628
      %v1630 = vpop.f32.mrf.mxu0
      %v1631 = vadd.f32 0.0, %v1630
      %1632 = vmatmul.bf16.gmra.mxu0 %v1608
      %v1633 = vpop.f32.mrf.mxu0
      %v1634 = vadd.f32 0.0, %v1633
      %v1635 = vpop.f32.mrf.mxu0
      %v1636 = vadd.f32 0.0, %v1635
      %1637 = vmatmul.bf16.gmra.mxu0 %v1611
      %v1638 = vpop.f32.mrf.mxu0
      %v1639 = vadd.f32 0.0, %v1638
      %v1640 = vpop.f32.mrf.mxu0
      %v1641 = vadd.f32 0.0, %v1640
      %1642 = vmatmul.bf16.gmra.mxu0 %v1614
      %v1643 = vpop.f32.mrf.mxu0
      %v1644 = vadd.f32 0.0, %v1643
      %v1645 = vpop.f32.mrf.mxu0
      %v1646 = vadd.f32 0.0, %v1645
      %1647 = vdwg.mxu0
      %v1648 = vadd.f32 %v1526, %v1629
      %v1649 = vadd.f32 %v1527, %v1631
      %v1650 = vadd.f32 %v1528, %v1634
      %v1651 = vadd.f32 %v1529, %v1636
      %v1652 = vadd.f32 %v1530, %v1639
      %v1653 = vadd.f32 %v1531, %v1641
      %v1654 = vadd.f32 %v1532, %v1644
      %v1655 = vadd.f32 %v1533, %v1646
      %v1656 = vadd.f32 %v1648, %v1649
      %v1657 = vadd.f32 %v1656, %v1650
      %v1658 = vadd.f32 %v1657, %v1651
      %v1659 = vadd.f32 %v1658, %v1652
      %v1660 = vadd.f32 %v1659, %v1653
      %v1661 = vadd.f32 %v1660, %v1654
      %v1662 = vadd.f32 %v1661, %v1655
      %v1663 = vrot.slane %v1662, 4
      %v1664 = vadd.f32 %v1662, %v1663
      %v1665 = vrot.slane %v1664, 2
      %v1666 = vadd.f32 %v1664, %v1665
      %v1667 = vrot.slane %v1666, 1
      %v1668 = vadd.f32 %v1666, %v1667
      %1669 = vst [vmem:[%s181] sm:$0x1] %v1668
      %v1670 = vmul.f32 %v1648, %v1648
      %v1671 = vmul.f32 %v1649, %v1649
      %v1672 = vmul.f32 %v1650, %v1650
      %v1673 = vmul.f32 %v1651, %v1651
      %v1674 = vmul.f32 %v1652, %v1652
      %v1675 = vmul.f32 %v1653, %v1653
      %v1676 = vmul.f32 %v1654, %v1654
      %v1677 = vmul.f32 %v1655, %v1655
      %v1678 = vadd.f32 %v1670, %v1671
      %v1679 = vadd.f32 %v1678, %v1672
      %v1680 = vadd.f32 %v1679, %v1673
      %v1681 = vadd.f32 %v1680, %v1674
      %v1682 = vadd.f32 %v1681, %v1675
      %v1683 = vadd.f32 %v1682, %v1676
      %v1684 = vadd.f32 %v1683, %v1677
      %v1685 = vrot.slane %v1684, 4
      %v1686 = vadd.f32 %v1684, %v1685
      %v1687 = vrot.slane %v1686, 2
      %v1688 = vadd.f32 %v1686, %v1687
      %v1689 = vrot.slane %v1688, 1
      %v1690 = vadd.f32 %v1688, %v1689
      %1691 = vst [vmem:[%s181 + $0x1] sm:$0x1] %v1690
      %v1692 = vpack.c.bf16 %v1648, %v1648
      %v1693 = vpack.c.bf16 %v1649, %v1649
      %v1694 = vpack.c.bf16 %v1650, %v1650
      %v1695 = vpack.c.bf16 %v1651, %v1651
      %v1696 = vpack.c.bf16 %v1652, %v1652
      %v1697 = vpack.c.bf16 %v1653, %v1653
      %v1698 = vpack.c.bf16 %v1654, %v1654
      %v1699 = vpack.c.bf16 %v1655, %v1655
      %1700 = vst [vmem:[%s177] sm:$0xf] %v1692
      %1701 = vst [vmem:[%s177 + $0x4] sm:$0xf] %v1693
      %1702 = vst [vmem:[%s177 + $0x8] sm:$0xf] %v1694
      %1703 = vst [vmem:[%s177 + $0xc] sm:$0xf] %v1695
      %1704 = vst [vmem:[%s177 + $0x10] sm:$0xf] %v1696
      %1705 = vst [vmem:[%s177 + $0x14] sm:$0xf] %v1697
      %1706 = vst [vmem:[%s177 + $0x18] sm:$0xf] %v1698
      %1707 = vst [vmem:[%s177 + $0x1c] sm:$0xf] %v1699
      %p1708 = scmp.lt.s32.totalorder %s15, 1
      %s1709 = scalar_select %p1708, %s15, 1
      %s1710 = smul.addr %s1709, 8
      %s1711 = smul.addr %s1710, 4
      %s1712 = scalar_lea.vmem %s2, %s1711
      %p1713 = scmp.lt.s32.totalorder %s15, 1
      %s1714 = scalar_select %p1713, %s15, 1
      %s1715 = smul.addr %s1714, 2
      %s1716 = scalar_lea.vmem %s3, %s1715
      // Predicated region
      $region29: #{down_forward.3} parent=27 // pred_check
        %p1717 = pneg %p80
      $region30: #{down_forward.3} parent=27 // pred_check_branch
        %1719 = sbr.rel (%p1717) target = $region32
      $region31: #{down_forward.3} parent=27 // pred_region
        _
      $region32: #{down_forward.3} parent=27 // pred_fallthru
        _
      // Predicated region
      $region33: #{down_forward.3} parent=27 // pred_check
        %p1720 = pneg %p106
      $region34: #{down_forward.3} parent=27 // pred_check_branch
        %1722 = sbr.rel (%p1720) target = $region36
      $region35: #{down_forward.3} parent=27 // pred_region
        _
      $region36: #{down_forward.3} parent=27 // pred_fallthru
        _
    $region28: #{down_forward.3} parent=5 // pred_fallthru
      _
    %p1723 = scmp.le.s32.totalorder 2, %s10
    // Predicated region
    $region37: #{down_forward.3} parent=5 // pred_check
      %p1724 = pneg %p1723
    $region38: #{down_forward.3} parent=5 // pred_check_branch
      %1726 = sbr.rel (%p1724) target = $region40
    $region39: #{down_forward.3} parent=5 // pred_region
      %s1727 = ssub.s32 %s10, 2
      // Predicated region
      $region41: #{down_forward.3} parent=39 // pred_check
        %p1728 = pneg %p86
      $region42: #{down_forward.3} parent=39 // pred_check_branch
        %1730 = sbr.rel (%p1728) target = $region44
      $region43: #{down_forward.3} parent=39 // pred_region
        %p1731 = scmp.lt.s32.totalorder %s16, 1
        %s1732 = scalar_select %p1731, %s16, 1
        %s1733 = smul.addr %s1732, 8
        %s1734 = smul.addr %s1733, 4
        %s1735 = scalar_lea.vmem %s2, %s1734
      $region44: #{down_forward.3} parent=39 // pred_fallthru
        _
      // Predicated region
      $region45: #{down_forward.3} parent=39 // pred_check
        %p1736 = pneg %p112
      $region46: #{down_forward.3} parent=39 // pred_check_branch
        %1738 = sbr.rel (%p1736) target = $region48
      $region47: #{down_forward.3} parent=39 // pred_region
        %p1739 = scmp.lt.s32.totalorder %s16, 1
        %s1740 = scalar_select %p1739, %s16, 1
        %s1741 = smul.addr %s1740, 2
        %s1742 = scalar_lea.vmem %s3, %s1741
      $region48: #{down_forward.3} parent=39 // pred_fallthru
        _
    $region40: #{down_forward.3} parent=5 // pred_fallthru
      _
  $region6: #{down_forward.3} parent=0 // loop_footer
    %s14 = sadd.s32 1, %s10
  $region7: #{down_forward.3} parent=0 // loop_footer_branch
    %9 = sbr.rel target = $region3
  $region8: #{down_forward.3} parent=0 // loop_exit
    _

// kernel: down_forward.4
$region0: #{down_forward.4}
  #allocation0 [shape = 'u32[]', space=smem, size = 0x4, offset = 0x4, fixed_abs, tag = 'smem constant byte address 0x4 - core index']
  #allocation1 [shape = 'u32[72,128]{1,0:T(1,128)}', space=vmem, size = 0x9000, scoped, tag = 'internal scratch']
  #allocation2 [shape = 'bf16[10,10,128]{2,1,0:T(8,128)(2,1)}', space=vmem, size = 0xa000, scoped, tag = 'scratch operand']
  %s0 = inlined_call_operand.vmem [shape: bf16[2,64,128], index: 0, kind: input, shape index: {}]
  %s1 = inlined_call_operand.vmem [shape: bf16[9,128,128], index: 1, kind: input, shape index: {}]
  %s2 = inlined_call_operand.vmem [shape: f32[1,128], index: 2, kind: input, shape index: {}]
  %s3 = inlined_call_operand.vmem [shape: f32[1,128], index: 3, kind: input, shape index: {}]
  %s4 = inlined_call_operand.vmem [shape: bf16[2,64,128], index: 4, kind: output, shape index: {0}]
  %s5 = inlined_call_operand.vmem [shape: f32[2,2,128], index: 5, kind: output, shape index: {1}]
  %6 = xla_tuple %s4, %s5
  %s7 = sld [smem:[#allocation0]]
  $region57: #{down_forward.4} parent=0
    _
  %s9 = ssub.s32 1, %s7
  %s10 = scalar_select 0, %s9, %s7
  loop: start=0, step=1, limit=4
  $region2: #{down_forward.4} parent=0 // loop_pre_header
    _
  $region3: #{down_forward.4} parent=0 // loop_header
    %s12 = sphi 0, %s16
    %p13 = scmp.ge.s32.totalorder %s12, 4
    %s22 = sphi 0, %s24
    %s25 = sphi 0, %s22
    %s26 = sphi 0, %s25
    %s42 = sphi 0, %s26
    %s46 = sphi 0, %s46
    %s48 = sphi 0, %s46
    %s49 = sphi 0, %s48
    %s63 = sphi 0, %s49
    %s67 = sphi 0, %s67
    %s69 = sphi 0, %s67
    %s70 = sphi 0, %s69
    %s84 = sphi 0, %s70
    %s88 = sphi 0, %s88
    %s90 = sphi 0, %s88
    %s91 = sphi 0, %s90
    %s105 = sphi 0, %s91
    %s111 = sphi 0, %s113
    %s114 = sphi 0, %s111
    %s115 = sphi 0, %s114
    %s131 = sphi 0, %s115
    %s137 = sphi 0, %s139
    %s140 = sphi 0, %s137
    %s141 = sphi 0, %s140
    %s157 = sphi 0, %s141
  $region4: #{down_forward.4} parent=0 // loop_header_branch
    %15 = sbr.rel (%p13) target = $region8
  $region5: #{down_forward.4} parent=0 // loop_body
    %s17 = ssub.s32 %s12, 1
    %s18 = ssub.s32 %s12, 2
    %s19 = sadd.s32 %s12, 1
    %s20 = ssub.s32 %s12, %s19
    %p21 = scmp.eq.s32.totalorder %s20, 0
    %s23 = sadd.s32 %s22, 1
    %s24 = scalar_select %p21, %s22, %s23
    %p27 = pneg %p21
    %p28 = scmp.eq.s32.totalorder %s12, 1
    %p29 = por %p27, %p28
    %p30 = scmp.ne.s32.totalorder %s22, %s25
    %p31 = scmp.eq.s32.totalorder %s12, 0
    %p32 = por %p30, %p31
    %p33 = scmp.ne.s32.totalorder %s22, %s25
    %p34 = scmp.eq.s32.totalorder %s17, 1
    %p35 = por %p33, %p34
    %p36 = scmp.ne.s32.totalorder %s25, %s26
    %p37 = scmp.eq.s32.totalorder %s17, 0
    %p38 = por %p36, %p37
    %p39 = scmp.ne.s32.totalorder %s25, %s26
    %p40 = scmp.eq.s32.totalorder %s18, 1
    %p41 = por %p39, %p40
    %p43 = scmp.ne.s32.totalorder %s26, %s42
    %p44 = scmp.eq.s32.totalorder %s18, 0
    %p45 = por %p43, %p44
    %s47 = sadd.s32 %s46, 1
    %p50 = scmp.eq.s32.totalorder %s12, 1
    %p51 = scmp.ne.s32.totalorder %s46, %s48
    %p52 = scmp.eq.s32.totalorder %s12, 0
    %p53 = por %p51, %p52
    %p54 = scmp.ne.s32.totalorder %s46, %s48
    %p55 = scmp.eq.s32.totalorder %s17, 1
    %p56 = por %p54, %p55
    %p57 = scmp.ne.s32.totalorder %s48, %s49
    %p58 = scmp.eq.s32.totalorder %s17, 0
    %p59 = por %p57, %p58
    %p60 = scmp.ne.s32.totalorder %s48, %s49
    %p61 = scmp.eq.s32.totalorder %s18, 1
    %p62 = por %p60, %p61
    %p64 = scmp.ne.s32.totalorder %s49, %s63
    %p65 = scmp.eq.s32.totalorder %s18, 0
    %p66 = por %p64, %p65
    %s68 = sadd.s32 %s67, 1
    %p71 = scmp.eq.s32.totalorder %s12, 1
    %p72 = scmp.ne.s32.totalorder %s67, %s69
    %p73 = scmp.eq.s32.totalorder %s12, 0
    %p74 = por %p72, %p73
    %p75 = scmp.ne.s32.totalorder %s67, %s69
    %p76 = scmp.eq.s32.totalorder %s17, 1
    %p77 = por %p75, %p76
    %p78 = scmp.ne.s32.totalorder %s69, %s70
    %p79 = scmp.eq.s32.totalorder %s17, 0
    %p80 = por %p78, %p79
    %p81 = scmp.ne.s32.totalorder %s69, %s70
    %p82 = scmp.eq.s32.totalorder %s18, 1
    %p83 = por %p81, %p82
    %p85 = scmp.ne.s32.totalorder %s70, %s84
    %p86 = scmp.eq.s32.totalorder %s18, 0
    %p87 = por %p85, %p86
    %s89 = sadd.s32 %s88, 1
    %p92 = scmp.eq.s32.totalorder %s12, 1
    %p93 = scmp.ne.s32.totalorder %s88, %s90
    %p94 = scmp.eq.s32.totalorder %s12, 0
    %p95 = por %p93, %p94
    %p96 = scmp.ne.s32.totalorder %s88, %s90
    %p97 = scmp.eq.s32.totalorder %s17, 1
    %p98 = por %p96, %p97
    %p99 = scmp.ne.s32.totalorder %s90, %s91
    %p100 = scmp.eq.s32.totalorder %s17, 0
    %p101 = por %p99, %p100
    %p102 = scmp.ne.s32.totalorder %s90, %s91
    %p103 = scmp.eq.s32.totalorder %s18, 1
    %p104 = por %p102, %p103
    %p106 = scmp.ne.s32.totalorder %s91, %s105
    %p107 = scmp.eq.s32.totalorder %s18, 0
    %p108 = por %p106, %p107
    %s109 = ssub.s32 %s12, %s19
    %p110 = scmp.eq.s32.totalorder %s109, 0
    %s112 = sadd.s32 %s111, 1
    %s113 = scalar_select %p110, %s111, %s112
    %p116 = pneg %p110
    %p117 = scmp.eq.s32.totalorder %s12, 1
    %p118 = por %p116, %p117
    %p119 = scmp.ne.s32.totalorder %s111, %s114
    %p120 = scmp.eq.s32.totalorder %s12, 0
    %p121 = por %p119, %p120
    %p122 = scmp.ne.s32.totalorder %s111, %s114
    %p123 = scmp.eq.s32.totalorder %s17, 1
    %p124 = por %p122, %p123
    %p125 = scmp.ne.s32.totalorder %s114, %s115
    %p126 = scmp.eq.s32.totalorder %s17, 0
    %p127 = por %p125, %p126
    %p128 = scmp.ne.s32.totalorder %s114, %s115
    %p129 = scmp.eq.s32.totalorder %s18, 1
    %p130 = por %p128, %p129
    %p132 = scmp.ne.s32.totalorder %s115, %s131
    %p133 = scmp.eq.s32.totalorder %s18, 0
    %p134 = por %p132, %p133
    %s135 = ssub.s32 %s12, %s19
    %p136 = scmp.eq.s32.totalorder %s135, 0
    %s138 = sadd.s32 %s137, 1
    %s139 = scalar_select %p136, %s137, %s138
    %p142 = pneg %p136
    %p143 = scmp.eq.s32.totalorder %s12, 1
    %p144 = por %p142, %p143
    %p145 = scmp.ne.s32.totalorder %s137, %s140
    %p146 = scmp.eq.s32.totalorder %s12, 0
    %p147 = por %p145, %p146
    %p148 = scmp.ne.s32.totalorder %s137, %s140
    %p149 = scmp.eq.s32.totalorder %s17, 1
    %p150 = por %p148, %p149
    %p151 = scmp.ne.s32.totalorder %s140, %s141
    %p152 = scmp.eq.s32.totalorder %s17, 0
    %p153 = por %p151, %p152
    %p154 = scmp.ne.s32.totalorder %s140, %s141
    %p155 = scmp.eq.s32.totalorder %s18, 1
    %p156 = por %p154, %p155
    %p158 = scmp.ne.s32.totalorder %s141, %s157
    %p159 = scmp.eq.s32.totalorder %s18, 0
    %p160 = por %p158, %p159
    %p161 = scmp.le.s32.totalorder 1, %s12
    %p162 = scmp.lt.s32.totalorder %s12, 3
    %p163 = pnand %p161, %p162
    %p164 = pneg %p163
    // Predicated region
    $region9: #{down_forward.4} parent=5 // pred_check
      _
    $region10: #{down_forward.4} parent=5 // pred_check_branch
      %166 = sbr.rel (%p163) target = $region12
    $region11: #{down_forward.4} parent=5 // pred_region
      %s167 = ssub.s32 %s12, 1
      // Predicated region
      $region13: #{down_forward.4} parent=11 // pred_check
        %p168 = pneg %p59
      $region14: #{down_forward.4} parent=11 // pred_check_branch
        %170 = sbr.rel (%p168) target = $region16
      $region15: #{down_forward.4} parent=11 // pred_region
        _
      $region16: #{down_forward.4} parent=11 // pred_fallthru
        _
      // Predicated region
      $region17: #{down_forward.4} parent=11 // pred_check
        %p171 = pneg %p80
      $region18: #{down_forward.4} parent=11 // pred_check_branch
        %173 = sbr.rel (%p171) target = $region20
      $region19: #{down_forward.4} parent=11 // pred_region
        _
      $region20: #{down_forward.4} parent=11 // pred_fallthru
        _
      // Predicated region
      $region21: #{down_forward.4} parent=11 // pred_check
        %p174 = pneg %p101
      $region22: #{down_forward.4} parent=11 // pred_check_branch
        %176 = sbr.rel (%p174) target = $region24
      $region23: #{down_forward.4} parent=11 // pred_region
        _
      $region24: #{down_forward.4} parent=11 // pred_fallthru
        _
    $region12: #{down_forward.4} parent=5 // pred_fallthru
      _
    %p177 = scmp.lt.s32.totalorder %s12, 2
    // Predicated region
    $region25: #{down_forward.4} parent=5 // pred_check
      %p178 = pneg %p177
    $region26: #{down_forward.4} parent=5 // pred_check_branch
      %180 = sbr.rel (%p178) target = $region28
    $region27: #{down_forward.4} parent=5 // pred_region
      // Predicated region
      $region29: #{down_forward.4} parent=27 // pred_check
        %p181 = pneg %p32
      $region30: #{down_forward.4} parent=27 // pred_check_branch
        %183 = sbr.rel (%p181) target = $region32
      $region31: #{down_forward.4} parent=27 // pred_region
        %p184 = scmp.lt.s32.totalorder %s12, 1
        %s185 = scalar_select %p184, %s12, 1
        %s186 = smul.addr %s185, 8
        %s187 = smul.addr %s186, 4
        %s188 = scalar_lea.vmem %s0, %s187
      $region32: #{down_forward.4} parent=27 // pred_fallthru
        _
    $region28: #{down_forward.4} parent=5 // pred_fallthru
      _
    %p189 = scmp.le.s32.totalorder 1, %s12
    %p190 = scmp.lt.s32.totalorder %s12, 3
    %p191 = pnand %p189, %p190
    %p192 = pneg %p191
    // Predicated region
    $region33: #{down_forward.4} parent=5 // pred_check
      _
    $region34: #{down_forward.4} parent=5 // pred_check_branch
      %194 = sbr.rel (%p191) target = $region36
    $region35: #{down_forward.4} parent=5 // pred_region
      %s195 = ssub.s32 %s12, 1
      %p196 = scmp.lt.s32.totalorder %s17, 1
      %s197 = scalar_select %p196, %s17, 1
      %s198 = smul.addr %s197, 8
      %s199 = smul.addr %s198, 4
      %s200 = scalar_lea.vmem %s0, %s199
      %p201 = pneg %p38
      %p202 = pneg %p35
      %p203 = pneg %p59
      %p204 = pneg %p56
      %p205 = pneg %p80
      %p206 = pneg %p77
      %p207 = pneg %p101
      %p208 = pneg %p98
      %p209 = pneg %p127
      %p210 = pneg %p124
      %p211 = scmp.lt.s32.totalorder %s17, 1
      %s212 = scalar_select %p211, %s17, 1
      %s213 = smul.addr %s212, 8
      %s214 = smul.addr %s213, 4
      %s215 = scalar_lea.vmem %s4, %s214
      %p216 = pneg %p153
      %p217 = pneg %p150
      %p218 = scmp.lt.s32.totalorder %s17, 1
      %s219 = scalar_select %p218, %s17, 1
      %s220 = smul.addr %s219, 2
      %s221 = scalar_lea.vmem %s5, %s220
      %p222 = scmp.lt.s32.totalorder %s17, 1
      %s223 = scalar_select %p222, %s17, 1
      %s224 = smul.addr %s223, 8
      %s225 = smul.addr %s224, 4
      %s226 = scalar_lea.vmem %s0, %s225
      %p227 = scmp.lt.s32.totalorder %s17, 1
      %s228 = scalar_select %p227, %s17, 1
      %s229 = smul.addr %s228, 8
      %s230 = smul.addr %s229, 4
      %s231 = scalar_lea.vmem %s4, %s230
      %p232 = scmp.lt.s32.totalorder %s17, 1
      %s233 = scalar_select %p232, %s17, 1
      %s234 = smul.addr %s233, 2
      %s235 = scalar_lea.vmem %s5, %s234
      %v237 = vld [vmem:[%s226] sm:$0xf]
      %v238 = vld [vmem:[%s226 + $0x4] sm:$0xf]
      %v239 = vld [vmem:[%s226 + $0x8] sm:$0xf]
      %v240 = vld [vmem:[%s226 + $0xc] sm:$0xf]
      %v241 = vld [vmem:[%s226 + $0x10] sm:$0xf]
      %v242 = vld [vmem:[%s226 + $0x14] sm:$0xf]
      %v243 = vld [vmem:[%s226 + $0x18] sm:$0xf]
      %v244 = vld [vmem:[%s226 + $0x1c] sm:$0xf]
      %v245 = vunpack.c.l.bf16 %v237
      %v246 = vunpack.c.l.bf16 %v238
      %v247 = vunpack.c.l.bf16 %v239
      %v248 = vunpack.c.l.bf16 %v240
      %v249 = vunpack.c.l.bf16 %v241
      %v250 = vunpack.c.l.bf16 %v242
      %v251 = vunpack.c.l.bf16 %v243
      %v252 = vunpack.c.l.bf16 %v244
      %v253 = vld [vmem:[%s2] sm:$0x1]
      %v255 = vperm.slane %v253, 0
      %v257 = vmul.f32 %v245, %v255
      %v258 = vmul.f32 %v246, %v255
      %v259 = vmul.f32 %v247, %v255
      %v260 = vmul.f32 %v248, %v255
      %v261 = vmul.f32 %v249, %v255
      %v262 = vmul.f32 %v250, %v255
      %v263 = vmul.f32 %v251, %v255
      %v264 = vmul.f32 %v252, %v255
      %v265 = vld [vmem:[%s3] sm:$0x1]
      %v267 = vperm.slane %v265, 0
      %v269 = vadd.f32 %v257, %v267
      %v270 = vadd.f32 %v258, %v267
      %v271 = vadd.f32 %v259, %v267
      %v272 = vadd.f32 %v260, %v267
      %v273 = vadd.f32 %v261, %v267
      %v274 = vadd.f32 %v262, %v267
      %v275 = vadd.f32 %v263, %v267
      %v276 = vadd.f32 %v264, %v267
      %v277 = vmax.f32 %v269, 0.0
      %v278 = vmax.f32 %v270, 0.0
      %v279 = vmax.f32 %v271, 0.0
      %v280 = vmax.f32 %v272, 0.0
      %v281 = vmax.f32 %v273, 0.0
      %v282 = vmax.f32 %v274, 0.0
      %v283 = vmax.f32 %v275, 0.0
      %v284 = vmax.f32 %v276, 0.0
      %v285 = vpack.c.bf16 %v277, %v277
      %v286 = vpack.c.bf16 %v278, %v278
      %v287 = vpack.c.bf16 %v279, %v279
      %v288 = vpack.c.bf16 %v280, %v280
      %v289 = vpack.c.bf16 %v281, %v281
      %v290 = vpack.c.bf16 %v282, %v282
      %v291 = vpack.c.bf16 %v283, %v283
      %v292 = vpack.c.bf16 %v284, %v284
      %293 = vst [vmem:[#allocation2] sm:$0xf] 0
      %294 = vst [vmem:[#allocation2 + $0x4] sm:$0x1] 0
      %s295 = scalar_lea.vmem [#allocation2], 72
      %296 = vst [vmem:[%s295] sm:$0xf] 0
      %297 = vst [vmem:[%s295 + $0x4] sm:$0x1] 0
      %s298 = scalar_lea.vmem [#allocation2], 8
      %vm299 = vcmask 1040384
      %vm300 = vsmask.f32 256
      %vm301 = vmand %vm299, %vm300
      %v302 = vld [vmem:[%s298] sm:$0x1]
      %v303 = vsel %vm301, 0, %v302
      %304 = vst [vmem:[%s298] sm:$0x1] %v303
      %v305 = vld [vmem:[%s298 + $0x8] sm:$0x1]
      %v306 = vsel %vm301, 0, %v305
      %307 = vst [vmem:[%s298 + $0x8] sm:$0x1] %v306
      %v308 = vld [vmem:[%s298 + $0x10] sm:$0x1]
      %v309 = vsel %vm301, 0, %v308
      %310 = vst [vmem:[%s298 + $0x10] sm:$0x1] %v309
      %v311 = vld [vmem:[%s298 + $0x18] sm:$0x1]
      %v312 = vsel %vm301, 0, %v311
      %313 = vst [vmem:[%s298 + $0x18] sm:$0x1] %v312
      %v314 = vld [vmem:[%s298 + $0x20] sm:$0x1]
      %v315 = vsel %vm301, 0, %v314
      %316 = vst [vmem:[%s298 + $0x20] sm:$0x1] %v315
      %v317 = vld [vmem:[%s298 + $0x28] sm:$0x1]
      %v318 = vsel %vm301, 0, %v317
      %319 = vst [vmem:[%s298 + $0x28] sm:$0x1] %v318
      %v320 = vld [vmem:[%s298 + $0x30] sm:$0x1]
      %v321 = vsel %vm301, 0, %v320
      %322 = vst [vmem:[%s298 + $0x30] sm:$0x1] %v321
      %v323 = vld [vmem:[%s298 + $0x38] sm:$0x1]
      %v324 = vsel %vm301, 0, %v323
      %325 = vst [vmem:[%s298 + $0x38] sm:$0x1] %v324
      %vm326 = vsmask.f32 7938
      %vm327 = vmand %vm299, %vm326
      %v328 = vld [vmem:[%s298 + $0x4] sm:$0x1]
      %v329 = vsel %vm327, 0, %v328
      %330 = vst [vmem:[%s298 + $0x4] sm:$0x1] %v329
      %v331 = vld [vmem:[%s298 + $0xc] sm:$0x1]
      %v332 = vsel %vm327, 0, %v331
      %333 = vst [vmem:[%s298 + $0xc] sm:$0x1] %v332
      %v334 = vld [vmem:[%s298 + $0x14] sm:$0x1]
      %v335 = vsel %vm327, 0, %v334
      %336 = vst [vmem:[%s298 + $0x14] sm:$0x1] %v335
      %v337 = vld [vmem:[%s298 + $0x1c] sm:$0x1]
      %v338 = vsel %vm327, 0, %v337
      %339 = vst [vmem:[%s298 + $0x1c] sm:$0x1] %v338
      %v340 = vld [vmem:[%s298 + $0x24] sm:$0x1]
      %v341 = vsel %vm327, 0, %v340
      %342 = vst [vmem:[%s298 + $0x24] sm:$0x1] %v341
      %v343 = vld [vmem:[%s298 + $0x2c] sm:$0x1]
      %v344 = vsel %vm327, 0, %v343
      %345 = vst [vmem:[%s298 + $0x2c] sm:$0x1] %v344
      %v346 = vld [vmem:[%s298 + $0x34] sm:$0x1]
      %v347 = vsel %vm327, 0, %v346
      %348 = vst [vmem:[%s298 + $0x34] sm:$0x1] %v347
      %v349 = vld [vmem:[%s298 + $0x3c] sm:$0x1]
      %v350 = vsel %vm327, 0, %v349
      %351 = vst [vmem:[%s298 + $0x3c] sm:$0x1] %v350
      %v353 = vshrl.u32 %v285, 16
      %v355 = vrot.slane %v353, 7
      %v356 = vshll.u32 %v285, 16
      %v358 = vor.u32 %v355, %v356
      %v359 = vrot.slane %v355, 4
      %v361 = vshrl.u32 %v286, 16
      %v363 = vrot.slane %v361, 7
      %v364 = vshll.u32 %v286, 16
      %v366 = vor.u32 %v363, %v364
      %v367 = vrot.slane %v363, 4
      %v369 = vshrl.u32 %v287, 16
      %v371 = vrot.slane %v369, 7
      %v372 = vshll.u32 %v287, 16
      %v374 = vor.u32 %v371, %v372
      %v375 = vrot.slane %v371, 4
      %v377 = vshrl.u32 %v288, 16
      %v379 = vrot.slane %v377, 7
      %v380 = vshll.u32 %v288, 16
      %v382 = vor.u32 %v379, %v380
      %v383 = vrot.slane %v379, 4
      %v385 = vshrl.u32 %v289, 16
      %v387 = vrot.slane %v385, 7
      %v388 = vshll.u32 %v289, 16
      %v390 = vor.u32 %v387, %v388
      %v391 = vrot.slane %v387, 4
      %v393 = vshrl.u32 %v290, 16
      %v395 = vrot.slane %v393, 7
      %v396 = vshll.u32 %v290, 16
      %v398 = vor.u32 %v395, %v396
      %v399 = vrot.slane %v395, 4
      %v401 = vshrl.u32 %v291, 16
      %v403 = vrot.slane %v401, 7
      %v404 = vshll.u32 %v291, 16
      %v406 = vor.u32 %v403, %v404
      %v407 = vrot.slane %v403, 4
      %v409 = vshrl.u32 %v292, 16
      %v411 = vrot.slane %v409, 7
      %v412 = vshll.u32 %v292, 16
      %v414 = vor.u32 %v411, %v412
      %v415 = vrot.slane %v411, 4
      %vm432 = vcmask 1043456
      %vm433 = vmand %vm432, %vm326
      %v434 = vld [vmem:[%s298] sm:$0xf]
      %v435 = vsel %vm433, %v358, %v434
      %436 = vst [vmem:[%s298] sm:$0xf] %v435
      %v437 = vld [vmem:[%s298 + $0x4] sm:$0x1]
      %v438 = vsel %vm301, %v359, %v437
      %439 = vst [vmem:[%s298 + $0x4] sm:$0x1] %v438
      %v440 = vld [vmem:[%s298 + $0x8] sm:$0xf]
      %v441 = vsel %vm433, %v366, %v440
      %442 = vst [vmem:[%s298 + $0x8] sm:$0xf] %v441
      %v443 = vld [vmem:[%s298 + $0xc] sm:$0x1]
      %v444 = vsel %vm301, %v367, %v443
      %445 = vst [vmem:[%s298 + $0xc] sm:$0x1] %v444
      %v446 = vld [vmem:[%s298 + $0x10] sm:$0xf]
      %v447 = vsel %vm433, %v374, %v446
      %448 = vst [vmem:[%s298 + $0x10] sm:$0xf] %v447
      %v449 = vld [vmem:[%s298 + $0x14] sm:$0x1]
      %v450 = vsel %vm301, %v375, %v449
      %451 = vst [vmem:[%s298 + $0x14] sm:$0x1] %v450
      %v452 = vld [vmem:[%s298 + $0x18] sm:$0xf]
      %v453 = vsel %vm433, %v382, %v452
      %454 = vst [vmem:[%s298 + $0x18] sm:$0xf] %v453
      %v455 = vld [vmem:[%s298 + $0x1c] sm:$0x1]
      %v456 = vsel %vm301, %v383, %v455
      %457 = vst [vmem:[%s298 + $0x1c] sm:$0x1] %v456
      %v458 = vld [vmem:[%s298 + $0x20] sm:$0xf]
      %v459 = vsel %vm433, %v390, %v458
      %460 = vst [vmem:[%s298 + $0x20] sm:$0xf] %v459
      %v461 = vld [vmem:[%s298 + $0x24] sm:$0x1]
      %v462 = vsel %vm301, %v391, %v461
      %463 = vst [vmem:[%s298 + $0x24] sm:$0x1] %v462
      %v464 = vld [vmem:[%s298 + $0x28] sm:$0xf]
      %v465 = vsel %vm433, %v398, %v464
      %466 = vst [vmem:[%s298 + $0x28] sm:$0xf] %v465
      %v467 = vld [vmem:[%s298 + $0x2c] sm:$0x1]
      %v468 = vsel %vm301, %v399, %v467
      %469 = vst [vmem:[%s298 + $0x2c] sm:$0x1] %v468
      %v470 = vld [vmem:[%s298 + $0x30] sm:$0xf]
      %v471 = vsel %vm433, %v406, %v470
      %472 = vst [vmem:[%s298 + $0x30] sm:$0xf] %v471
      %v473 = vld [vmem:[%s298 + $0x34] sm:$0x1]
      %v474 = vsel %vm301, %v407, %v473
      %475 = vst [vmem:[%s298 + $0x34] sm:$0x1] %v474
      %v476 = vld [vmem:[%s298 + $0x38] sm:$0xf]
      %v477 = vsel %vm433, %v414, %v476
      %478 = vst [vmem:[%s298 + $0x38] sm:$0xf] %v477
      %v479 = vld [vmem:[%s298 + $0x3c] sm:$0x1]
      %v480 = vsel %vm301, %v415, %v479
      %481 = vst [vmem:[%s298 + $0x3c] sm:$0x1] %v480
      %v482 = vld [vmem:[#allocation2] sm:$0xf]
      %v483 = vld [vmem:[#allocation2 + $0x8] sm:$0xf]
      %v484 = vld [vmem:[#allocation2 + $0x10] sm:$0xf]
      %v485 = vld [vmem:[#allocation2 + $0x18] sm:$0xf]
      %v486 = vld [vmem:[#allocation2 + $0x20] sm:$0xf]
      %v487 = vld [vmem:[#allocation2 + $0x28] sm:$0xf]
      %v488 = vld [vmem:[#allocation2 + $0x30] sm:$0xf]
      %v489 = vld [vmem:[#allocation2 + $0x38] sm:$0xf]
      %v490 = vld [vmem:[%s1] sm:$0xf]
      %v491 = vld [vmem:[%s1 + $0x4] sm:$0xf]
      %v492 = vld [vmem:[%s1 + $0x8] sm:$0xf]
      %v493 = vld [vmem:[%s1 + $0xc] sm:$0xf]
      %v494 = vld [vmem:[%s1 + $0x10] sm:$0xf]
      %v495 = vld [vmem:[%s1 + $0x14] sm:$0xf]
      %v496 = vld [vmem:[%s1 + $0x18] sm:$0xf]
      %v497 = vld [vmem:[%s1 + $0x1c] sm:$0xf]
      %v498 = vld [vmem:[%s1 + $0x20] sm:$0xf]
      %v499 = vld [vmem:[%s1 + $0x24] sm:$0xf]
      %v500 = vld [vmem:[%s1 + $0x28] sm:$0xf]
      %v501 = vld [vmem:[%s1 + $0x2c] sm:$0xf]
      %v502 = vld [vmem:[%s1 + $0x30] sm:$0xf]
      %v503 = vld [vmem:[%s1 + $0x34] sm:$0xf]
      %v504 = vld [vmem:[%s1 + $0x38] sm:$0xf]
      %v505 = vld [vmem:[%s1 + $0x3c] sm:$0xf]
      %v506 = vld [vmem:[#allocation2 + $0x4] sm:$0x1]
      %v507 = vld [vmem:[#allocation2 + $0xc] sm:$0x1]
      %v508 = vld [vmem:[#allocation2 + $0x14] sm:$0x1]
      %v509 = vld [vmem:[#allocation2 + $0x1c] sm:$0x1]
      %v510 = vld [vmem:[#allocation2 + $0x24] sm:$0x1]
      %v511 = vld [vmem:[#allocation2 + $0x2c] sm:$0x1]
      %v512 = vld [vmem:[#allocation2 + $0x34] sm:$0x1]
      %v513 = vld [vmem:[#allocation2 + $0x3c] sm:$0x1]
      %vm514 = vsmask.f32 3328
      %vm515 = vsmask.f32 7440
      %vm516 = vmor %vm514, %vm515
      %v518 = vshrl.u32 %v482, 16
      %v520 = vrot.slane %v518, 4
      %v521 = vshll.u32 %v482, 16
      %v523 = vrot.slane %v521, 5
      %v524 = vor.u32 %v520, %v523
      %v525 = vrot.slane %v524, 4
      %v527 = vshll.u32 %v506, 16
      %v529 = vrot.slane %v527, 5
      %v530 = vsel %vm516, %v525, %v529
      %v532 = vshrl.u32 %v483, 16
      %v534 = vrot.slane %v532, 4
      %v535 = vshll.u32 %v483, 16
      %v537 = vrot.slane %v535, 5
      %v538 = vor.u32 %v534, %v537
      %v539 = vrot.slane %v538, 4
      %v541 = vshll.u32 %v507, 16
      %v543 = vrot.slane %v541, 5
      %v544 = vsel %vm516, %v539, %v543
      %v546 = vshrl.u32 %v484, 16
      %v548 = vrot.slane %v546, 4
      %v549 = vshll.u32 %v484, 16
      %v551 = vrot.slane %v549, 5
      %v552 = vor.u32 %v548, %v551
      %v553 = vrot.slane %v552, 4
      %v555 = vshll.u32 %v508, 16
      %v557 = vrot.slane %v555, 5
      %v558 = vsel %vm516, %v553, %v557
      %v560 = vshrl.u32 %v485, 16
      %v562 = vrot.slane %v560, 4
      %v563 = vshll.u32 %v485, 16
      %v565 = vrot.slane %v563, 5
      %v566 = vor.u32 %v562, %v565
      %v567 = vrot.slane %v566, 4
      %v569 = vshll.u32 %v509, 16
      %v571 = vrot.slane %v569, 5
      %v572 = vsel %vm516, %v567, %v571
      %v574 = vshrl.u32 %v486, 16
      %v576 = vrot.slane %v574, 4
      %v577 = vshll.u32 %v486, 16
      %v579 = vrot.slane %v577, 5
      %v580 = vor.u32 %v576, %v579
      %v581 = vrot.slane %v580, 4
      %v583 = vshll.u32 %v510, 16
      %v585 = vrot.slane %v583, 5
      %v586 = vsel %vm516, %v581, %v585
      %v588 = vshrl.u32 %v487, 16
      %v590 = vrot.slane %v588, 4
      %v591 = vshll.u32 %v487, 16
      %v593 = vrot.slane %v591, 5
      %v594 = vor.u32 %v590, %v593
      %v595 = vrot.slane %v594, 4
      %v597 = vshll.u32 %v511, 16
      %v599 = vrot.slane %v597, 5
      %v600 = vsel %vm516, %v595, %v599
      %v602 = vshrl.u32 %v488, 16
      %v604 = vrot.slane %v602, 4
      %v605 = vshll.u32 %v488, 16
      %v607 = vrot.slane %v605, 5
      %v608 = vor.u32 %v604, %v607
      %v609 = vrot.slane %v608, 4
      %v611 = vshll.u32 %v512, 16
      %v613 = vrot.slane %v611, 5
      %v614 = vsel %vm516, %v609, %v613
      %v616 = vshrl.u32 %v489, 16
      %v618 = vrot.slane %v616, 4
      %v619 = vshll.u32 %v489, 16
      %v621 = vrot.slane %v619, 5
      %v622 = vor.u32 %v618, %v621
      %v623 = vrot.slane %v622, 4
      %v625 = vshll.u32 %v513, 16
      %v627 = vrot.slane %v625, 5
      %v628 = vsel %vm516, %v623, %v627
      %s629 = scalar_lea.vmem %s1, 64
      %v630 = vld [vmem:[%s629] sm:$0xf]
      %v631 = vld [vmem:[%s629 + $0x4] sm:$0xf]
      %v632 = vld [vmem:[%s629 + $0x8] sm:$0xf]
      %v633 = vld [vmem:[%s629 + $0xc] sm:$0xf]
      %v634 = vld [vmem:[%s629 + $0x10] sm:$0xf]
      %v635 = vld [vmem:[%s629 + $0x14] sm:$0xf]
      %v636 = vld [vmem:[%s629 + $0x18] sm:$0xf]
      %v637 = vld [vmem:[%s629 + $0x1c] sm:$0xf]
      %v638 = vld [vmem:[%s629 + $0x20] sm:$0xf]
      %v639 = vld [vmem:[%s629 + $0x24] sm:$0xf]
      %v640 = vld [vmem:[%s629 + $0x28] sm:$0xf]
      %v641 = vld [vmem:[%s629 + $0x2c] sm:$0xf]
      %v642 = vld [vmem:[%s629 + $0x30] sm:$0xf]
      %v643 = vld [vmem:[%s629 + $0x34] sm:$0xf]
      %v644 = vld [vmem:[%s629 + $0x38] sm:$0xf]
      %v645 = vld [vmem:[%s629 + $0x3c] sm:$0xf]
      %v646 = vunpack.c.l.b16 %v530
      %v647 = vunpack.c.l.b16 %v544
      %v648 = vunpack.c.l.b16 %v558
      %v649 = vunpack.c.l.b16 %v572
      %v650 = vunpack.c.l.b16 %v586
      %v651 = vunpack.c.l.b16 %v600
      %v652 = vunpack.c.l.b16 %v614
      %v653 = vunpack.c.l.b16 %v628
      %v654 = vpack.c.b16 %v647, %v646
      %v655 = vpack.c.b16 %v649, %v648
      %v656 = vpack.c.b16 %v651, %v650
      %v657 = vpack.c.b16 %v653, %v652
      %v678 = vunpack.c.l.b16 %v630
      %v679 = vunpack.c.l.b16 %v631
      %v680 = vunpack.c.l.b16 %v632
      %v681 = vunpack.c.l.b16 %v633
      %v682 = vunpack.c.l.b16 %v634
      %v683 = vunpack.c.l.b16 %v635
      %v684 = vunpack.c.l.b16 %v636
      %v685 = vunpack.c.l.b16 %v637
      %v686 = vunpack.c.l.b16 %v638
      %v687 = vunpack.c.l.b16 %v639
      %v688 = vunpack.c.l.b16 %v640
      %v689 = vunpack.c.l.b16 %v641
      %v690 = vunpack.c.l.b16 %v642
      %v691 = vunpack.c.l.b16 %v643
      %v692 = vunpack.c.l.b16 %v644
      %v693 = vunpack.c.l.b16 %v645
      %v694 = vpack.c.b16 %v679, %v678
      %v695 = vpack.c.b16 %v681, %v680
      %v696 = vpack.c.b16 %v683, %v682
      %v697 = vpack.c.b16 %v685, %v684
      %v698 = vpack.c.b16 %v687, %v686
      %v699 = vpack.c.b16 %v689, %v688
      %v700 = vpack.c.b16 %v691, %v690
      %v701 = vpack.c.b16 %v693, %v692
      %710 = vmatpush.bf16.msra.mxu0 %v701
      %711 = vmatpush.bf16.msra.mxu0 %v700
      %712 = vmatpush.bf16.msra.mxu0 %v699
      %713 = vmatpush.bf16.msra.mxu0 %v698
      %714 = vmatpush.bf16.msra.mxu0 %v697
      %715 = vmatpush.bf16.msra.mxu0 %v696
      %716 = vmatpush.bf16.msra.mxu0 %v695
      %717 = vmatpush.bf16.msra.mxu0 %v694
      %718 = vmatmul.bf16.gmra.mxu0 %v654
      %v719 = vpop.f32.mrf.mxu0
      %v720 = vadd.f32 0.0, %v719
      %v721 = vpop.f32.mrf.mxu0
      %v722 = vadd.f32 0.0, %v721
      %723 = vmatmul.bf16.gmra.mxu0 %v655
      %v724 = vpop.f32.mrf.mxu0
      %v725 = vadd.f32 0.0, %v724
      %v726 = vpop.f32.mrf.mxu0
      %v727 = vadd.f32 0.0, %v726
      %728 = vmatmul.bf16.gmra.mxu0 %v656
      %v729 = vpop.f32.mrf.mxu0
      %v730 = vadd.f32 0.0, %v729
      %v731 = vpop.f32.mrf.mxu0
      %v732 = vadd.f32 0.0, %v731
      %733 = vmatmul.bf16.gmra.mxu0 %v657
      %v734 = vpop.f32.mrf.mxu0
      %v735 = vadd.f32 0.0, %v734
      %v736 = vpop.f32.mrf.mxu0
      %v737 = vadd.f32 0.0, %v736
      %738 = vdwg.mxu0
      %v747 = vunpack.c.l.b16 %v482
      %v748 = vunpack.c.l.b16 %v483
      %v749 = vunpack.c.l.b16 %v484
      %v750 = vunpack.c.l.b16 %v485
      %v751 = vunpack.c.l.b16 %v486
      %v752 = vunpack.c.l.b16 %v487
      %v753 = vunpack.c.l.b16 %v488
      %v754 = vunpack.c.l.b16 %v489
      %v755 = vpack.c.b16 %v748, %v747
      %v756 = vpack.c.b16 %v750, %v749
      %v757 = vpack.c.b16 %v752, %v751
      %v758 = vpack.c.b16 %v754, %v753
      %v779 = vunpack.c.l.b16 %v490
      %v780 = vunpack.c.l.b16 %v491
      %v781 = vunpack.c.l.b16 %v492
      %v782 = vunpack.c.l.b16 %v493
      %v783 = vunpack.c.l.b16 %v494
      %v784 = vunpack.c.l.b16 %v495
      %v785 = vunpack.c.l.b16 %v496
      %v786 = vunpack.c.l.b16 %v497
      %v787 = vunpack.c.l.b16 %v498
      %v788 = vunpack.c.l.b16 %v499
      %v789 = vunpack.c.l.b16 %v500
      %v790 = vunpack.c.l.b16 %v501
      %v791 = vunpack.c.l.b16 %v502
      %v792 = vunpack.c.l.b16 %v503
      %v793 = vunpack.c.l.b16 %v504
      %v794 = vunpack.c.l.b16 %v505
      %v795 = vpack.c.b16 %v780, %v779
      %v796 = vpack.c.b16 %v782, %v781
      %v797 = vpack.c.b16 %v784, %v783
      %v798 = vpack.c.b16 %v786, %v785
      %v799 = vpack.c.b16 %v788, %v787
      %v800 = vpack.c.b16 %v790, %v789
      %v801 = vpack.c.b16 %v792, %v791
      %v802 = vpack.c.b16 %v794, %v793
      %811 = vmatpush.bf16.msra.mxu0 %v802
      %812 = vmatpush.bf16.msra.mxu0 %v801
      %813 = vmatpush.bf16.msra.mxu0 %v800
      %814 = vmatpush.bf16.msra.mxu0 %v799
      %815 = vmatpush.bf16.msra.mxu0 %v798
      %816 = vmatpush.bf16.msra.mxu0 %v797
      %817 = vmatpush.bf16.msra.mxu0 %v796
      %818 = vmatpush.bf16.msra.mxu0 %v795
      %819 = vmatmul.bf16.gmra.mxu0 %v755
      %v820 = vpop.f32.mrf.mxu0
      %v821 = vadd.f32 %v720, %v820
      %v822 = vpop.f32.mrf.mxu0
      %v823 = vadd.f32 %v722, %v822
      %824 = vmatmul.bf16.gmra.mxu0 %v756
      %v825 = vpop.f32.mrf.mxu0
      %v826 = vadd.f32 %v725, %v825
      %v827 = vpop.f32.mrf.mxu0
      %v828 = vadd.f32 %v727, %v827
      %829 = vmatmul.bf16.gmra.mxu0 %v757
      %v830 = vpop.f32.mrf.mxu0
      %v831 = vadd.f32 %v730, %v830
      %v832 = vpop.f32.mrf.mxu0
      %v833 = vadd.f32 %v732, %v832
      %834 = vmatmul.bf16.gmra.mxu0 %v758
      %v835 = vpop.f32.mrf.mxu0
      %v836 = vadd.f32 %v735, %v835
      %v837 = vpop.f32.mrf.mxu0
      %v838 = vadd.f32 %v737, %v837
      %839 = vdwg.mxu0
      %v840 = vld [vmem:[#allocation2] sm:$0xe]
      %v841 = vld [vmem:[#allocation2 + $0x8] sm:$0xe]
      %v842 = vld [vmem:[#allocation2 + $0x10] sm:$0xe]
      %v843 = vld [vmem:[#allocation2 + $0x18] sm:$0xe]
      %v844 = vld [vmem:[#allocation2 + $0x20] sm:$0xe]
      %v845 = vld [vmem:[#allocation2 + $0x28] sm:$0xe]
      %v846 = vld [vmem:[#allocation2 + $0x30] sm:$0xe]
      %v847 = vld [vmem:[#allocation2 + $0x38] sm:$0xe]
      %vm864 = vcmask 1042432
      %vm865 = vcmask 1046532
      %vm866 = vmor %vm864, %vm865
      %v867 = vrot.slane %v840, 5
      %v868 = vrot.slane %v867, 4
      %v869 = vrot.slane %v506, 5
      %v870 = vsel %vm866, %v868, %v869
      %v871 = vrot.slane %v841, 5
      %v872 = vrot.slane %v871, 4
      %v873 = vrot.slane %v507, 5
      %v874 = vsel %vm866, %v872, %v873
      %v875 = vrot.slane %v842, 5
      %v876 = vrot.slane %v875, 4
      %v877 = vrot.slane %v508, 5
      %v878 = vsel %vm866, %v876, %v877
      %v879 = vrot.slane %v843, 5
      %v880 = vrot.slane %v879, 4
      %v881 = vrot.slane %v509, 5
      %v882 = vsel %vm866, %v880, %v881
      %v883 = vrot.slane %v844, 5
      %v884 = vrot.slane %v883, 4
      %v885 = vrot.slane %v510, 5
      %v886 = vsel %vm866, %v884, %v885
      %v887 = vrot.slane %v845, 5
      %v888 = vrot.slane %v887, 4
      %v889 = vrot.slane %v511, 5
      %v890 = vsel %vm866, %v888, %v889
      %v891 = vrot.slane %v846, 5
      %v892 = vrot.slane %v891, 4
      %v893 = vrot.slane %v512, 5
      %v894 = vsel %vm866, %v892, %v893
      %v895 = vrot.slane %v847, 5
      %v896 = vrot.slane %v895, 4
      %v897 = vrot.slane %v513, 5
      %v898 = vsel %vm866, %v896, %v897
      %s899 = scalar_lea.vmem %s1, 128
      %v900 = vld [vmem:[%s899] sm:$0xf]
      %v901 = vld [vmem:[%s899 + $0x4] sm:$0xf]
      %v902 = vld [vmem:[%s899 + $0x8] sm:$0xf]
      %v903 = vld [vmem:[%s899 + $0xc] sm:$0xf]
      %v904 = vld [vmem:[%s899 + $0x10] sm:$0xf]
      %v905 = vld [vmem:[%s899 + $0x14] sm:$0xf]
      %v906 = vld [vmem:[%s899 + $0x18] sm:$0xf]
      %v907 = vld [vmem:[%s899 + $0x1c] sm:$0xf]
      %v908 = vld [vmem:[%s899 + $0x20] sm:$0xf]
      %v909 = vld [vmem:[%s899 + $0x24] sm:$0xf]
      %v910 = vld [vmem:[%s899 + $0x28] sm:$0xf]
      %v911 = vld [vmem:[%s899 + $0x2c] sm:$0xf]
      %v912 = vld [vmem:[%s899 + $0x30] sm:$0xf]
      %v913 = vld [vmem:[%s899 + $0x34] sm:$0xf]
      %v914 = vld [vmem:[%s899 + $0x38] sm:$0xf]
      %v915 = vld [vmem:[%s899 + $0x3c] sm:$0xf]
      %v916 = vunpack.c.l.b16 %v870
      %v917 = vunpack.c.l.b16 %v874
      %v918 = vunpack.c.l.b16 %v878
      %v919 = vunpack.c.l.b16 %v882
      %v920 = vunpack.c.l.b16 %v886
      %v921 = vunpack.c.l.b16 %v890
      %v922 = vunpack.c.l.b16 %v894
      %v923 = vunpack.c.l.b16 %v898
      %v924 = vpack.c.b16 %v917, %v916
      %v925 = vpack.c.b16 %v919, %v918
      %v926 = vpack.c.b16 %v921, %v920
      %v927 = vpack.c.b16 %v923, %v922
      %v948 = vunpack.c.l.b16 %v900
      %v949 = vunpack.c.l.b16 %v901
      %v950 = vunpack.c.l.b16 %v902
      %v951 = vunpack.c.l.b16 %v903
      %v952 = vunpack.c.l.b16 %v904
      %v953 = vunpack.c.l.b16 %v905
      %v954 = vunpack.c.l.b16 %v906
      %v955 = vunpack.c.l.b16 %v907
      %v956 = vunpack.c.l.b16 %v908
      %v957 = vunpack.c.l.b16 %v909
      %v958 = vunpack.c.l.b16 %v910
      %v959 = vunpack.c.l.b16 %v911
      %v960 = vunpack.c.l.b16 %v912
      %v961 = vunpack.c.l.b16 %v913
      %v962 = vunpack.c.l.b16 %v914
      %v963 = vunpack.c.l.b16 %v915
      %v964 = vpack.c.b16 %v949, %v948
      %v965 = vpack.c.b16 %v951, %v950
      %v966 = vpack.c.b16 %v953, %v952
      %v967 = vpack.c.b16 %v955, %v954
      %v968 = vpack.c.b16 %v957, %v956
      %v969 = vpack.c.b16 %v959, %v958
      %v970 = vpack.c.b16 %v961, %v960
      %v971 = vpack.c.b16 %v963, %v962
      %980 = vmatpush.bf16.msra.mxu0 %v971
      %981 = vmatpush.bf16.msra.mxu0 %v970
      %982 = vmatpush.bf16.msra.mxu0 %v969
      %983 = vmatpush.bf16.msra.mxu0 %v968
      %984 = vmatpush.bf16.msra.mxu0 %v967
      %985 = vmatpush.bf16.msra.mxu0 %v966
      %986 = vmatpush.bf16.msra.mxu0 %v965
      %987 = vmatpush.bf16.msra.mxu0 %v964
      %988 = vmatmul.bf16.gmra.mxu0 %v924
      %v989 = vpop.f32.mrf.mxu0
      %v990 = vadd.f32 0.0, %v989
      %v991 = vpop.f32.mrf.mxu0
      %v992 = vadd.f32 0.0, %v991
      %993 = vmatmul.bf16.gmra.mxu0 %v925
      %v994 = vpop.f32.mrf.mxu0
      %v995 = vadd.f32 0.0, %v994
      %v996 = vpop.f32.mrf.mxu0
      %v997 = vadd.f32 0.0, %v996
      %998 = vmatmul.bf16.gmra.mxu0 %v926
      %v999 = vpop.f32.mrf.mxu0
      %v1000 = vadd.f32 0.0, %v999
      %v1001 = vpop.f32.mrf.mxu0
      %v1002 = vadd.f32 0.0, %v1001
      %1003 = vmatmul.bf16.gmra.mxu0 %v927
      %v1004 = vpop.f32.mrf.mxu0
      %v1005 = vadd.f32 0.0, %v1004
      %v1006 = vpop.f32.mrf.mxu0
      %v1007 = vadd.f32 0.0, %v1006
      %1008 = vdwg.mxu0
      %v1009 = vadd.f32 %v821, %v990
      %v1010 = vadd.f32 %v823, %v992
      %v1011 = vadd.f32 %v826, %v995
      %v1012 = vadd.f32 %v828, %v997
      %v1013 = vadd.f32 %v831, %v1000
      %v1014 = vadd.f32 %v833, %v1002
      %v1015 = vadd.f32 %v836, %v1005
      %v1016 = vadd.f32 %v838, %v1007
      %v1017 = vld [vmem:[%s298] sm:$0xf]
      %v1018 = vld [vmem:[%s298 + $0x8] sm:$0xf]
      %v1019 = vld [vmem:[%s298 + $0x10] sm:$0xf]
      %v1020 = vld [vmem:[%s298 + $0x18] sm:$0xf]
      %v1021 = vld [vmem:[%s298 + $0x20] sm:$0xf]
      %v1022 = vld [vmem:[%s298 + $0x28] sm:$0xf]
      %v1023 = vld [vmem:[%s298 + $0x30] sm:$0xf]
      %v1024 = vld [vmem:[%s298 + $0x38] sm:$0xf]
      %s1025 = scalar_lea.vmem %s1, 192
      %v1026 = vld [vmem:[%s1025] sm:$0xf]
      %v1027 = vld [vmem:[%s1025 + $0x4] sm:$0xf]
      %v1028 = vld [vmem:[%s1025 + $0x8] sm:$0xf]
      %v1029 = vld [vmem:[%s1025 + $0xc] sm:$0xf]
      %v1030 = vld [vmem:[%s1025 + $0x10] sm:$0xf]
      %v1031 = vld [vmem:[%s1025 + $0x14] sm:$0xf]
      %v1032 = vld [vmem:[%s1025 + $0x18] sm:$0xf]
      %v1033 = vld [vmem:[%s1025 + $0x1c] sm:$0xf]
      %v1034 = vld [vmem:[%s1025 + $0x20] sm:$0xf]
      %v1035 = vld [vmem:[%s1025 + $0x24] sm:$0xf]
      %v1036 = vld [vmem:[%s1025 + $0x28] sm:$0xf]
      %v1037 = vld [vmem:[%s1025 + $0x2c] sm:$0xf]
      %v1038 = vld [vmem:[%s1025 + $0x30] sm:$0xf]
      %v1039 = vld [vmem:[%s1025 + $0x34] sm:$0xf]
      %v1040 = vld [vmem:[%s1025 + $0x38] sm:$0xf]
      %v1041 = vld [vmem:[%s1025 + $0x3c] sm:$0xf]
      %v1050 = vunpack.c.l.b16 %v1017
      %v1051 = vunpack.c.l.b16 %v1018
      %v1052 = vunpack.c.l.b16 %v1019
      %v1053 = vunpack.c.l.b16 %v1020
      %v1054 = vunpack.c.l.b16 %v1021
      %v1055 = vunpack.c.l.b16 %v1022
      %v1056 = vunpack.c.l.b16 %v1023
      %v1057 = vunpack.c.l.b16 %v1024
      %v1058 = vpack.c.b16 %v1051, %v1050
      %v1059 = vpack.c.b16 %v1053, %v1052
      %v1060 = vpack.c.b16 %v1055, %v1054
      %v1061 = vpack.c.b16 %v1057, %v1056
      %v1082 = vunpack.c.l.b16 %v1026
      %v1083 = vunpack.c.l.b16 %v1027
      %v1084 = vunpack.c.l.b16 %v1028
      %v1085 = vunpack.c.l.b16 %v1029
      %v1086 = vunpack.c.l.b16 %v1030
      %v1087 = vunpack.c.l.b16 %v1031
      %v1088 = vunpack.c.l.b16 %v1032
      %v1089 = vunpack.c.l.b16 %v1033
      %v1090 = vunpack.c.l.b16 %v1034
      %v1091 = vunpack.c.l.b16 %v1035
      %v1092 = vunpack.c.l.b16 %v1036
      %v1093 = vunpack.c.l.b16 %v1037
      %v1094 = vunpack.c.l.b16 %v1038
      %v1095 = vunpack.c.l.b16 %v1039
      %v1096 = vunpack.c.l.b16 %v1040
      %v1097 = vunpack.c.l.b16 %v1041
      %v1098 = vpack.c.b16 %v1083, %v1082
      %v1099 = vpack.c.b16 %v1085, %v1084
      %v1100 = vpack.c.b16 %v1087, %v1086
      %v1101 = vpack.c.b16 %v1089, %v1088
      %v1102 = vpack.c.b16 %v1091, %v1090
      %v1103 = vpack.c.b16 %v1093, %v1092
      %v1104 = vpack.c.b16 %v1095, %v1094
      %v1105 = vpack.c.b16 %v1097, %v1096
      %1114 = vmatpush.bf16.msra.mxu0 %v1105
      %1115 = vmatpush.bf16.msra.mxu0 %v1104
      %1116 = vmatpush.bf16.msra.mxu0 %v1103
      %1117 = vmatpush.bf16.msra.mxu0 %v1102
      %1118 = vmatpush.bf16.msra.mxu0 %v1101
      %1119 = vmatpush.bf16.msra.mxu0 %v1100
      %1120 = vmatpush.bf16.msra.mxu0 %v1099
      %1121 = vmatpush.bf16.msra.mxu0 %v1098
      %1122 = vmatmul.bf16.gmra.mxu0 %v1058
      %v1123 = vpop.f32.mrf.mxu0
      %v1124 = vadd.f32 0.0, %v1123
      %v1125 = vpop.f32.mrf.mxu0
      %v1126 = vadd.f32 0.0, %v1125
      %1127 = vmatmul.bf16.gmra.mxu0 %v1059
      %v1128 = vpop.f32.mrf.mxu0
      %v1129 = vadd.f32 0.0, %v1128
      %v1130 = vpop.f32.mrf.mxu0
      %v1131 = vadd.f32 0.0, %v1130
      %1132 = vmatmul.bf16.gmra.mxu0 %v1060
      %v1133 = vpop.f32.mrf.mxu0
      %v1134 = vadd.f32 0.0, %v1133
      %v1135 = vpop.f32.mrf.mxu0
      %v1136 = vadd.f32 0.0, %v1135
      %1137 = vmatmul.bf16.gmra.mxu0 %v1061
      %v1138 = vpop.f32.mrf.mxu0
      %v1139 = vadd.f32 0.0, %v1138
      %v1140 = vpop.f32.mrf.mxu0
      %v1141 = vadd.f32 0.0, %v1140
      %1142 = vdwg.mxu0
      %v1143 = vadd.f32 %v1009, %v1124
      %v1144 = vadd.f32 %v1010, %v1126
      %v1145 = vadd.f32 %v1011, %v1129
      %v1146 = vadd.f32 %v1012, %v1131
      %v1147 = vadd.f32 %v1013, %v1134
      %v1148 = vadd.f32 %v1014, %v1136
      %v1149 = vadd.f32 %v1015, %v1139
      %v1150 = vadd.f32 %v1016, %v1141
      %v1151 = vld [vmem:[%s298] sm:$0xf]
      %v1152 = vld [vmem:[%s298 + $0x4] sm:$0x1]
      %v1153 = vld [vmem:[%s298 + $0x8] sm:$0xf]
      %v1154 = vld [vmem:[%s298 + $0xc] sm:$0x1]
      %v1155 = vld [vmem:[%s298 + $0x10] sm:$0xf]
      %v1156 = vld [vmem:[%s298 + $0x14] sm:$0x1]
      %v1157 = vld [vmem:[%s298 + $0x18] sm:$0xf]
      %v1158 = vld [vmem:[%s298 + $0x1c] sm:$0x1]
      %v1159 = vld [vmem:[%s298 + $0x20] sm:$0xf]
      %v1160 = vld [vmem:[%s298 + $0x24] sm:$0x1]
      %v1161 = vld [vmem:[%s298 + $0x28] sm:$0xf]
      %v1162 = vld [vmem:[%s298 + $0x2c] sm:$0x1]
      %v1163 = vld [vmem:[%s298 + $0x30] sm:$0xf]
      %v1164 = vld [vmem:[%s298 + $0x34] sm:$0x1]
      %v1165 = vld [vmem:[%s298 + $0x38] sm:$0xf]
      %v1166 = vld [vmem:[%s298 + $0x3c] sm:$0x1]
      %v1168 = vshrl.u32 %v1151, 16
      %v1170 = vrot.slane %v1168, 4
      %v1171 = vshll.u32 %v1151, 16
      %v1173 = vrot.slane %v1171, 5
      %v1174 = vor.u32 %v1170, %v1173
      %v1175 = vrot.slane %v1174, 4
      %v1177 = vshll.u32 %v1152, 16
      %v1179 = vrot.slane %v1177, 5
      %v1180 = vsel %vm516, %v1175, %v1179
      %v1182 = vshrl.u32 %v1153, 16
      %v1184 = vrot.slane %v1182, 4
      %v1185 = vshll.u32 %v1153, 16
      %v1187 = vrot.slane %v1185, 5
      %v1188 = vor.u32 %v1184, %v1187
      %v1189 = vrot.slane %v1188, 4
      %v1191 = vshll.u32 %v1154, 16
      %v1193 = vrot.slane %v1191, 5
      %v1194 = vsel %vm516, %v1189, %v1193
      %v1196 = vshrl.u32 %v1155, 16
      %v1198 = vrot.slane %v1196, 4
      %v1199 = vshll.u32 %v1155, 16
      %v1201 = vrot.slane %v1199, 5
      %v1202 = vor.u32 %v1198, %v1201
      %v1203 = vrot.slane %v1202, 4
      %v1205 = vshll.u32 %v1156, 16
      %v1207 = vrot.slane %v1205, 5
      %v1208 = vsel %vm516, %v1203, %v1207
      %v1210 = vshrl.u32 %v1157, 16
      %v1212 = vrot.slane %v1210, 4
      %v1213 = vshll.u32 %v1157, 16
      %v1215 = vrot.slane %v1213, 5
      %v1216 = vor.u32 %v1212, %v1215
      %v1217 = vrot.slane %v1216, 4
      %v1219 = vshll.u32 %v1158, 16
      %v1221 = vrot.slane %v1219, 5
      %v1222 = vsel %vm516, %v1217, %v1221
      %v1224 = vshrl.u32 %v1159, 16
      %v1226 = vrot.slane %v1224, 4
      %v1227 = vshll.u32 %v1159, 16
      %v1229 = vrot.slane %v1227, 5
      %v1230 = vor.u32 %v1226, %v1229
      %v1231 = vrot.slane %v1230, 4
      %v1233 = vshll.u32 %v1160, 16
      %v1235 = vrot.slane %v1233, 5
      %v1236 = vsel %vm516, %v1231, %v1235
      %v1238 = vshrl.u32 %v1161, 16
      %v1240 = vrot.slane %v1238, 4
      %v1241 = vshll.u32 %v1161, 16
      %v1243 = vrot.slane %v1241, 5
      %v1244 = vor.u32 %v1240, %v1243
      %v1245 = vrot.slane %v1244, 4
      %v1247 = vshll.u32 %v1162, 16
      %v1249 = vrot.slane %v1247, 5
      %v1250 = vsel %vm516, %v1245, %v1249
      %v1252 = vshrl.u32 %v1163, 16
      %v1254 = vrot.slane %v1252, 4
      %v1255 = vshll.u32 %v1163, 16
      %v1257 = vrot.slane %v1255, 5
      %v1258 = vor.u32 %v1254, %v1257
      %v1259 = vrot.slane %v1258, 4
      %v1261 = vshll.u32 %v1164, 16
      %v1263 = vrot.slane %v1261, 5
      %v1264 = vsel %vm516, %v1259, %v1263
      %v1266 = vshrl.u32 %v1165, 16
      %v1268 = vrot.slane %v1266, 4
      %v1269 = vshll.u32 %v1165, 16
      %v1271 = vrot.slane %v1269, 5
      %v1272 = vor.u32 %v1268, %v1271
      %v1273 = vrot.slane %v1272, 4
      %v1275 = vshll.u32 %v1166, 16
      %v1277 = vrot.slane %v1275, 5
      %v1278 = vsel %vm516, %v1273, %v1277
      %s1279 = scalar_lea.vmem %s1, 256
      %v1280 = vld [vmem:[%s1279] sm:$0xf]
      %v1281 = vld [vmem:[%s1279 + $0x4] sm:$0xf]
      %v1282 = vld [vmem:[%s1279 + $0x8] sm:$0xf]
      %v1283 = vld [vmem:[%s1279 + $0xc] sm:$0xf]
      %v1284 = vld [vmem:[%s1279 + $0x10] sm:$0xf]
      %v1285 = vld [vmem:[%s1279 + $0x14] sm:$0xf]
      %v1286 = vld [vmem:[%s1279 + $0x18] sm:$0xf]
      %v1287 = vld [vmem:[%s1279 + $0x1c] sm:$0xf]
      %v1288 = vld [vmem:[%s1279 + $0x20] sm:$0xf]
      %v1289 = vld [vmem:[%s1279 + $0x24] sm:$0xf]
      %v1290 = vld [vmem:[%s1279 + $0x28] sm:$0xf]
      %v1291 = vld [vmem:[%s1279 + $0x2c] sm:$0xf]
      %v1292 = vld [vmem:[%s1279 + $0x30] sm:$0xf]
      %v1293 = vld [vmem:[%s1279 + $0x34] sm:$0xf]
      %v1294 = vld [vmem:[%s1279 + $0x38] sm:$0xf]
      %v1295 = vld [vmem:[%s1279 + $0x3c] sm:$0xf]
      %v1296 = vunpack.c.l.b16 %v1180
      %v1297 = vunpack.c.l.b16 %v1194
      %v1298 = vunpack.c.l.b16 %v1208
      %v1299 = vunpack.c.l.b16 %v1222
      %v1300 = vunpack.c.l.b16 %v1236
      %v1301 = vunpack.c.l.b16 %v1250
      %v1302 = vunpack.c.l.b16 %v1264
      %v1303 = vunpack.c.l.b16 %v1278
      %v1304 = vpack.c.b16 %v1297, %v1296
      %v1305 = vpack.c.b16 %v1299, %v1298
      %v1306 = vpack.c.b16 %v1301, %v1300
      %v1307 = vpack.c.b16 %v1303, %v1302
      %v1328 = vunpack.c.l.b16 %v1280
      %v1329 = vunpack.c.l.b16 %v1281
      %v1330 = vunpack.c.l.b16 %v1282
      %v1331 = vunpack.c.l.b16 %v1283
      %v1332 = vunpack.c.l.b16 %v1284
      %v1333 = vunpack.c.l.b16 %v1285
      %v1334 = vunpack.c.l.b16 %v1286
      %v1335 = vunpack.c.l.b16 %v1287
      %v1336 = vunpack.c.l.b16 %v1288
      %v1337 = vunpack.c.l.b16 %v1289
      %v1338 = vunpack.c.l.b16 %v1290
      %v1339 = vunpack.c.l.b16 %v1291
      %v1340 = vunpack.c.l.b16 %v1292
      %v1341 = vunpack.c.l.b16 %v1293
      %v1342 = vunpack.c.l.b16 %v1294
      %v1343 = vunpack.c.l.b16 %v1295
      %v1344 = vpack.c.b16 %v1329, %v1328
      %v1345 = vpack.c.b16 %v1331, %v1330
      %v1346 = vpack.c.b16 %v1333, %v1332
      %v1347 = vpack.c.b16 %v1335, %v1334
      %v1348 = vpack.c.b16 %v1337, %v1336
      %v1349 = vpack.c.b16 %v1339, %v1338
      %v1350 = vpack.c.b16 %v1341, %v1340
      %v1351 = vpack.c.b16 %v1343, %v1342
      %1360 = vmatpush.bf16.msra.mxu0 %v1351
      %1361 = vmatpush.bf16.msra.mxu0 %v1350
      %1362 = vmatpush.bf16.msra.mxu0 %v1349
      %1363 = vmatpush.bf16.msra.mxu0 %v1348
      %1364 = vmatpush.bf16.msra.mxu0 %v1347
      %1365 = vmatpush.bf16.msra.mxu0 %v1346
      %1366 = vmatpush.bf16.msra.mxu0 %v1345
      %1367 = vmatpush.bf16.msra.mxu0 %v1344
      %1368 = vmatmul.bf16.gmra.mxu0 %v1304
      %v1369 = vpop.f32.mrf.mxu0
      %v1370 = vadd.f32 0.0, %v1369
      %v1371 = vpop.f32.mrf.mxu0
      %v1372 = vadd.f32 0.0, %v1371
      %1373 = vmatmul.bf16.gmra.mxu0 %v1305
      %v1374 = vpop.f32.mrf.mxu0
      %v1375 = vadd.f32 0.0, %v1374
      %v1376 = vpop.f32.mrf.mxu0
      %v1377 = vadd.f32 0.0, %v1376
      %1378 = vmatmul.bf16.gmra.mxu0 %v1306
      %v1379 = vpop.f32.mrf.mxu0
      %v1380 = vadd.f32 0.0, %v1379
      %v1381 = vpop.f32.mrf.mxu0
      %v1382 = vadd.f32 0.0, %v1381
      %1383 = vmatmul.bf16.gmra.mxu0 %v1307
      %v1384 = vpop.f32.mrf.mxu0
      %v1385 = vadd.f32 0.0, %v1384
      %v1386 = vpop.f32.mrf.mxu0
      %v1387 = vadd.f32 0.0, %v1386
      %1388 = vdwg.mxu0
      %v1389 = vadd.f32 %v1143, %v1370
      %v1390 = vadd.f32 %v1144, %v1372
      %v1391 = vadd.f32 %v1145, %v1375
      %v1392 = vadd.f32 %v1146, %v1377
      %v1393 = vadd.f32 %v1147, %v1380
      %v1394 = vadd.f32 %v1148, %v1382
      %v1395 = vadd.f32 %v1149, %v1385
      %v1396 = vadd.f32 %v1150, %v1387
      %v1397 = vld [vmem:[%s298] sm:$0xe]
      %v1398 = vld [vmem:[%s298 + $0x8] sm:$0xe]
      %v1399 = vld [vmem:[%s298 + $0x10] sm:$0xe]
      %v1400 = vld [vmem:[%s298 + $0x18] sm:$0xe]
      %v1401 = vld [vmem:[%s298 + $0x20] sm:$0xe]
      %v1402 = vld [vmem:[%s298 + $0x28] sm:$0xe]
      %v1403 = vld [vmem:[%s298 + $0x30] sm:$0xe]
      %v1404 = vld [vmem:[%s298 + $0x38] sm:$0xe]
      %v1421 = vrot.slane %v1397, 5
      %v1422 = vrot.slane %v1421, 4
      %v1423 = vrot.slane %v1152, 5
      %v1424 = vsel %vm866, %v1422, %v1423
      %v1425 = vrot.slane %v1398, 5
      %v1426 = vrot.slane %v1425, 4
      %v1427 = vrot.slane %v1154, 5
      %v1428 = vsel %vm866, %v1426, %v1427
      %v1429 = vrot.slane %v1399, 5
      %v1430 = vrot.slane %v1429, 4
      %v1431 = vrot.slane %v1156, 5
      %v1432 = vsel %vm866, %v1430, %v1431
      %v1433 = vrot.slane %v1400, 5
      %v1434 = vrot.slane %v1433, 4
      %v1435 = vrot.slane %v1158, 5
      %v1436 = vsel %vm866, %v1434, %v1435
      %v1437 = vrot.slane %v1401, 5
      %v1438 = vrot.slane %v1437, 4
      %v1439 = vrot.slane %v1160, 5
      %v1440 = vsel %vm866, %v1438, %v1439
      %v1441 = vrot.slane %v1402, 5
      %v1442 = vrot.slane %v1441, 4
      %v1443 = vrot.slane %v1162, 5
      %v1444 = vsel %vm866, %v1442, %v1443
      %v1445 = vrot.slane %v1403, 5
      %v1446 = vrot.slane %v1445, 4
      %v1447 = vrot.slane %v1164, 5
      %v1448 = vsel %vm866, %v1446, %v1447
      %v1449 = vrot.slane %v1404, 5
      %v1450 = vrot.slane %v1449, 4
      %v1451 = vrot.slane %v1166, 5
      %v1452 = vsel %vm866, %v1450, %v1451
      %s1453 = scalar_lea.vmem %s1, 320
      %v1454 = vld [vmem:[%s1453] sm:$0xf]
      %v1455 = vld [vmem:[%s1453 + $0x4] sm:$0xf]
      %v1456 = vld [vmem:[%s1453 + $0x8] sm:$0xf]
      %v1457 = vld [vmem:[%s1453 + $0xc] sm:$0xf]
      %v1458 = vld [vmem:[%s1453 + $0x10] sm:$0xf]
      %v1459 = vld [vmem:[%s1453 + $0x14] sm:$0xf]
      %v1460 = vld [vmem:[%s1453 + $0x18] sm:$0xf]
      %v1461 = vld [vmem:[%s1453 + $0x1c] sm:$0xf]
      %v1462 = vld [vmem:[%s1453 + $0x20] sm:$0xf]
      %v1463 = vld [vmem:[%s1453 + $0x24] sm:$0xf]
      %v1464 = vld [vmem:[%s1453 + $0x28] sm:$0xf]
      %v1465 = vld [vmem:[%s1453 + $0x2c] sm:$0xf]
      %v1466 = vld [vmem:[%s1453 + $0x30] sm:$0xf]
      %v1467 = vld [vmem:[%s1453 + $0x34] sm:$0xf]
      %v1468 = vld [vmem:[%s1453 + $0x38] sm:$0xf]
      %v1469 = vld [vmem:[%s1453 + $0x3c] sm:$0xf]
      %v1470 = vunpack.c.l.b16 %v1424
      %v1471 = vunpack.c.l.b16 %v1428
      %v1472 = vunpack.c.l.b16 %v1432
      %v1473 = vunpack.c.l.b16 %v1436
      %v1474 = vunpack.c.l.b16 %v1440
      %v1475 = vunpack.c.l.b16 %v1444
      %v1476 = vunpack.c.l.b16 %v1448
      %v1477 = vunpack.c.l.b16 %v1452
      %v1478 = vpack.c.b16 %v1471, %v1470
      %v1479 = vpack.c.b16 %v1473, %v1472
      %v1480 = vpack.c.b16 %v1475, %v1474
      %v1481 = vpack.c.b16 %v1477, %v1476
      %v1502 = vunpack.c.l.b16 %v1454
      %v1503 = vunpack.c.l.b16 %v1455
      %v1504 = vunpack.c.l.b16 %v1456
      %v1505 = vunpack.c.l.b16 %v1457
      %v1506 = vunpack.c.l.b16 %v1458
      %v1507 = vunpack.c.l.b16 %v1459
      %v1508 = vunpack.c.l.b16 %v1460
      %v1509 = vunpack.c.l.b16 %v1461
      %v1510 = vunpack.c.l.b16 %v1462
      %v1511 = vunpack.c.l.b16 %v1463
      %v1512 = vunpack.c.l.b16 %v1464
      %v1513 = vunpack.c.l.b16 %v1465
      %v1514 = vunpack.c.l.b16 %v1466
      %v1515 = vunpack.c.l.b16 %v1467
      %v1516 = vunpack.c.l.b16 %v1468
      %v1517 = vunpack.c.l.b16 %v1469
      %v1518 = vpack.c.b16 %v1503, %v1502
      %v1519 = vpack.c.b16 %v1505, %v1504
      %v1520 = vpack.c.b16 %v1507, %v1506
      %v1521 = vpack.c.b16 %v1509, %v1508
      %v1522 = vpack.c.b16 %v1511, %v1510
      %v1523 = vpack.c.b16 %v1513, %v1512
      %v1524 = vpack.c.b16 %v1515, %v1514
      %v1525 = vpack.c.b16 %v1517, %v1516
      %1534 = vmatpush.bf16.msra.mxu0 %v1525
      %1535 = vmatpush.bf16.msra.mxu0 %v1524
      %1536 = vmatpush.bf16.msra.mxu0 %v1523
      %1537 = vmatpush.bf16.msra.mxu0 %v1522
      %1538 = vmatpush.bf16.msra.mxu0 %v1521
      %1539 = vmatpush.bf16.msra.mxu0 %v1520
      %1540 = vmatpush.bf16.msra.mxu0 %v1519
      %1541 = vmatpush.bf16.msra.mxu0 %v1518
      %1542 = vmatmul.bf16.gmra.mxu0 %v1478
      %v1543 = vpop.f32.mrf.mxu0
      %v1544 = vadd.f32 0.0, %v1543
      %v1545 = vpop.f32.mrf.mxu0
      %v1546 = vadd.f32 0.0, %v1545
      %1547 = vmatmul.bf16.gmra.mxu0 %v1479
      %v1548 = vpop.f32.mrf.mxu0
      %v1549 = vadd.f32 0.0, %v1548
      %v1550 = vpop.f32.mrf.mxu0
      %v1551 = vadd.f32 0.0, %v1550
      %1552 = vmatmul.bf16.gmra.mxu0 %v1480
      %v1553 = vpop.f32.mrf.mxu0
      %v1554 = vadd.f32 0.0, %v1553
      %v1555 = vpop.f32.mrf.mxu0
      %v1556 = vadd.f32 0.0, %v1555
      %1557 = vmatmul.bf16.gmra.mxu0 %v1481
      %v1558 = vpop.f32.mrf.mxu0
      %v1559 = vadd.f32 0.0, %v1558
      %v1560 = vpop.f32.mrf.mxu0
      %v1561 = vadd.f32 0.0, %v1560
      %1562 = vdwg.mxu0
      %v1563 = vadd.f32 %v1389, %v1544
      %v1564 = vadd.f32 %v1390, %v1546
      %v1565 = vadd.f32 %v1391, %v1549
      %v1566 = vadd.f32 %v1392, %v1551
      %v1567 = vadd.f32 %v1393, %v1554
      %v1568 = vadd.f32 %v1394, %v1556
      %v1569 = vadd.f32 %v1395, %v1559
      %v1570 = vadd.f32 %v1396, %v1561
      %s1571 = scalar_lea.vmem [#allocation2], 16
      %v1572 = vld [vmem:[%s1571] sm:$0xf]
      %v1573 = vld [vmem:[%s1571 + $0x8] sm:$0xf]
      %v1574 = vld [vmem:[%s1571 + $0x10] sm:$0xf]
      %v1575 = vld [vmem:[%s1571 + $0x18] sm:$0xf]
      %v1576 = vld [vmem:[%s1571 + $0x20] sm:$0xf]
      %v1577 = vld [vmem:[%s1571 + $0x28] sm:$0xf]
      %v1578 = vld [vmem:[%s1571 + $0x30] sm:$0xf]
      %v1579 = vld [vmem:[%s1571 + $0x38] sm:$0xf]
      %s1580 = scalar_lea.vmem %s1, 384
      %v1581 = vld [vmem:[%s1580] sm:$0xf]
      %v1582 = vld [vmem:[%s1580 + $0x4] sm:$0xf]
      %v1583 = vld [vmem:[%s1580 + $0x8] sm:$0xf]
      %v1584 = vld [vmem:[%s1580 + $0xc] sm:$0xf]
      %v1585 = vld [vmem:[%s1580 + $0x10] sm:$0xf]
      %v1586 = vld [vmem:[%s1580 + $0x14] sm:$0xf]
      %v1587 = vld [vmem:[%s1580 + $0x18] sm:$0xf]
      %v1588 = vld [vmem:[%s1580 + $0x1c] sm:$0xf]
      %v1589 = vld [vmem:[%s1580 + $0x20] sm:$0xf]
      %v1590 = vld [vmem:[%s1580 + $0x24] sm:$0xf]
      %v1591 = vld [vmem:[%s1580 + $0x28] sm:$0xf]
      %v1592 = vld [vmem:[%s1580 + $0x2c] sm:$0xf]
      %v1593 = vld [vmem:[%s1580 + $0x30] sm:$0xf]
      %v1594 = vld [vmem:[%s1580 + $0x34] sm:$0xf]
      %v1595 = vld [vmem:[%s1580 + $0x38] sm:$0xf]
      %v1596 = vld [vmem:[%s1580 + $0x3c] sm:$0xf]
      %v1605 = vunpack.c.l.b16 %v1572
      %v1606 = vunpack.c.l.b16 %v1573
      %v1607 = vunpack.c.l.b16 %v1574
      %v1608 = vunpack.c.l.b16 %v1575
      %v1609 = vunpack.c.l.b16 %v1576
      %v1610 = vunpack.c.l.b16 %v1577
      %v1611 = vunpack.c.l.b16 %v1578
      %v1612 = vunpack.c.l.b16 %v1579
      %v1613 = vpack.c.b16 %v1606, %v1605
      %v1614 = vpack.c.b16 %v1608, %v1607
      %v1615 = vpack.c.b16 %v1610, %v1609
      %v1616 = vpack.c.b16 %v1612, %v1611
      %v1637 = vunpack.c.l.b16 %v1581
      %v1638 = vunpack.c.l.b16 %v1582
      %v1639 = vunpack.c.l.b16 %v1583
      %v1640 = vunpack.c.l.b16 %v1584
      %v1641 = vunpack.c.l.b16 %v1585
      %v1642 = vunpack.c.l.b16 %v1586
      %v1643 = vunpack.c.l.b16 %v1587
      %v1644 = vunpack.c.l.b16 %v1588
      %v1645 = vunpack.c.l.b16 %v1589
      %v1646 = vunpack.c.l.b16 %v1590
      %v1647 = vunpack.c.l.b16 %v1591
      %v1648 = vunpack.c.l.b16 %v1592
      %v1649 = vunpack.c.l.b16 %v1593
      %v1650 = vunpack.c.l.b16 %v1594
      %v1651 = vunpack.c.l.b16 %v1595
      %v1652 = vunpack.c.l.b16 %v1596
      %v1653 = vpack.c.b16 %v1638, %v1637
      %v1654 = vpack.c.b16 %v1640, %v1639
      %v1655 = vpack.c.b16 %v1642, %v1641
      %v1656 = vpack.c.b16 %v1644, %v1643
      %v1657 = vpack.c.b16 %v1646, %v1645
      %v1658 = vpack.c.b16 %v1648, %v1647
      %v1659 = vpack.c.b16 %v1650, %v1649
      %v1660 = vpack.c.b16 %v1652, %v1651
      %1669 = vmatpush.bf16.msra.mxu0 %v1660
      %1670 = vmatpush.bf16.msra.mxu0 %v1659
      %1671 = vmatpush.bf16.msra.mxu0 %v1658
      %1672 = vmatpush.bf16.msra.mxu0 %v1657
      %1673 = vmatpush.bf16.msra.mxu0 %v1656
      %1674 = vmatpush.bf16.msra.mxu0 %v1655
      %1675 = vmatpush.bf16.msra.mxu0 %v1654
      %1676 = vmatpush.bf16.msra.mxu0 %v1653
      %1677 = vmatmul.bf16.gmra.mxu0 %v1613
      %v1678 = vpop.f32.mrf.mxu0
      %v1679 = vadd.f32 0.0, %v1678
      %v1680 = vpop.f32.mrf.mxu0
      %v1681 = vadd.f32 0.0, %v1680
      %1682 = vmatmul.bf16.gmra.mxu0 %v1614
      %v1683 = vpop.f32.mrf.mxu0
      %v1684 = vadd.f32 0.0, %v1683
      %v1685 = vpop.f32.mrf.mxu0
      %v1686 = vadd.f32 0.0, %v1685
      %1687 = vmatmul.bf16.gmra.mxu0 %v1615
      %v1688 = vpop.f32.mrf.mxu0
      %v1689 = vadd.f32 0.0, %v1688
      %v1690 = vpop.f32.mrf.mxu0
      %v1691 = vadd.f32 0.0, %v1690
      %1692 = vmatmul.bf16.gmra.mxu0 %v1616
      %v1693 = vpop.f32.mrf.mxu0
      %v1694 = vadd.f32 0.0, %v1693
      %v1695 = vpop.f32.mrf.mxu0
      %v1696 = vadd.f32 0.0, %v1695
      %1697 = vdwg.mxu0
      %v1698 = vadd.f32 %v1563, %v1679
      %v1699 = vadd.f32 %v1564, %v1681
      %v1700 = vadd.f32 %v1565, %v1684
      %v1701 = vadd.f32 %v1566, %v1686
      %v1702 = vadd.f32 %v1567, %v1689
      %v1703 = vadd.f32 %v1568, %v1691
      %v1704 = vadd.f32 %v1569, %v1694
      %v1705 = vadd.f32 %v1570, %v1696
      %v1706 = vld [vmem:[%s1571] sm:$0xf]
      %v1707 = vld [vmem:[%s1571 + $0x4] sm:$0x1]
      %v1708 = vld [vmem:[%s1571 + $0x8] sm:$0xf]
      %v1709 = vld [vmem:[%s1571 + $0xc] sm:$0x1]
      %v1710 = vld [vmem:[%s1571 + $0x10] sm:$0xf]
      %v1711 = vld [vmem:[%s1571 + $0x14] sm:$0x1]
      %v1712 = vld [vmem:[%s1571 + $0x18] sm:$0xf]
      %v1713 = vld [vmem:[%s1571 + $0x1c] sm:$0x1]
      %v1714 = vld [vmem:[%s1571 + $0x20] sm:$0xf]
      %v1715 = vld [vmem:[%s1571 + $0x24] sm:$0x1]
      %v1716 = vld [vmem:[%s1571 + $0x28] sm:$0xf]
      %v1717 = vld [vmem:[%s1571 + $0x2c] sm:$0x1]
      %v1718 = vld [vmem:[%s1571 + $0x30] sm:$0xf]
      %v1719 = vld [vmem:[%s1571 + $0x34] sm:$0x1]
      %v1720 = vld [vmem:[%s1571 + $0x38] sm:$0xf]
      %v1721 = vld [vmem:[%s1571 + $0x3c] sm:$0x1]
      %v1723 = vshrl.u32 %v1706, 16
      %v1725 = vrot.slane %v1723, 4
      %v1726 = vshll.u32 %v1706, 16
      %v1728 = vrot.slane %v1726, 5
      %v1729 = vor.u32 %v1725, %v1728
      %v1730 = vrot.slane %v1729, 4
      %v1732 = vshll.u32 %v1707, 16
      %v1734 = vrot.slane %v1732, 5
      %v1735 = vsel %vm516, %v1730, %v1734
      %v1737 = vshrl.u32 %v1708, 16
      %v1739 = vrot.slane %v1737, 4
      %v1740 = vshll.u32 %v1708, 16
      %v1742 = vrot.slane %v1740, 5
      %v1743 = vor.u32 %v1739, %v1742
      %v1744 = vrot.slane %v1743, 4
      %v1746 = vshll.u32 %v1709, 16
      %v1748 = vrot.slane %v1746, 5
      %v1749 = vsel %vm516, %v1744, %v1748
      %v1751 = vshrl.u32 %v1710, 16
      %v1753 = vrot.slane %v1751, 4
      %v1754 = vshll.u32 %v1710, 16
      %v1756 = vrot.slane %v1754, 5
      %v1757 = vor.u32 %v1753, %v1756
      %v1758 = vrot.slane %v1757, 4
      %v1760 = vshll.u32 %v1711, 16
      %v1762 = vrot.slane %v1760, 5
      %v1763 = vsel %vm516, %v1758, %v1762
      %v1765 = vshrl.u32 %v1712, 16
      %v1767 = vrot.slane %v1765, 4
      %v1768 = vshll.u32 %v1712, 16
      %v1770 = vrot.slane %v1768, 5
      %v1771 = vor.u32 %v1767, %v1770
      %v1772 = vrot.slane %v1771, 4
      %v1774 = vshll.u32 %v1713, 16
      %v1776 = vrot.slane %v1774, 5
      %v1777 = vsel %vm516, %v1772, %v1776
      %v1779 = vshrl.u32 %v1714, 16
      %v1781 = vrot.slane %v1779, 4
      %v1782 = vshll.u32 %v1714, 16
      %v1784 = vrot.slane %v1782, 5
      %v1785 = vor.u32 %v1781, %v1784
      %v1786 = vrot.slane %v1785, 4
      %v1788 = vshll.u32 %v1715, 16
      %v1790 = vrot.slane %v1788, 5
      %v1791 = vsel %vm516, %v1786, %v1790
      %v1793 = vshrl.u32 %v1716, 16
      %v1795 = vrot.slane %v1793, 4
      %v1796 = vshll.u32 %v1716, 16
      %v1798 = vrot.slane %v1796, 5
      %v1799 = vor.u32 %v1795, %v1798
      %v1800 = vrot.slane %v1799, 4
      %v1802 = vshll.u32 %v1717, 16
      %v1804 = vrot.slane %v1802, 5
      %v1805 = vsel %vm516, %v1800, %v1804
      %v1807 = vshrl.u32 %v1718, 16
      %v1809 = vrot.slane %v1807, 4
      %v1810 = vshll.u32 %v1718, 16
      %v1812 = vrot.slane %v1810, 5
      %v1813 = vor.u32 %v1809, %v1812
      %v1814 = vrot.slane %v1813, 4
      %v1816 = vshll.u32 %v1719, 16
      %v1818 = vrot.slane %v1816, 5
      %v1819 = vsel %vm516, %v1814, %v1818
      %v1821 = vshrl.u32 %v1720, 16
      %v1823 = vrot.slane %v1821, 4
      %v1824 = vshll.u32 %v1720, 16
      %v1826 = vrot.slane %v1824, 5
      %v1827 = vor.u32 %v1823, %v1826
      %v1828 = vrot.slane %v1827, 4
      %v1830 = vshll.u32 %v1721, 16
      %v1832 = vrot.slane %v1830, 5
      %v1833 = vsel %vm516, %v1828, %v1832
      %s1834 = scalar_lea.vmem %s1, 448
      %v1835 = vld [vmem:[%s1834] sm:$0xf]
      %v1836 = vld [vmem:[%s1834 + $0x4] sm:$0xf]
      %v1837 = vld [vmem:[%s1834 + $0x8] sm:$0xf]
      %v1838 = vld [vmem:[%s1834 + $0xc] sm:$0xf]
      %v1839 = vld [vmem:[%s1834 + $0x10] sm:$0xf]
      %v1840 = vld [vmem:[%s1834 + $0x14] sm:$0xf]
      %v1841 = vld [vmem:[%s1834 + $0x18] sm:$0xf]
      %v1842 = vld [vmem:[%s1834 + $0x1c] sm:$0xf]
      %v1843 = vld [vmem:[%s1834 + $0x20] sm:$0xf]
      %v1844 = vld [vmem:[%s1834 + $0x24] sm:$0xf]
      %v1845 = vld [vmem:[%s1834 + $0x28] sm:$0xf]
      %v1846 = vld [vmem:[%s1834 + $0x2c] sm:$0xf]
      %v1847 = vld [vmem:[%s1834 + $0x30] sm:$0xf]
      %v1848 = vld [vmem:[%s1834 + $0x34] sm:$0xf]
      %v1849 = vld [vmem:[%s1834 + $0x38] sm:$0xf]
      %v1850 = vld [vmem:[%s1834 + $0x3c] sm:$0xf]
      %v1851 = vunpack.c.l.b16 %v1735
      %v1852 = vunpack.c.l.b16 %v1749
      %v1853 = vunpack.c.l.b16 %v1763
      %v1854 = vunpack.c.l.b16 %v1777
      %v1855 = vunpack.c.l.b16 %v1791
      %v1856 = vunpack.c.l.b16 %v1805
      %v1857 = vunpack.c.l.b16 %v1819
      %v1858 = vunpack.c.l.b16 %v1833
      %v1859 = vpack.c.b16 %v1852, %v1851
      %v1860 = vpack.c.b16 %v1854, %v1853
      %v1861 = vpack.c.b16 %v1856, %v1855
      %v1862 = vpack.c.b16 %v1858, %v1857
      %v1883 = vunpack.c.l.b16 %v1835
      %v1884 = vunpack.c.l.b16 %v1836
      %v1885 = vunpack.c.l.b16 %v1837
      %v1886 = vunpack.c.l.b16 %v1838
      %v1887 = vunpack.c.l.b16 %v1839
      %v1888 = vunpack.c.l.b16 %v1840
      %v1889 = vunpack.c.l.b16 %v1841
      %v1890 = vunpack.c.l.b16 %v1842
      %v1891 = vunpack.c.l.b16 %v1843
      %v1892 = vunpack.c.l.b16 %v1844
      %v1893 = vunpack.c.l.b16 %v1845
      %v1894 = vunpack.c.l.b16 %v1846
      %v1895 = vunpack.c.l.b16 %v1847
      %v1896 = vunpack.c.l.b16 %v1848
      %v1897 = vunpack.c.l.b16 %v1849
      %v1898 = vunpack.c.l.b16 %v1850
      %v1899 = vpack.c.b16 %v1884, %v1883
      %v1900 = vpack.c.b16 %v1886, %v1885
      %v1901 = vpack.c.b16 %v1888, %v1887
      %v1902 = vpack.c.b16 %v1890, %v1889
      %v1903 = vpack.c.b16 %v1892, %v1891
      %v1904 = vpack.c.b16 %v1894, %v1893
      %v1905 = vpack.c.b16 %v1896, %v1895
      %v1906 = vpack.c.b16 %v1898, %v1897
      %1915 = vmatpush.bf16.msra.mxu0 %v1906
      %1916 = vmatpush.bf16.msra.mxu0 %v1905
      %1917 = vmatpush.bf16.msra.mxu0 %v1904
      %1918 = vmatpush.bf16.msra.mxu0 %v1903
      %1919 = vmatpush.bf16.msra.mxu0 %v1902
      %1920 = vmatpush.bf16.msra.mxu0 %v1901
      %1921 = vmatpush.bf16.msra.mxu0 %v1900
      %1922 = vmatpush.bf16.msra.mxu0 %v1899
      %1923 = vmatmul.bf16.gmra.mxu0 %v1859
      %v1924 = vpop.f32.mrf.mxu0
      %v1925 = vadd.f32 0.0, %v1924
      %v1926 = vpop.f32.mrf.mxu0
      %v1927 = vadd.f32 0.0, %v1926
      %1928 = vmatmul.bf16.gmra.mxu0 %v1860
      %v1929 = vpop.f32.mrf.mxu0
      %v1930 = vadd.f32 0.0, %v1929
      %v1931 = vpop.f32.mrf.mxu0
      %v1932 = vadd.f32 0.0, %v1931
      %1933 = vmatmul.bf16.gmra.mxu0 %v1861
      %v1934 = vpop.f32.mrf.mxu0
      %v1935 = vadd.f32 0.0, %v1934
      %v1936 = vpop.f32.mrf.mxu0
      %v1937 = vadd.f32 0.0, %v1936
      %1938 = vmatmul.bf16.gmra.mxu0 %v1862
      %v1939 = vpop.f32.mrf.mxu0
      %v1940 = vadd.f32 0.0, %v1939
      %v1941 = vpop.f32.mrf.mxu0
      %v1942 = vadd.f32 0.0, %v1941
      %1943 = vdwg.mxu0
      %v1944 = vadd.f32 %v1698, %v1925
      %v1945 = vadd.f32 %v1699, %v1927
      %v1946 = vadd.f32 %v1700, %v1930
      %v1947 = vadd.f32 %v1701, %v1932
      %v1948 = vadd.f32 %v1702, %v1935
      %v1949 = vadd.f32 %v1703, %v1937
      %v1950 = vadd.f32 %v1704, %v1940
      %v1951 = vadd.f32 %v1705, %v1942
      %v1952 = vld [vmem:[%s1571] sm:$0xe]
      %v1953 = vld [vmem:[%s1571 + $0x8] sm:$0xe]
      %v1954 = vld [vmem:[%s1571 + $0x10] sm:$0xe]
      %v1955 = vld [vmem:[%s1571 + $0x18] sm:$0xe]
      %v1956 = vld [vmem:[%s1571 + $0x20] sm:$0xe]
      %v1957 = vld [vmem:[%s1571 + $0x28] sm:$0xe]
      %v1958 = vld [vmem:[%s1571 + $0x30] sm:$0xe]
      %v1959 = vld [vmem:[%s1571 + $0x38] sm:$0xe]
      %v1976 = vrot.slane %v1952, 5
      %v1977 = vrot.slane %v1976, 4
      %v1978 = vrot.slane %v1707, 5
      %v1979 = vsel %vm866, %v1977, %v1978
      %v1980 = vrot.slane %v1953, 5
      %v1981 = vrot.slane %v1980, 4
      %v1982 = vrot.slane %v1709, 5
      %v1983 = vsel %vm866, %v1981, %v1982
      %v1984 = vrot.slane %v1954, 5
      %v1985 = vrot.slane %v1984, 4
      %v1986 = vrot.slane %v1711, 5
      %v1987 = vsel %vm866, %v1985, %v1986
      %v1988 = vrot.slane %v1955, 5
      %v1989 = vrot.slane %v1988, 4
      %v1990 = vrot.slane %v1713, 5
      %v1991 = vsel %vm866, %v1989, %v1990
      %v1992 = vrot.slane %v1956, 5
      %v1993 = vrot.slane %v1992, 4
      %v1994 = vrot.slane %v1715, 5
      %v1995 = vsel %vm866, %v1993, %v1994
      %v1996 = vrot.slane %v1957, 5
      %v1997 = vrot.slane %v1996, 4
      %v1998 = vrot.slane %v1717, 5
      %v1999 = vsel %vm866, %v1997, %v1998
      %v2000 = vrot.slane %v1958, 5
      %v2001 = vrot.slane %v2000, 4
      %v2002 = vrot.slane %v1719, 5
      %v2003 = vsel %vm866, %v2001, %v2002
      %v2004 = vrot.slane %v1959, 5
      %v2005 = vrot.slane %v2004, 4
      %v2006 = vrot.slane %v1721, 5
      %v2007 = vsel %vm866, %v2005, %v2006
      %s2008 = scalar_lea.vmem %s1, 512
      %v2009 = vld [vmem:[%s2008] sm:$0xf]
      %v2010 = vld [vmem:[%s2008 + $0x4] sm:$0xf]
      %v2011 = vld [vmem:[%s2008 + $0x8] sm:$0xf]
      %v2012 = vld [vmem:[%s2008 + $0xc] sm:$0xf]
      %v2013 = vld [vmem:[%s2008 + $0x10] sm:$0xf]
      %v2014 = vld [vmem:[%s2008 + $0x14] sm:$0xf]
      %v2015 = vld [vmem:[%s2008 + $0x18] sm:$0xf]
      %v2016 = vld [vmem:[%s2008 + $0x1c] sm:$0xf]
      %v2017 = vld [vmem:[%s2008 + $0x20] sm:$0xf]
      %v2018 = vld [vmem:[%s2008 + $0x24] sm:$0xf]
      %v2019 = vld [vmem:[%s2008 + $0x28] sm:$0xf]
      %v2020 = vld [vmem:[%s2008 + $0x2c] sm:$0xf]
      %v2021 = vld [vmem:[%s2008 + $0x30] sm:$0xf]
      %v2022 = vld [vmem:[%s2008 + $0x34] sm:$0xf]
      %v2023 = vld [vmem:[%s2008 + $0x38] sm:$0xf]
      %v2024 = vld [vmem:[%s2008 + $0x3c] sm:$0xf]
      %v2025 = vunpack.c.l.b16 %v1979
      %v2026 = vunpack.c.l.b16 %v1983
      %v2027 = vunpack.c.l.b16 %v1987
      %v2028 = vunpack.c.l.b16 %v1991
      %v2029 = vunpack.c.l.b16 %v1995
      %v2030 = vunpack.c.l.b16 %v1999
      %v2031 = vunpack.c.l.b16 %v2003
      %v2032 = vunpack.c.l.b16 %v2007
      %v2033 = vpack.c.b16 %v2026, %v2025
      %v2034 = vpack.c.b16 %v2028, %v2027
      %v2035 = vpack.c.b16 %v2030, %v2029
      %v2036 = vpack.c.b16 %v2032, %v2031
      %v2057 = vunpack.c.l.b16 %v2009
      %v2058 = vunpack.c.l.b16 %v2010
      %v2059 = vunpack.c.l.b16 %v2011
      %v2060 = vunpack.c.l.b16 %v2012
      %v2061 = vunpack.c.l.b16 %v2013
      %v2062 = vunpack.c.l.b16 %v2014
      %v2063 = vunpack.c.l.b16 %v2015
      %v2064 = vunpack.c.l.b16 %v2016
      %v2065 = vunpack.c.l.b16 %v2017
      %v2066 = vunpack.c.l.b16 %v2018
      %v2067 = vunpack.c.l.b16 %v2019
      %v2068 = vunpack.c.l.b16 %v2020
      %v2069 = vunpack.c.l.b16 %v2021
      %v2070 = vunpack.c.l.b16 %v2022
      %v2071 = vunpack.c.l.b16 %v2023
      %v2072 = vunpack.c.l.b16 %v2024
      %v2073 = vpack.c.b16 %v2058, %v2057
      %v2074 = vpack.c.b16 %v2060, %v2059
      %v2075 = vpack.c.b16 %v2062, %v2061
      %v2076 = vpack.c.b16 %v2064, %v2063
      %v2077 = vpack.c.b16 %v2066, %v2065
      %v2078 = vpack.c.b16 %v2068, %v2067
      %v2079 = vpack.c.b16 %v2070, %v2069
      %v2080 = vpack.c.b16 %v2072, %v2071
      %2089 = vmatpush.bf16.msra.mxu0 %v2080
      %2090 = vmatpush.bf16.msra.mxu0 %v2079
      %2091 = vmatpush.bf16.msra.mxu0 %v2078
      %2092 = vmatpush.bf16.msra.mxu0 %v2077
      %2093 = vmatpush.bf16.msra.mxu0 %v2076
      %2094 = vmatpush.bf16.msra.mxu0 %v2075
      %2095 = vmatpush.bf16.msra.mxu0 %v2074
      %2096 = vmatpush.bf16.msra.mxu0 %v2073
      %2097 = vmatmul.bf16.gmra.mxu0 %v2033
      %v2098 = vpop.f32.mrf.mxu0
      %v2099 = vadd.f32 0.0, %v2098
      %v2100 = vpop.f32.mrf.mxu0
      %v2101 = vadd.f32 0.0, %v2100
      %2102 = vmatmul.bf16.gmra.mxu0 %v2034
      %v2103 = vpop.f32.mrf.mxu0
      %v2104 = vadd.f32 0.0, %v2103
      %v2105 = vpop.f32.mrf.mxu0
      %v2106 = vadd.f32 0.0, %v2105
      %2107 = vmatmul.bf16.gmra.mxu0 %v2035
      %v2108 = vpop.f32.mrf.mxu0
      %v2109 = vadd.f32 0.0, %v2108
      %v2110 = vpop.f32.mrf.mxu0
      %v2111 = vadd.f32 0.0, %v2110
      %2112 = vmatmul.bf16.gmra.mxu0 %v2036
      %v2113 = vpop.f32.mrf.mxu0
      %v2114 = vadd.f32 0.0, %v2113
      %v2115 = vpop.f32.mrf.mxu0
      %v2116 = vadd.f32 0.0, %v2115
      %2117 = vdwg.mxu0
      %v2118 = vadd.f32 %v1944, %v2099
      %v2119 = vadd.f32 %v1945, %v2101
      %v2120 = vadd.f32 %v1946, %v2104
      %v2121 = vadd.f32 %v1947, %v2106
      %v2122 = vadd.f32 %v1948, %v2109
      %v2123 = vadd.f32 %v1949, %v2111
      %v2124 = vadd.f32 %v1950, %v2114
      %v2125 = vadd.f32 %v1951, %v2116
      %v2126 = vadd.f32 %v2118, %v2119
      %v2127 = vadd.f32 %v2126, %v2120
      %v2128 = vadd.f32 %v2127, %v2121
      %v2129 = vadd.f32 %v2128, %v2122
      %v2130 = vadd.f32 %v2129, %v2123
      %v2131 = vadd.f32 %v2130, %v2124
      %v2132 = vadd.f32 %v2131, %v2125
      %v2133 = vrot.slane %v2132, 4
      %v2134 = vadd.f32 %v2132, %v2133
      %v2135 = vrot.slane %v2134, 2
      %v2136 = vadd.f32 %v2134, %v2135
      %v2137 = vrot.slane %v2136, 1
      %v2138 = vadd.f32 %v2136, %v2137
      %2139 = vst [vmem:[%s235] sm:$0x1] %v2138
      %v2140 = vmul.f32 %v2118, %v2118
      %v2141 = vmul.f32 %v2119, %v2119
      %v2142 = vmul.f32 %v2120, %v2120
      %v2143 = vmul.f32 %v2121, %v2121
      %v2144 = vmul.f32 %v2122, %v2122
      %v2145 = vmul.f32 %v2123, %v2123
      %v2146 = vmul.f32 %v2124, %v2124
      %v2147 = vmul.f32 %v2125, %v2125
      %v2148 = vadd.f32 %v2140, %v2141
      %v2149 = vadd.f32 %v2148, %v2142
      %v2150 = vadd.f32 %v2149, %v2143
      %v2151 = vadd.f32 %v2150, %v2144
      %v2152 = vadd.f32 %v2151, %v2145
      %v2153 = vadd.f32 %v2152, %v2146
      %v2154 = vadd.f32 %v2153, %v2147
      %v2155 = vrot.slane %v2154, 4
      %v2156 = vadd.f32 %v2154, %v2155
      %v2157 = vrot.slane %v2156, 2
      %v2158 = vadd.f32 %v2156, %v2157
      %v2159 = vrot.slane %v2158, 1
      %v2160 = vadd.f32 %v2158, %v2159
      %2161 = vst [vmem:[%s235 + $0x1] sm:$0x1] %v2160
      %v2162 = vpack.c.bf16 %v2118, %v2118
      %v2163 = vpack.c.bf16 %v2119, %v2119
      %v2164 = vpack.c.bf16 %v2120, %v2120
      %v2165 = vpack.c.bf16 %v2121, %v2121
      %v2166 = vpack.c.bf16 %v2122, %v2122
      %v2167 = vpack.c.bf16 %v2123, %v2123
      %v2168 = vpack.c.bf16 %v2124, %v2124
      %v2169 = vpack.c.bf16 %v2125, %v2125
      %2170 = vst [vmem:[%s231] sm:$0xf] %v2162
      %2171 = vst [vmem:[%s231 + $0x4] sm:$0xf] %v2163
      %2172 = vst [vmem:[%s231 + $0x8] sm:$0xf] %v2164
      %2173 = vst [vmem:[%s231 + $0xc] sm:$0xf] %v2165
      %2174 = vst [vmem:[%s231 + $0x10] sm:$0xf] %v2166
      %2175 = vst [vmem:[%s231 + $0x14] sm:$0xf] %v2167
      %2176 = vst [vmem:[%s231 + $0x18] sm:$0xf] %v2168
      %2177 = vst [vmem:[%s231 + $0x1c] sm:$0xf] %v2169
      %p2178 = scmp.lt.s32.totalorder %s17, 1
      %s2179 = scalar_select %p2178, %s17, 1
      %s2180 = smul.addr %s2179, 8
      %s2181 = smul.addr %s2180, 4
      %s2182 = scalar_lea.vmem %s4, %s2181
      %p2183 = scmp.lt.s32.totalorder %s17, 1
      %s2184 = scalar_select %p2183, %s17, 1
      %s2185 = smul.addr %s2184, 2
      %s2186 = scalar_lea.vmem %s5, %s2185
      // Predicated region
      $region37: #{down_forward.4} parent=35 // pred_check
        %p2187 = pneg %p124
      $region38: #{down_forward.4} parent=35 // pred_check_branch
        %2189 = sbr.rel (%p2187) target = $region40
      $region39: #{down_forward.4} parent=35 // pred_region
        _
      $region40: #{down_forward.4} parent=35 // pred_fallthru
        _
      // Predicated region
      $region41: #{down_forward.4} parent=35 // pred_check
        %p2190 = pneg %p150
      $region42: #{down_forward.4} parent=35 // pred_check_branch
        %2192 = sbr.rel (%p2190) target = $region44
      $region43: #{down_forward.4} parent=35 // pred_region
        _
      $region44: #{down_forward.4} parent=35 // pred_fallthru
        _
    $region36: #{down_forward.4} parent=5 // pred_fallthru
      _
    %p2193 = scmp.le.s32.totalorder 2, %s12
    // Predicated region
    $region45: #{down_forward.4} parent=5 // pred_check
      %p2194 = pneg %p2193
    $region46: #{down_forward.4} parent=5 // pred_check_branch
      %2196 = sbr.rel (%p2194) target = $region48
    $region47: #{down_forward.4} parent=5 // pred_region
      %s2197 = ssub.s32 %s12, 2
      // Predicated region
      $region49: #{down_forward.4} parent=47 // pred_check
        %p2198 = pneg %p130
      $region50: #{down_forward.4} parent=47 // pred_check_branch
        %2200 = sbr.rel (%p2198) target = $region52
      $region51: #{down_forward.4} parent=47 // pred_region
        %p2201 = scmp.lt.s32.totalorder %s18, 1
        %s2202 = scalar_select %p2201, %s18, 1
        %s2203 = smul.addr %s2202, 8
        %s2204 = smul.addr %s2203, 4
        %s2205 = scalar_lea.vmem %s4, %s2204
      $region52: #{down_forward.4} parent=47 // pred_fallthru
        _
      // Predicated region
      $region53: #{down_forward.4} parent=47 // pred_check
        %p2206 = pneg %p156
      $region54: #{down_forward.4} parent=47 // pred_check_branch
        %2208 = sbr.rel (%p2206) target = $region56
      $region55: #{down_forward.4} parent=47 // pred_region
        %p2209 = scmp.lt.s32.totalorder %s18, 1
        %s2210 = scalar_select %p2209, %s18, 1
        %s2211 = smul.addr %s2210, 2
        %s2212 = scalar_lea.vmem %s5, %s2211
      $region56: #{down_forward.4} parent=47 // pred_fallthru
        _
    $region48: #{down_forward.4} parent=5 // pred_fallthru
      _
  $region6: #{down_forward.4} parent=0 // loop_footer
    %s16 = sadd.s32 1, %s12
  $region7: #{down_forward.4} parent=0 // loop_footer_branch
    %11 = sbr.rel target = $region3
  $region8: #{down_forward.4} parent=0 // loop_exit
    _

</llo_original>
